<compile_context>
chip_gen: v5e
topology: v5e:2x2
jax: 0.10.0
libtpu: 0.0.40
codegen_flags: <defaults>
</compile_context>

<pallas_src>
import numpy as np
import jax
import jax.numpy as jnp
from jax.experimental import pallas as pl
from jax.experimental.pallas import tpu as pltpu

# ----------------------------- configuration ------------------------------
B = 2                        # batch
C_IN = 32                    # input_channels
C_OUT = 64                   # output_channels (channel multiplier m = 2)
M_MULT = C_OUT // C_IN
KS, STRIDE, PAD = 3, 2, 1    # mode='sc' -> kernel 3, stride 2, padding 1

HP = WP = 16                 # patch-token spatial grid
HC = WC = 4                  # cls-token   spatial grid
HP_OUT, WP_OUT = HP // STRIDE, WP // STRIDE
HC_OUT, WC_OUT = HC // STRIDE, WC // STRIDE
PP, PP_OUT = HP * WP, HP_OUT * WP_OUT          # 256, 64
PC, PC_OUT = HC * WC, HC_OUT * WC_OUT          # 16, 4
P_IN_ALL = PC + PP                             # 272 stacked input pixels
P_OUT_ALL = PC_OUT + PP_OUT                    # 68  stacked output pixels

LN_EPS = np.float32(1e-5)
_SQRT_2_OVER_PI = np.float32(0.7978845608028654)
_GELU_C = np.float32(0.044715)


# ------------------------- in-kernel math (jnp only) -----------------------
def _gelu(x):
    # tanh-approx GELU (transcendental runs on the EUP); |err| vs torch's
    # exact-erf GELU < 1e-3, far inside the test tolerance.
    return 0.5 * x * (1.0 + jnp.tanh(_SQRT_2_OVER_PI * (x + _GELU_C * x * x * x)))


# ------------------------------- kernel ------------------------------------
def projection_kernel(x_ref, gamma_ref, beta_ref, s_ref, e_ref, bias_ref,
                      out_ref):
    # x_ref    : (P_IN_ALL, B*C_IN)        f32   cls+patch pixels, batch in lanes
    # gamma/beta: (1, B*C_IN)              f32   LN affine, tiled per batch block
    # s_ref    : (9, P_OUT_ALL, P_IN_ALL)  bf16  0/1 tap-gather matrices
    # e_ref    : (9, B*C_IN, B*C_OUT)      bf16  per-tap grouped-conv projection
    # bias_ref : (1, B*C_OUT)              f32
    # out_ref  : (P_OUT_ALL, B*C_OUT)      f32   lane-dense (128 lanes)
    x = x_ref[...]
    n_blk = x.shape[1] // C_IN            # batch images folded into lanes

    # LayerNorm2d: per-pixel channel statistics, computed exactly in f32 for
    # each 32-lane batch block (biased variance, matching torch).
    blocks = []
    for bb in range(n_blk):
        xb = x[:, bb * C_IN:(bb + 1) * C_IN]
        mu = jnp.mean(xb, axis=-1, keepdims=True)
        d = xb - mu
        var = jnp.mean(d * d, axis=-1, keepdims=True)
        blocks.append(d * jax.lax.rsqrt(var + LN_EPS))
    xn = jnp.concatenate(blocks, axis=-1) if n_blk > 1 else blocks[0]
    a = _gelu(xn * gamma_ref[...] + beta_ref[...])     # f32 elementwise
    a = a.astype(jnp.bfloat16)                         # bf16 MXU operand only

    # Grouped 3x3 / stride-2 / pad-1 conv for BOTH branches & BOTH images:
    # per-tap gather (0/1 matrix, block-diag over cls/patch) followed by the
    # per-tap channel projection (block-diag over batch), f32 accumulation.
    acc = jnp.zeros(out_ref.shape, jnp.float32)
    for k in range(KS * KS):
        t = jnp.dot(s_ref[k], a, preferred_element_type=jnp.float32)
        acc = acc + jnp.dot(t.astype(jnp.bfloat16), e_ref[k],
                            preferred_element_type=jnp.float32)
    out_ref[...] = (acc + bias_ref[...]).astype(out_ref.dtype)


# ------------------------------- wrapper ------------------------------------
def run_projection(cls_nchw, patch_nchw, p):
    """xs = (cls_tokens, patch_tokens) in torch NCHW; returns NCHW outputs."""
    b = cls_nchw.shape[0]

    def to_tokens(x):                      # NCHW -> (B, H*W, C) channels-last
        bb, c, h, w = x.shape
        return jnp.transpose(x, (0, 2, 3, 1)).reshape(bb, h * w, c)

    # Stack cls+patch pixels along rows, fold batch into the lane axis.
    x_img = jnp.concatenate([to_tokens(cls_nchw), to_tokens(patch_nchw)],
                            axis=1)                          # (B, 272, C_IN)
    x = jnp.transpose(x_img, (1, 0, 2)).reshape(P_IN_ALL, b * C_IN)

    vmem = pl.BlockSpec(memory_space=pltpu.MemorySpace.VMEM)
    y = pl.pallas_call(
        projection_kernel,
        out_shape=jax.ShapeDtypeStruct((P_OUT_ALL, b * C_OUT), jnp.float32),
        in_specs=[vmem] * 6,
        out_specs=vmem,
    )(x, p['gamma_b'], p['beta_b'], p['s_all'], p['e_all'], p['bias_b'])

    # (68, B*C_OUT) -> split rows (cls/patch) and lanes (batch, channel) -> NCHW
    y = y.reshape(P_OUT_ALL, b, C_OUT)
    cls_o = jnp.transpose(y[:PC_OUT].reshape(HC_OUT, WC_OUT, b, C_OUT),
                          (2, 3, 0, 1))
    patch_o = jnp.transpose(y[PC_OUT:].reshape(HP_OUT, WP_OUT, b, C_OUT),
                            (2, 3, 0, 1))
    return cls_o, patch_o


# --------------------- host-side parameter preprocessing --------------------
def build_selection(h, w, ho, wo):
    """S[k, p_out, p_in] = 1 if tap k of output pixel p_out reads input pixel
    p_in (stride 2, pad 1, k=3); out-of-bounds (padding) taps stay 0."""
    s = np.zeros((KS * KS, ho * wo, h * w), np.float32)
    for kh in range(KS):
        for kw in range(KS):
            k = kh * KS + kw
            for oh in range(ho):
                for ow in range(wo):
                    ih = STRIDE * oh + kh - PAD
                    iw = STRIDE * ow + kw - PAD
                    if 0 <= ih < h and 0 <= iw < w:
                        s[k, oh * wo + ow, ih * w + iw] = 1.0
    return s


def build_tap_projections(w_conv, batch):
    """torch grouped-conv weight (C_OUT,1,3,3) -> per-tap projection matrices
    E[k] of shape (batch*C_IN, batch*C_OUT); depthwise / batch block structure
    is encoded as structural zeros."""
    e = np.zeros((KS * KS, batch * C_IN, batch * C_OUT), np.float32)
    for kh in range(KS):
        for kw in range(KS):
            k = kh * KS + kw
            for o in range(C_OUT):
                c = o // M_MULT
                for bb in range(batch):
                    e[k, bb * C_IN + c, bb * C_OUT + o] = w_conv[o, 0, kh, kw]
    return e


def init_params(key, batch=B):
    kw, kb, kg, kbe = jax.random.split(key, 4)
    ln_w = 1.0 + 0.02 * jax.random.normal(kg, (C_IN,), jnp.float32)
    ln_b = 0.02 * jax.random.normal(kbe, (C_IN,), jnp.float32)
    w_conv = 0.1 * jax.random.normal(kw, (C_OUT, 1, KS, KS), jnp.float32)
    b_conv = 0.02 * jax.random.normal(kb, (C_OUT,), jnp.float32)

    # fused cls+patch block-diagonal 0/1 gather matrices (exact in bf16)
    s_all = np.zeros((KS * KS, P_OUT_ALL, P_IN_ALL), np.float32)
    s_all[:, :PC_OUT, :PC] = build_selection(HC, WC, HC_OUT, WC_OUT)
    s_all[:, PC_OUT:, PC:] = build_selection(HP, WP, HP_OUT, WP_OUT)

    return dict(
        # torch-format (for the reference)
        ln_w=ln_w, ln_b=ln_b, w_conv=w_conv, b_conv=b_conv,
        # kernel-format (preprocessed; batch folded into lanes)
        gamma_b=jnp.tile(ln_w, batch).reshape(1, batch * C_IN),
        beta_b=jnp.tile(ln_b, batch).reshape(1, batch * C_IN),
        bias_b=jnp.tile(b_conv, batch).reshape(1, batch * C_OUT),
        s_all=jnp.asarray(s_all, dtype=jnp.bfloat16),
        e_all=jnp.asarray(build_tap_projections(np.asarray(w_conv), batch),
                          dtype=jnp.bfloat16),
    )


# ------------------------------ reference -----------------------------------
def reference_forward(cls_nchw, patch_nchw, p):
    """Independent pure-JAX mirror of the torch module (NCHW, exact-erf GELU,
    XLA grouped convolution)."""
    def ln2d(x):
        mean = jnp.mean(x, axis=1, keepdims=True)
        var = jnp.mean(jnp.square(x - mean), axis=1, keepdims=True)
        out = (x - mean) / jnp.sqrt(var + LN_EPS)
        return (out * p['ln_w'].reshape(1, C_IN, 1, 1)
                + p['ln_b'].reshape(1, C_IN, 1, 1))

    def gelu_exact(x):
        return 0.5 * x * (1.0 + jax.scipy.special.erf(
            x * np.float32(1.0 / np.sqrt(2.0))))

    def conv(x):
        y = jax.lax.conv_general_dilated(
            x, p['w_conv'], window_strides=(STRIDE, STRIDE),
            padding=((PAD, PAD), (PAD, PAD)),
            dimension_numbers=('NCHW', 'OIHW', 'NCHW'),
            feature_group_count=C_IN)
        return y + p['b_conv'].reshape(1, C_OUT, 1, 1)

    proj = lambda x: conv(gelu_exact(ln2d(x)))
    return proj(cls_nchw), proj(patch_nchw)


# -------------------------------- driver ------------------------------------
if __name__ == "__main__":
    key = jax.random.PRNGKey(0)
    k1, k2, kp = jax.random.split(key, 3)
    params = init_params(kp)

    # xs = (cls_tokens, patch_tokens) in torch NCHW layout
    cls_tokens = jax.random.normal(k1, (B, C_IN, HC, WC), jnp.float32)
    patch_tokens = jax.random.normal(k2, (B, C_IN, HP, WP), jnp.float32)

    cls_out, patch_out = run_projection(cls_tokens, patch_tokens, params)
    cls_out = jax.block_until_ready(cls_out)
    patch_out = jax.block_until_ready(patch_out)

    assert cls_out.shape == (B, C_OUT, HC_OUT, WC_OUT)
    assert patch_out.shape == (B, C_OUT, HP_OUT, WP_OUT)

    ref_cls, ref_patch = reference_forward(cls_tokens, patch_tokens, params)
    np.testing.assert_allclose(np.asarray(cls_out), np.asarray(ref_cls),
                               rtol=2e-2, atol=2e-2)
    np.testing.assert_allclose(np.asarray(patch_out), np.asarray(ref_patch),
                               rtol=2e-2, atol=2e-2)
    print("KERNEL_OK")
</pallas_src>

<mosaic_0001>
module attributes {stable_mosaic.version = 11 : i64} {
  func.func @projection_kernel(%arg0: memref<272x64xf32, #tpu.memory_space<vmem>>, %arg1: memref<1x64xf32, #tpu.memory_space<vmem>>, %arg2: memref<1x64xf32, #tpu.memory_space<vmem>>, %arg3: memref<9x68x272xbf16, #tpu.memory_space<vmem>>, %arg4: memref<9x64x128xbf16, #tpu.memory_space<vmem>>, %arg5: memref<1x128xf32, #tpu.memory_space<vmem>>, %arg6: memref<68x128xf32, #tpu.memory_space<vmem>>) attributes {dimension_semantics = [], scalar_prefetch = 0 : i64, scratch_operands = 0 : i64, tpu.core_type = #tpu.core_type<tc>} {
    %c0 = arith.constant 0 : index
    %c0_0 = arith.constant 0 : index
    %0 = vector.load %arg0[%c0, %c0_0] : memref<272x64xf32, #tpu.memory_space<vmem>>, vector<272x64xf32>
    %1 = vector.extract_strided_slice %0 {offsets = [0, 0], sizes = [272, 32], strides = [1, 1]} : vector<272x64xf32> to vector<272x32xf32>
    %cst = arith.constant dense<0.000000e+00> : vector<272xf32>
    %2 = vector.multi_reduction <add>, %1, %cst [1] : vector<272x32xf32> to vector<272xf32>
    %3 = vector.shape_cast %2 : vector<272xf32> to vector<272x1xf32>
    %cst_1 = arith.constant 3.200000e+01 : f32
    %4 = vector.broadcast %cst_1 : f32 to vector<272x1xf32>
    %5 = arith.divf %3, %4 : vector<272x1xf32>
    %6 = vector.broadcast %5 : vector<272x1xf32> to vector<272x32xf32>
    %7 = arith.subf %1, %6 : vector<272x32xf32>
    %8 = arith.mulf %7, %7 : vector<272x32xf32>
    %cst_2 = arith.constant dense<0.000000e+00> : vector<272xf32>
    %9 = vector.multi_reduction <add>, %8, %cst_2 [1] : vector<272x32xf32> to vector<272xf32>
    %10 = vector.shape_cast %9 : vector<272xf32> to vector<272x1xf32>
    %cst_3 = arith.constant 3.200000e+01 : f32
    %11 = vector.broadcast %cst_3 : f32 to vector<272x1xf32>
    %12 = arith.divf %10, %11 : vector<272x1xf32>
    %cst_4 = arith.constant 9.99999974E-6 : f32
    %13 = vector.broadcast %cst_4 : f32 to vector<272x1xf32>
    %14 = arith.addf %12, %13 : vector<272x1xf32>
    %15 = math.rsqrt %14 : vector<272x1xf32>
    %16 = vector.broadcast %15 : vector<272x1xf32> to vector<272x32xf32>
    %17 = arith.mulf %7, %16 : vector<272x32xf32>
    %18 = vector.extract_strided_slice %0 {offsets = [0, 32], sizes = [272, 32], strides = [1, 1]} : vector<272x64xf32> to vector<272x32xf32>
    %cst_5 = arith.constant dense<0.000000e+00> : vector<272xf32>
    %19 = vector.multi_reduction <add>, %18, %cst_5 [1] : vector<272x32xf32> to vector<272xf32>
    %20 = vector.shape_cast %19 : vector<272xf32> to vector<272x1xf32>
    %cst_6 = arith.constant 3.200000e+01 : f32
    %21 = vector.broadcast %cst_6 : f32 to vector<272x1xf32>
    %22 = arith.divf %20, %21 : vector<272x1xf32>
    %23 = vector.broadcast %22 : vector<272x1xf32> to vector<272x32xf32>
    %24 = arith.subf %18, %23 : vector<272x32xf32>
    %25 = arith.mulf %24, %24 : vector<272x32xf32>
    %cst_7 = arith.constant dense<0.000000e+00> : vector<272xf32>
    %26 = vector.multi_reduction <add>, %25, %cst_7 [1] : vector<272x32xf32> to vector<272xf32>
    %27 = vector.shape_cast %26 : vector<272xf32> to vector<272x1xf32>
    %cst_8 = arith.constant 3.200000e+01 : f32
    %28 = vector.broadcast %cst_8 : f32 to vector<272x1xf32>
    %29 = arith.divf %27, %28 : vector<272x1xf32>
    %cst_9 = arith.constant 9.99999974E-6 : f32
    %30 = vector.broadcast %cst_9 : f32 to vector<272x1xf32>
    %31 = arith.addf %29, %30 : vector<272x1xf32>
    %32 = math.rsqrt %31 : vector<272x1xf32>
    %33 = vector.broadcast %32 : vector<272x1xf32> to vector<272x32xf32>
    %34 = arith.mulf %24, %33 : vector<272x32xf32>
    %35 = tpu.concatenate %17, %34 in 1 : vector<272x32xf32>, vector<272x32xf32> -> vector<272x64xf32>
    %c0_10 = arith.constant 0 : index
    %c0_11 = arith.constant 0 : index
    %36 = vector.load %arg1[%c0_10, %c0_11] : memref<1x64xf32, #tpu.memory_space<vmem>>, vector<1x64xf32>
    %37 = vector.broadcast %36 : vector<1x64xf32> to vector<272x64xf32>
    %38 = arith.mulf %35, %37 : vector<272x64xf32>
    %c0_12 = arith.constant 0 : index
    %c0_13 = arith.constant 0 : index
    %39 = vector.load %arg2[%c0_12, %c0_13] : memref<1x64xf32, #tpu.memory_space<vmem>>, vector<1x64xf32>
    %40 = vector.broadcast %39 : vector<1x64xf32> to vector<272x64xf32>
    %41 = arith.addf %38, %40 : vector<272x64xf32>
    %cst_14 = arith.constant 5.000000e-01 : f32
    %42 = vector.broadcast %cst_14 : f32 to vector<272x64xf32>
    %43 = arith.mulf %42, %41 : vector<272x64xf32>
    %cst_15 = arith.constant 4.471500e-02 : f32
    %44 = vector.broadcast %cst_15 : f32 to vector<272x64xf32>
    %45 = arith.mulf %44, %41 : vector<272x64xf32>
    %46 = arith.mulf %45, %41 : vector<272x64xf32>
    %47 = arith.mulf %46, %41 : vector<272x64xf32>
    %48 = arith.addf %41, %47 : vector<272x64xf32>
    %cst_16 = arith.constant 0.797884583 : f32
    %49 = vector.broadcast %cst_16 : f32 to vector<272x64xf32>
    %50 = arith.mulf %49, %48 : vector<272x64xf32>
    %51 = math.tanh %50 : vector<272x64xf32>
    %cst_17 = arith.constant 1.000000e+00 : f32
    %52 = vector.broadcast %cst_17 : f32 to vector<272x64xf32>
    %53 = arith.addf %52, %51 : vector<272x64xf32>
    %54 = arith.mulf %43, %53 : vector<272x64xf32>
    %55 = arith.truncf %54 : vector<272x64xf32> to vector<272x64xbf16>
    %cst_18 = arith.constant 0.000000e+00 : f32
    %56 = vector.broadcast %cst_18 : f32 to vector<68x128xf32>
    %c0_19 = arith.constant 0 : index
    %c0_20 = arith.constant 0 : index
    %c0_21 = arith.constant 0 : index
    %57 = vector.load %arg3[%c0_19, %c0_20, %c0_21] : memref<9x68x272xbf16, #tpu.memory_space<vmem>>, vector<1x68x272xbf16>
    %58 = vector.shape_cast %57 : vector<1x68x272xbf16> to vector<68x272xbf16>
    %cst_22 = arith.constant dense<0.000000e+00> : vector<68x64xf32>
    %59 = tpu.matmul %58, %55, %cst_22 {dimension_numbers = #tpu.dot_dimension_numbers<[1], [0], [0], [1], [0, 0, 1, 1], [], []>} : vector<68x272xbf16>, vector<272x64xbf16>, vector<68x64xf32> -> vector<68x64xf32>
    %60 = arith.truncf %59 : vector<68x64xf32> to vector<68x64xbf16>
    %c0_23 = arith.constant 0 : index
    %c0_24 = arith.constant 0 : index
    %c0_25 = arith.constant 0 : index
    %61 = vector.load %arg4[%c0_23, %c0_24, %c0_25] : memref<9x64x128xbf16, #tpu.memory_space<vmem>>, vector<1x64x128xbf16>
    %62 = vector.shape_cast %61 : vector<1x64x128xbf16> to vector<64x128xbf16>
    %cst_26 = arith.constant dense<0.000000e+00> : vector<68x128xf32>
    %63 = tpu.matmul %60, %62, %cst_26 {dimension_numbers = #tpu.dot_dimension_numbers<[1], [0], [0], [1], [0, 0, 1, 1], [], []>} : vector<68x64xbf16>, vector<64x128xbf16>, vector<68x128xf32> -> vector<68x128xf32>
    %64 = arith.addf %56, %63 : vector<68x128xf32>
    %c1 = arith.constant 1 : index
    %c0_27 = arith.constant 0 : index
    %c0_28 = arith.constant 0 : index
    %65 = vector.load %arg3[%c1, %c0_27, %c0_28] : memref<9x68x272xbf16, #tpu.memory_space<vmem>>, vector<1x68x272xbf16>
    %66 = vector.shape_cast %65 : vector<1x68x272xbf16> to vector<68x272xbf16>
    %cst_29 = arith.constant dense<0.000000e+00> : vector<68x64xf32>
    %67 = tpu.matmul %66, %55, %cst_29 {dimension_numbers = #tpu.dot_dimension_numbers<[1], [0], [0], [1], [0, 0, 1, 1], [], []>} : vector<68x272xbf16>, vector<272x64xbf16>, vector<68x64xf32> -> vector<68x64xf32>
    %68 = arith.truncf %67 : vector<68x64xf32> to vector<68x64xbf16>
    %c1_30 = arith.constant 1 : index
    %c0_31 = arith.constant 0 : index
    %c0_32 = arith.constant 0 : index
    %69 = vector.load %arg4[%c1_30, %c0_31, %c0_32] : memref<9x64x128xbf16, #tpu.memory_space<vmem>>, vector<1x64x128xbf16>
    %70 = vector.shape_cast %69 : vector<1x64x128xbf16> to vector<64x128xbf16>
    %cst_33 = arith.constant dense<0.000000e+00> : vector<68x128xf32>
    %71 = tpu.matmul %68, %70, %cst_33 {dimension_numbers = #tpu.dot_dimension_numbers<[1], [0], [0], [1], [0, 0, 1, 1], [], []>} : vector<68x64xbf16>, vector<64x128xbf16>, vector<68x128xf32> -> vector<68x128xf32>
    %72 = arith.addf %64, %71 : vector<68x128xf32>
    %c2 = arith.constant 2 : index
    %c0_34 = arith.constant 0 : index
    %c0_35 = arith.constant 0 : index
    %73 = vector.load %arg3[%c2, %c0_34, %c0_35] : memref<9x68x272xbf16, #tpu.memory_space<vmem>>, vector<1x68x272xbf16>
    %74 = vector.shape_cast %73 : vector<1x68x272xbf16> to vector<68x272xbf16>
    %cst_36 = arith.constant dense<0.000000e+00> : vector<68x64xf32>
    %75 = tpu.matmul %74, %55, %cst_36 {dimension_numbers = #tpu.dot_dimension_numbers<[1], [0], [0], [1], [0, 0, 1, 1], [], []>} : vector<68x272xbf16>, vector<272x64xbf16>, vector<68x64xf32> -> vector<68x64xf32>
    %76 = arith.truncf %75 : vector<68x64xf32> to vector<68x64xbf16>
    %c2_37 = arith.constant 2 : index
    %c0_38 = arith.constant 0 : index
    %c0_39 = arith.constant 0 : index
    %77 = vector.load %arg4[%c2_37, %c0_38, %c0_39] : memref<9x64x128xbf16, #tpu.memory_space<vmem>>, vector<1x64x128xbf16>
    %78 = vector.shape_cast %77 : vector<1x64x128xbf16> to vector<64x128xbf16>
    %cst_40 = arith.constant dense<0.000000e+00> : vector<68x128xf32>
    %79 = tpu.matmul %76, %78, %cst_40 {dimension_numbers = #tpu.dot_dimension_numbers<[1], [0], [0], [1], [0, 0, 1, 1], [], []>} : vector<68x64xbf16>, vector<64x128xbf16>, vector<68x128xf32> -> vector<68x128xf32>
    %80 = arith.addf %72, %79 : vector<68x128xf32>
    %c3 = arith.constant 3 : index
    %c0_41 = arith.constant 0 : index
    %c0_42 = arith.constant 0 : index
    %81 = vector.load %arg3[%c3, %c0_41, %c0_42] : memref<9x68x272xbf16, #tpu.memory_space<vmem>>, vector<1x68x272xbf16>
    %82 = vector.shape_cast %81 : vector<1x68x272xbf16> to vector<68x272xbf16>
    %cst_43 = arith.constant dense<0.000000e+00> : vector<68x64xf32>
    %83 = tpu.matmul %82, %55, %cst_43 {dimension_numbers = #tpu.dot_dimension_numbers<[1], [0], [0], [1], [0, 0, 1, 1], [], []>} : vector<68x272xbf16>, vector<272x64xbf16>, vector<68x64xf32> -> vector<68x64xf32>
    %84 = arith.truncf %83 : vector<68x64xf32> to vector<68x64xbf16>
    %c3_44 = arith.constant 3 : index
    %c0_45 = arith.constant 0 : index
    %c0_46 = arith.constant 0 : index
    %85 = vector.load %arg4[%c3_44, %c0_45, %c0_46] : memref<9x64x128xbf16, #tpu.memory_space<vmem>>, vector<1x64x128xbf16>
    %86 = vector.shape_cast %85 : vector<1x64x128xbf16> to vector<64x128xbf16>
    %cst_47 = arith.constant dense<0.000000e+00> : vector<68x128xf32>
    %87 = tpu.matmul %84, %86, %cst_47 {dimension_numbers = #tpu.dot_dimension_numbers<[1], [0], [0], [1], [0, 0, 1, 1], [], []>} : vector<68x64xbf16>, vector<64x128xbf16>, vector<68x128xf32> -> vector<68x128xf32>
    %88 = arith.addf %80, %87 : vector<68x128xf32>
    %c4 = arith.constant 4 : index
    %c0_48 = arith.constant 0 : index
    %c0_49 = arith.constant 0 : index
    %89 = vector.load %arg3[%c4, %c0_48, %c0_49] : memref<9x68x272xbf16, #tpu.memory_space<vmem>>, vector<1x68x272xbf16>
    %90 = vector.shape_cast %89 : vector<1x68x272xbf16> to vector<68x272xbf16>
    %cst_50 = arith.constant dense<0.000000e+00> : vector<68x64xf32>
    %91 = tpu.matmul %90, %55, %cst_50 {dimension_numbers = #tpu.dot_dimension_numbers<[1], [0], [0], [1], [0, 0, 1, 1], [], []>} : vector<68x272xbf16>, vector<272x64xbf16>, vector<68x64xf32> -> vector<68x64xf32>
    %92 = arith.truncf %91 : vector<68x64xf32> to vector<68x64xbf16>
    %c4_51 = arith.constant 4 : index
    %c0_52 = arith.constant 0 : index
    %c0_53 = arith.constant 0 : index
    %93 = vector.load %arg4[%c4_51, %c0_52, %c0_53] : memref<9x64x128xbf16, #tpu.memory_space<vmem>>, vector<1x64x128xbf16>
    %94 = vector.shape_cast %93 : vector<1x64x128xbf16> to vector<64x128xbf16>
    %cst_54 = arith.constant dense<0.000000e+00> : vector<68x128xf32>
    %95 = tpu.matmul %92, %94, %cst_54 {dimension_numbers = #tpu.dot_dimension_numbers<[1], [0], [0], [1], [0, 0, 1, 1], [], []>} : vector<68x64xbf16>, vector<64x128xbf16>, vector<68x128xf32> -> vector<68x128xf32>
    %96 = arith.addf %88, %95 : vector<68x128xf32>
    %c5 = arith.constant 5 : index
    %c0_55 = arith.constant 0 : index
    %c0_56 = arith.constant 0 : index
    %97 = vector.load %arg3[%c5, %c0_55, %c0_56] : memref<9x68x272xbf16, #tpu.memory_space<vmem>>, vector<1x68x272xbf16>
    %98 = vector.shape_cast %97 : vector<1x68x272xbf16> to vector<68x272xbf16>
    %cst_57 = arith.constant dense<0.000000e+00> : vector<68x64xf32>
    %99 = tpu.matmul %98, %55, %cst_57 {dimension_numbers = #tpu.dot_dimension_numbers<[1], [0], [0], [1], [0, 0, 1, 1], [], []>} : vector<68x272xbf16>, vector<272x64xbf16>, vector<68x64xf32> -> vector<68x64xf32>
    %100 = arith.truncf %99 : vector<68x64xf32> to vector<68x64xbf16>
    %c5_58 = arith.constant 5 : index
    %c0_59 = arith.constant 0 : index
    %c0_60 = arith.constant 0 : index
    %101 = vector.load %arg4[%c5_58, %c0_59, %c0_60] : memref<9x64x128xbf16, #tpu.memory_space<vmem>>, vector<1x64x128xbf16>
    %102 = vector.shape_cast %101 : vector<1x64x128xbf16> to vector<64x128xbf16>
    %cst_61 = arith.constant dense<0.000000e+00> : vector<68x128xf32>
    %103 = tpu.matmul %100, %102, %cst_61 {dimension_numbers = #tpu.dot_dimension_numbers<[1], [0], [0], [1], [0, 0, 1, 1], [], []>} : vector<68x64xbf16>, vector<64x128xbf16>, vector<68x128xf32> -> vector<68x128xf32>
    %104 = arith.addf %96, %103 : vector<68x128xf32>
    %c6 = arith.constant 6 : index
    %c0_62 = arith.constant 0 : index
    %c0_63 = arith.constant 0 : index
    %105 = vector.load %arg3[%c6, %c0_62, %c0_63] : memref<9x68x272xbf16, #tpu.memory_space<vmem>>, vector<1x68x272xbf16>
    %106 = vector.shape_cast %105 : vector<1x68x272xbf16> to vector<68x272xbf16>
    %cst_64 = arith.constant dense<0.000000e+00> : vector<68x64xf32>
    %107 = tpu.matmul %106, %55, %cst_64 {dimension_numbers = #tpu.dot_dimension_numbers<[1], [0], [0], [1], [0, 0, 1, 1], [], []>} : vector<68x272xbf16>, vector<272x64xbf16>, vector<68x64xf32> -> vector<68x64xf32>
    %108 = arith.truncf %107 : vector<68x64xf32> to vector<68x64xbf16>
    %c6_65 = arith.constant 6 : index
    %c0_66 = arith.constant 0 : index
    %c0_67 = arith.constant 0 : index
    %109 = vector.load %arg4[%c6_65, %c0_66, %c0_67] : memref<9x64x128xbf16, #tpu.memory_space<vmem>>, vector<1x64x128xbf16>
    %110 = vector.shape_cast %109 : vector<1x64x128xbf16> to vector<64x128xbf16>
    %cst_68 = arith.constant dense<0.000000e+00> : vector<68x128xf32>
    %111 = tpu.matmul %108, %110, %cst_68 {dimension_numbers = #tpu.dot_dimension_numbers<[1], [0], [0], [1], [0, 0, 1, 1], [], []>} : vector<68x64xbf16>, vector<64x128xbf16>, vector<68x128xf32> -> vector<68x128xf32>
    %112 = arith.addf %104, %111 : vector<68x128xf32>
    %c7 = arith.constant 7 : index
    %c0_69 = arith.constant 0 : index
    %c0_70 = arith.constant 0 : index
    %113 = vector.load %arg3[%c7, %c0_69, %c0_70] : memref<9x68x272xbf16, #tpu.memory_space<vmem>>, vector<1x68x272xbf16>
    %114 = vector.shape_cast %113 : vector<1x68x272xbf16> to vector<68x272xbf16>
    %cst_71 = arith.constant dense<0.000000e+00> : vector<68x64xf32>
    %115 = tpu.matmul %114, %55, %cst_71 {dimension_numbers = #tpu.dot_dimension_numbers<[1], [0], [0], [1], [0, 0, 1, 1], [], []>} : vector<68x272xbf16>, vector<272x64xbf16>, vector<68x64xf32> -> vector<68x64xf32>
    %116 = arith.truncf %115 : vector<68x64xf32> to vector<68x64xbf16>
    %c7_72 = arith.constant 7 : index
    %c0_73 = arith.constant 0 : index
    %c0_74 = arith.constant 0 : index
    %117 = vector.load %arg4[%c7_72, %c0_73, %c0_74] : memref<9x64x128xbf16, #tpu.memory_space<vmem>>, vector<1x64x128xbf16>
    %118 = vector.shape_cast %117 : vector<1x64x128xbf16> to vector<64x128xbf16>
    %cst_75 = arith.constant dense<0.000000e+00> : vector<68x128xf32>
    %119 = tpu.matmul %116, %118, %cst_75 {dimension_numbers = #tpu.dot_dimension_numbers<[1], [0], [0], [1], [0, 0, 1, 1], [], []>} : vector<68x64xbf16>, vector<64x128xbf16>, vector<68x128xf32> -> vector<68x128xf32>
    %120 = arith.addf %112, %119 : vector<68x128xf32>
    %c8 = arith.constant 8 : index
    %c0_76 = arith.constant 0 : index
    %c0_77 = arith.constant 0 : index
    %121 = vector.load %arg3[%c8, %c0_76, %c0_77] : memref<9x68x272xbf16, #tpu.memory_space<vmem>>, vector<1x68x272xbf16>
    %122 = vector.shape_cast %121 : vector<1x68x272xbf16> to vector<68x272xbf16>
    %cst_78 = arith.constant dense<0.000000e+00> : vector<68x64xf32>
    %123 = tpu.matmul %122, %55, %cst_78 {dimension_numbers = #tpu.dot_dimension_numbers<[1], [0], [0], [1], [0, 0, 1, 1], [], []>} : vector<68x272xbf16>, vector<272x64xbf16>, vector<68x64xf32> -> vector<68x64xf32>
    %124 = arith.truncf %123 : vector<68x64xf32> to vector<68x64xbf16>
    %c8_79 = arith.constant 8 : index
    %c0_80 = arith.constant 0 : index
    %c0_81 = arith.constant 0 : index
    %125 = vector.load %arg4[%c8_79, %c0_80, %c0_81] : memref<9x64x128xbf16, #tpu.memory_space<vmem>>, vector<1x64x128xbf16>
    %126 = vector.shape_cast %125 : vector<1x64x128xbf16> to vector<64x128xbf16>
    %cst_82 = arith.constant dense<0.000000e+00> : vector<68x128xf32>
    %127 = tpu.matmul %124, %126, %cst_82 {dimension_numbers = #tpu.dot_dimension_numbers<[1], [0], [0], [1], [0, 0, 1, 1], [], []>} : vector<68x64xbf16>, vector<64x128xbf16>, vector<68x128xf32> -> vector<68x128xf32>
    %128 = arith.addf %120, %127 : vector<68x128xf32>
    %c0_83 = arith.constant 0 : index
    %c0_84 = arith.constant 0 : index
    %129 = vector.load %arg5[%c0_83, %c0_84] : memref<1x128xf32, #tpu.memory_space<vmem>>, vector<1x128xf32>
    %130 = vector.broadcast %129 : vector<1x128xf32> to vector<68x128xf32>
    %131 = arith.addf %128, %130 : vector<68x128xf32>
    %c0_85 = arith.constant 0 : index
    %c0_86 = arith.constant 0 : index
    %132 = vector.load %arg6[%c0_85, %c0_86] : memref<68x128xf32, #tpu.memory_space<vmem>>, vector<68x128xf32>
    tpu.vector_store %arg6[%c0_85, %c0_86], %131 {strides = array<i32>} : memref<68x128xf32, #tpu.memory_space<vmem>>, vector<68x128xf32>,
    return
  }
}

</mosaic_0001>

<llo_original>
// kernel: tpu_custom_call.1
$region0: #{tpu_custom_call.1}
  #allocation0 [shape = 'u32[]', space=smem, size = 0x4, offset = 0x4, fixed_abs, tag = 'smem constant byte address 0x4 - core index']
  #allocation1 [shape = 'u32[72,128]{1,0:T(1,128)}', space=vmem, size = 0x9000, scoped, tag = 'internal scratch']
  %s0 = inlined_call_operand.vmem [shape: f32[272,64], index: 0, kind: input, shape index: {}]
  %s1 = inlined_call_operand.vmem [shape: f32[1,64], index: 1, kind: input, shape index: {}]
  %s2 = inlined_call_operand.vmem [shape: f32[1,64], index: 2, kind: input, shape index: {}]
  %s3 = inlined_call_operand.hbm [shape: bf16[9,68,272], index: 3, kind: input, shape index: {}]
  %s4 = inlined_call_operand.vmem [shape: bf16[9,64,128], index: 4, kind: input, shape index: {}]
  %s5 = inlined_call_operand.vmem [shape: f32[1,128], index: 5, kind: input, shape index: {}]
  %s6 = inlined_call_operand.hbm [shape: f32[68,128], index: 6, kind: output, shape index: {}]
  %s7 = sld [smem:[#allocation0]]
  $region38: #{tpu_custom_call.1} parent=0
    _
  %s9 = ssub.s32 1, %s7
  %s10 = scalar_select 0, %s9, %s7
  $region1: #{tpu_custom_call.1} parent=0
    #allocation2 [shape = 'u8[497664]{0}', space=vmem, size = 0x79800, scoped, tag = 'input window, operand 3, single buffered']
    #allocation3 [shape = 's32[1]{0}', space=sflag, size = 0x4, scoped, tag = 'scoped memory for tpu_custom_call.1']
    #allocation4 [shape = 's32[1]{0}', space=sflag, size = 0x4, scoped, tag = 'scoped memory for tpu_custom_call.1']
    #allocation5 [shape = 'u8[36864]{0}', space=vmem, size = 0x9000, scoped, tag = 'output window, operand 0, single buffered']
    %11 = vsyncpa [#allocation3], 0
    %12 = vsyncpa [#allocation4], 0
    // Predicated region
    $region2: #{tpu_custom_call.1} parent=1 // pred_check
      _
    $region3: #{tpu_custom_call.1} parent=1 // pred_check_branch
      %14 = sbr.rel (0) target = $region5
    $region4: #{tpu_custom_call.1} parent=1 // pred_region
      _
    $region5: #{tpu_custom_call.1} parent=1 // pred_fallthru
      _
    // Predicated region
    $region6: #{tpu_custom_call.1} parent=1 // pred_check
      _
    $region7: #{tpu_custom_call.1} parent=1 // pred_check_branch
      %16 = sbr.rel (0) target = $region9
    $region8: #{tpu_custom_call.1} parent=1 // pred_region
      _
    $region9: #{tpu_custom_call.1} parent=1 // pred_fallthru
      _
    // Predicated region
    $region10: #{tpu_custom_call.1} parent=1 // pred_check
      _
    $region11: #{tpu_custom_call.1} parent=1 // pred_check_branch
      %18 = sbr.rel (0) target = $region13
    $region12: #{tpu_custom_call.1} parent=1 // pred_region
      _
    $region13: #{tpu_custom_call.1} parent=1 // pred_fallthru
      _
    // Predicated region
    $region14: #{tpu_custom_call.1} parent=1 // pred_check
      _
    $region15: #{tpu_custom_call.1} parent=1 // pred_check_branch
      %20 = sbr.rel (0) target = $region17
    $region16: #{tpu_custom_call.1} parent=1 // pred_region
      %22 = vsyncadd [#allocation3], 0
      %s23 = sshll.u32 %s3, 4
      %s24 = int_to_ptr.hbm [resolvable:$true] %s23
      %s25 = sshll.u32 [#allocation2], 4
      %s26 = int_to_ptr.vmem [resolvable:$true] %s25
      %31 = dma.hbm_to_vmem [thread:$0]  %s24, 15552, %s26, [#allocation3], 192, 192, 12
    $region17: #{tpu_custom_call.1} parent=1 // pred_fallthru
      _
    // Predicated region
    $region18: #{tpu_custom_call.1} parent=1 // pred_check
      _
    $region19: #{tpu_custom_call.1} parent=1 // pred_check_branch
      %33 = sbr.rel (0) target = $region21
    $region20: #{tpu_custom_call.1} parent=1 // pred_region
      _
    $region21: #{tpu_custom_call.1} parent=1 // pred_fallthru
      _
    // Predicated region
    $region22: #{tpu_custom_call.1} parent=1 // pred_check
      _
    $region23: #{tpu_custom_call.1} parent=1 // pred_check_branch
      %35 = sbr.rel (0) target = $region25
    $region24: #{tpu_custom_call.1} parent=1 // pred_region
      _
    $region25: #{tpu_custom_call.1} parent=1 // pred_fallthru
      _
    // Predicated region
    $region26: #{tpu_custom_call.1} parent=1 // pred_check
      _
    $region27: #{tpu_custom_call.1} parent=1 // pred_check_branch
      %37 = sbr.rel (0) target = $region29
    $region28: #{tpu_custom_call.1} parent=1 // pred_region
      %39 = dma.done [#allocation3], 15552
    $region29: #{tpu_custom_call.1} parent=1 // pred_fallthru
      _
    %v41 = vld [vmem:[%s0] sm:$0xff]
    %v42 = vld [vmem:[%s0 + $0x8] sm:$0xff]
    %v43 = vld [vmem:[%s0 + $0x10] sm:$0xff]
    %v44 = vld [vmem:[%s0 + $0x18] sm:$0xff]
    %v45 = vld [vmem:[%s0 + $0x20] sm:$0xff]
    %v46 = vld [vmem:[%s0 + $0x28] sm:$0xff]
    %v47 = vld [vmem:[%s0 + $0x30] sm:$0xff]
    %v48 = vld [vmem:[%s0 + $0x38] sm:$0xff]
    %v49 = vld [vmem:[%s0 + $0x40] sm:$0xff]
    %v50 = vld [vmem:[%s0 + $0x48] sm:$0xff]
    %v51 = vld [vmem:[%s0 + $0x50] sm:$0xff]
    %v52 = vld [vmem:[%s0 + $0x58] sm:$0xff]
    %v53 = vld [vmem:[%s0 + $0x60] sm:$0xff]
    %v54 = vld [vmem:[%s0 + $0x68] sm:$0xff]
    %v55 = vld [vmem:[%s0 + $0x70] sm:$0xff]
    %v56 = vld [vmem:[%s0 + $0x78] sm:$0xff]
    %v57 = vld [vmem:[%s0 + $0x80] sm:$0xff]
    %v58 = vld [vmem:[%s0 + $0x88] sm:$0xff]
    %v59 = vld [vmem:[%s0 + $0x90] sm:$0xff]
    %v60 = vld [vmem:[%s0 + $0x98] sm:$0xff]
    %v61 = vld [vmem:[%s0 + $0xa0] sm:$0xff]
    %v62 = vld [vmem:[%s0 + $0xa8] sm:$0xff]
    %v63 = vld [vmem:[%s0 + $0xb0] sm:$0xff]
    %v64 = vld [vmem:[%s0 + $0xb8] sm:$0xff]
    %v65 = vld [vmem:[%s0 + $0xc0] sm:$0xff]
    %v66 = vld [vmem:[%s0 + $0xc8] sm:$0xff]
    %v67 = vld [vmem:[%s0 + $0xd0] sm:$0xff]
    %v68 = vld [vmem:[%s0 + $0xd8] sm:$0xff]
    %v69 = vld [vmem:[%s0 + $0xe0] sm:$0xff]
    %v70 = vld [vmem:[%s0 + $0xe8] sm:$0xff]
    %v71 = vld [vmem:[%s0 + $0xf0] sm:$0xff]
    %v72 = vld [vmem:[%s0 + $0xf8] sm:$0xff]
    %v73 = vld [vmem:[%s0 + $0x100] sm:$0xff]
    %v74 = vld [vmem:[%s0 + $0x108] sm:$0xff]
    %vm75 = vcmask 261120
    %v76 = vsel %vm75, %v41, 0.0
    %77 = vadd.xlane.f32.xlu0 %v76
    %v78 = vpop.xlane.xlu0 %77
    %v79 = vsel %vm75, %v42, 0.0
    %80 = vadd.xlane.f32.xlu0 %v79
    %v81 = vpop.xlane.xlu0 %80
    %v82 = vsel %vm75, %v43, 0.0
    %83 = vadd.xlane.f32.xlu0 %v82
    %v84 = vpop.xlane.xlu0 %83
    %v85 = vsel %vm75, %v44, 0.0
    %86 = vadd.xlane.f32.xlu0 %v85
    %v87 = vpop.xlane.xlu0 %86
    %v88 = vsel %vm75, %v45, 0.0
    %89 = vadd.xlane.f32.xlu0 %v88
    %v90 = vpop.xlane.xlu0 %89
    %v91 = vsel %vm75, %v46, 0.0
    %92 = vadd.xlane.f32.xlu0 %v91
    %v93 = vpop.xlane.xlu0 %92
    %v94 = vsel %vm75, %v47, 0.0
    %95 = vadd.xlane.f32.xlu0 %v94
    %v96 = vpop.xlane.xlu0 %95
    %v97 = vsel %vm75, %v48, 0.0
    %98 = vadd.xlane.f32.xlu0 %v97
    %v99 = vpop.xlane.xlu0 %98
    %v100 = vsel %vm75, %v49, 0.0
    %101 = vadd.xlane.f32.xlu0 %v100
    %v102 = vpop.xlane.xlu0 %101
    %v103 = vsel %vm75, %v50, 0.0
    %104 = vadd.xlane.f32.xlu0 %v103
    %v105 = vpop.xlane.xlu0 %104
    %v106 = vsel %vm75, %v51, 0.0
    %107 = vadd.xlane.f32.xlu0 %v106
    %v108 = vpop.xlane.xlu0 %107
    %v109 = vsel %vm75, %v52, 0.0
    %110 = vadd.xlane.f32.xlu0 %v109
    %v111 = vpop.xlane.xlu0 %110
    %v112 = vsel %vm75, %v53, 0.0
    %113 = vadd.xlane.f32.xlu0 %v112
    %v114 = vpop.xlane.xlu0 %113
    %v115 = vsel %vm75, %v54, 0.0
    %116 = vadd.xlane.f32.xlu0 %v115
    %v117 = vpop.xlane.xlu0 %116
    %v118 = vsel %vm75, %v55, 0.0
    %119 = vadd.xlane.f32.xlu0 %v118
    %v120 = vpop.xlane.xlu0 %119
    %v121 = vsel %vm75, %v56, 0.0
    %122 = vadd.xlane.f32.xlu0 %v121
    %v123 = vpop.xlane.xlu0 %122
    %v124 = vsel %vm75, %v57, 0.0
    %125 = vadd.xlane.f32.xlu0 %v124
    %v126 = vpop.xlane.xlu0 %125
    %v127 = vsel %vm75, %v58, 0.0
    %128 = vadd.xlane.f32.xlu0 %v127
    %v129 = vpop.xlane.xlu0 %128
    %v130 = vsel %vm75, %v59, 0.0
    %131 = vadd.xlane.f32.xlu0 %v130
    %v132 = vpop.xlane.xlu0 %131
    %v133 = vsel %vm75, %v60, 0.0
    %134 = vadd.xlane.f32.xlu0 %v133
    %v135 = vpop.xlane.xlu0 %134
    %v136 = vsel %vm75, %v61, 0.0
    %137 = vadd.xlane.f32.xlu0 %v136
    %v138 = vpop.xlane.xlu0 %137
    %v139 = vsel %vm75, %v62, 0.0
    %140 = vadd.xlane.f32.xlu0 %v139
    %v141 = vpop.xlane.xlu0 %140
    %v142 = vsel %vm75, %v63, 0.0
    %143 = vadd.xlane.f32.xlu0 %v142
    %v144 = vpop.xlane.xlu0 %143
    %v145 = vsel %vm75, %v64, 0.0
    %146 = vadd.xlane.f32.xlu0 %v145
    %v147 = vpop.xlane.xlu0 %146
    %v148 = vsel %vm75, %v65, 0.0
    %149 = vadd.xlane.f32.xlu0 %v148
    %v150 = vpop.xlane.xlu0 %149
    %v151 = vsel %vm75, %v66, 0.0
    %152 = vadd.xlane.f32.xlu0 %v151
    %v153 = vpop.xlane.xlu0 %152
    %v154 = vsel %vm75, %v67, 0.0
    %155 = vadd.xlane.f32.xlu0 %v154
    %v156 = vpop.xlane.xlu0 %155
    %v157 = vsel %vm75, %v68, 0.0
    %158 = vadd.xlane.f32.xlu0 %v157
    %v159 = vpop.xlane.xlu0 %158
    %v160 = vsel %vm75, %v69, 0.0
    %161 = vadd.xlane.f32.xlu0 %v160
    %v162 = vpop.xlane.xlu0 %161
    %v163 = vsel %vm75, %v70, 0.0
    %164 = vadd.xlane.f32.xlu0 %v163
    %v165 = vpop.xlane.xlu0 %164
    %v166 = vsel %vm75, %v71, 0.0
    %167 = vadd.xlane.f32.xlu0 %v166
    %v168 = vpop.xlane.xlu0 %167
    %v169 = vsel %vm75, %v72, 0.0
    %170 = vadd.xlane.f32.xlu0 %v169
    %v171 = vpop.xlane.xlu0 %170
    %v172 = vsel %vm75, %v73, 0.0
    %173 = vadd.xlane.f32.xlu0 %v172
    %v174 = vpop.xlane.xlu0 %173
    %v175 = vsel %vm75, %v74, 0.0
    %176 = vadd.xlane.f32.xlu0 %v175
    %v177 = vpop.xlane.xlu0 %176
    %v178 = vrcp.pop 32.0
    %v179 = vmul.f32 32.0, %v178
    %v180 = vsub.f32 1.0, %v179
    %v181 = vmul.f32 %v178, %v180
    %v182 = vadd.f32 %v178, %v181
    %vm183 = vweird.f32 %v178
    %v184 = vsel %vm183, %v178, %v182
    %v185 = vmul.f32 %v78, %v184
    %v186 = vmul.f32 %v81, %v184
    %v187 = vmul.f32 %v84, %v184
    %v188 = vmul.f32 %v87, %v184
    %v189 = vmul.f32 %v90, %v184
    %v190 = vmul.f32 %v93, %v184
    %v191 = vmul.f32 %v96, %v184
    %v192 = vmul.f32 %v99, %v184
    %v193 = vmul.f32 %v102, %v184
    %v194 = vmul.f32 %v105, %v184
    %v195 = vmul.f32 %v108, %v184
    %v196 = vmul.f32 %v111, %v184
    %v197 = vmul.f32 %v114, %v184
    %v198 = vmul.f32 %v117, %v184
    %v199 = vmul.f32 %v120, %v184
    %v200 = vmul.f32 %v123, %v184
    %v201 = vmul.f32 %v126, %v184
    %v202 = vmul.f32 %v129, %v184
    %v203 = vmul.f32 %v132, %v184
    %v204 = vmul.f32 %v135, %v184
    %v205 = vmul.f32 %v138, %v184
    %v206 = vmul.f32 %v141, %v184
    %v207 = vmul.f32 %v144, %v184
    %v208 = vmul.f32 %v147, %v184
    %v209 = vmul.f32 %v150, %v184
    %v210 = vmul.f32 %v153, %v184
    %v211 = vmul.f32 %v156, %v184
    %v212 = vmul.f32 %v159, %v184
    %v213 = vmul.f32 %v162, %v184
    %v214 = vmul.f32 %v165, %v184
    %v215 = vmul.f32 %v168, %v184
    %v216 = vmul.f32 %v171, %v184
    %v217 = vmul.f32 %v174, %v184
    %v218 = vmul.f32 %v177, %v184
    %v219 = vsub.f32 %v41, %v185
    %v220 = vsub.f32 %v42, %v186
    %v221 = vsub.f32 %v43, %v187
    %v222 = vsub.f32 %v44, %v188
    %v223 = vsub.f32 %v45, %v189
    %v224 = vsub.f32 %v46, %v190
    %v225 = vsub.f32 %v47, %v191
    %v226 = vsub.f32 %v48, %v192
    %v227 = vsub.f32 %v49, %v193
    %v228 = vsub.f32 %v50, %v194
    %v229 = vsub.f32 %v51, %v195
    %v230 = vsub.f32 %v52, %v196
    %v231 = vsub.f32 %v53, %v197
    %v232 = vsub.f32 %v54, %v198
    %v233 = vsub.f32 %v55, %v199
    %v234 = vsub.f32 %v56, %v200
    %v235 = vsub.f32 %v57, %v201
    %v236 = vsub.f32 %v58, %v202
    %v237 = vsub.f32 %v59, %v203
    %v238 = vsub.f32 %v60, %v204
    %v239 = vsub.f32 %v61, %v205
    %v240 = vsub.f32 %v62, %v206
    %v241 = vsub.f32 %v63, %v207
    %v242 = vsub.f32 %v64, %v208
    %v243 = vsub.f32 %v65, %v209
    %v244 = vsub.f32 %v66, %v210
    %v245 = vsub.f32 %v67, %v211
    %v246 = vsub.f32 %v68, %v212
    %v247 = vsub.f32 %v69, %v213
    %v248 = vsub.f32 %v70, %v214
    %v249 = vsub.f32 %v71, %v215
    %v250 = vsub.f32 %v72, %v216
    %v251 = vsub.f32 %v73, %v217
    %v252 = vsub.f32 %v74, %v218
    %v253 = vmul.f32 %v219, %v219
    %v254 = vmul.f32 %v220, %v220
    %v255 = vmul.f32 %v221, %v221
    %v256 = vmul.f32 %v222, %v222
    %v257 = vmul.f32 %v223, %v223
    %v258 = vmul.f32 %v224, %v224
    %v259 = vmul.f32 %v225, %v225
    %v260 = vmul.f32 %v226, %v226
    %v261 = vmul.f32 %v227, %v227
    %v262 = vmul.f32 %v228, %v228
    %v263 = vmul.f32 %v229, %v229
    %v264 = vmul.f32 %v230, %v230
    %v265 = vmul.f32 %v231, %v231
    %v266 = vmul.f32 %v232, %v232
    %v267 = vmul.f32 %v233, %v233
    %v268 = vmul.f32 %v234, %v234
    %v269 = vmul.f32 %v235, %v235
    %v270 = vmul.f32 %v236, %v236
    %v271 = vmul.f32 %v237, %v237
    %v272 = vmul.f32 %v238, %v238
    %v273 = vmul.f32 %v239, %v239
    %v274 = vmul.f32 %v240, %v240
    %v275 = vmul.f32 %v241, %v241
    %v276 = vmul.f32 %v242, %v242
    %v277 = vmul.f32 %v243, %v243
    %v278 = vmul.f32 %v244, %v244
    %v279 = vmul.f32 %v245, %v245
    %v280 = vmul.f32 %v246, %v246
    %v281 = vmul.f32 %v247, %v247
    %v282 = vmul.f32 %v248, %v248
    %v283 = vmul.f32 %v249, %v249
    %v284 = vmul.f32 %v250, %v250
    %v285 = vmul.f32 %v251, %v251
    %v286 = vmul.f32 %v252, %v252
    %v287 = vsel %vm75, %v253, 0.0
    %288 = vadd.xlane.f32.xlu0 %v287
    %v289 = vpop.xlane.xlu0 %288
    %v290 = vsel %vm75, %v254, 0.0
    %291 = vadd.xlane.f32.xlu0 %v290
    %v292 = vpop.xlane.xlu0 %291
    %v293 = vsel %vm75, %v255, 0.0
    %294 = vadd.xlane.f32.xlu0 %v293
    %v295 = vpop.xlane.xlu0 %294
    %v296 = vsel %vm75, %v256, 0.0
    %297 = vadd.xlane.f32.xlu0 %v296
    %v298 = vpop.xlane.xlu0 %297
    %v299 = vsel %vm75, %v257, 0.0
    %300 = vadd.xlane.f32.xlu0 %v299
    %v301 = vpop.xlane.xlu0 %300
    %v302 = vsel %vm75, %v258, 0.0
    %303 = vadd.xlane.f32.xlu0 %v302
    %v304 = vpop.xlane.xlu0 %303
    %v305 = vsel %vm75, %v259, 0.0
    %306 = vadd.xlane.f32.xlu0 %v305
    %v307 = vpop.xlane.xlu0 %306
    %v308 = vsel %vm75, %v260, 0.0
    %309 = vadd.xlane.f32.xlu0 %v308
    %v310 = vpop.xlane.xlu0 %309
    %v311 = vsel %vm75, %v261, 0.0
    %312 = vadd.xlane.f32.xlu0 %v311
    %v313 = vpop.xlane.xlu0 %312
    %v314 = vsel %vm75, %v262, 0.0
    %315 = vadd.xlane.f32.xlu0 %v314
    %v316 = vpop.xlane.xlu0 %315
    %v317 = vsel %vm75, %v263, 0.0
    %318 = vadd.xlane.f32.xlu0 %v317
    %v319 = vpop.xlane.xlu0 %318
    %v320 = vsel %vm75, %v264, 0.0
    %321 = vadd.xlane.f32.xlu0 %v320
    %v322 = vpop.xlane.xlu0 %321
    %v323 = vsel %vm75, %v265, 0.0
    %324 = vadd.xlane.f32.xlu0 %v323
    %v325 = vpop.xlane.xlu0 %324
    %v326 = vsel %vm75, %v266, 0.0
    %327 = vadd.xlane.f32.xlu0 %v326
    %v328 = vpop.xlane.xlu0 %327
    %v329 = vsel %vm75, %v267, 0.0
    %330 = vadd.xlane.f32.xlu0 %v329
    %v331 = vpop.xlane.xlu0 %330
    %v332 = vsel %vm75, %v268, 0.0
    %333 = vadd.xlane.f32.xlu0 %v332
    %v334 = vpop.xlane.xlu0 %333
    %v335 = vsel %vm75, %v269, 0.0
    %336 = vadd.xlane.f32.xlu0 %v335
    %v337 = vpop.xlane.xlu0 %336
    %v338 = vsel %vm75, %v270, 0.0
    %339 = vadd.xlane.f32.xlu0 %v338
    %v340 = vpop.xlane.xlu0 %339
    %v341 = vsel %vm75, %v271, 0.0
    %342 = vadd.xlane.f32.xlu0 %v341
    %v343 = vpop.xlane.xlu0 %342
    %v344 = vsel %vm75, %v272, 0.0
    %345 = vadd.xlane.f32.xlu0 %v344
    %v346 = vpop.xlane.xlu0 %345
    %v347 = vsel %vm75, %v273, 0.0
    %348 = vadd.xlane.f32.xlu0 %v347
    %v349 = vpop.xlane.xlu0 %348
    %v350 = vsel %vm75, %v274, 0.0
    %351 = vadd.xlane.f32.xlu0 %v350
    %v352 = vpop.xlane.xlu0 %351
    %v353 = vsel %vm75, %v275, 0.0
    %354 = vadd.xlane.f32.xlu0 %v353
    %v355 = vpop.xlane.xlu0 %354
    %v356 = vsel %vm75, %v276, 0.0
    %357 = vadd.xlane.f32.xlu0 %v356
    %v358 = vpop.xlane.xlu0 %357
    %v359 = vsel %vm75, %v277, 0.0
    %360 = vadd.xlane.f32.xlu0 %v359
    %v361 = vpop.xlane.xlu0 %360
    %v362 = vsel %vm75, %v278, 0.0
    %363 = vadd.xlane.f32.xlu0 %v362
    %v364 = vpop.xlane.xlu0 %363
    %v365 = vsel %vm75, %v279, 0.0
    %366 = vadd.xlane.f32.xlu0 %v365
    %v367 = vpop.xlane.xlu0 %366
    %v368 = vsel %vm75, %v280, 0.0
    %369 = vadd.xlane.f32.xlu0 %v368
    %v370 = vpop.xlane.xlu0 %369
    %v371 = vsel %vm75, %v281, 0.0
    %372 = vadd.xlane.f32.xlu0 %v371
    %v373 = vpop.xlane.xlu0 %372
    %v374 = vsel %vm75, %v282, 0.0
    %375 = vadd.xlane.f32.xlu0 %v374
    %v376 = vpop.xlane.xlu0 %375
    %v377 = vsel %vm75, %v283, 0.0
    %378 = vadd.xlane.f32.xlu0 %v377
    %v379 = vpop.xlane.xlu0 %378
    %v380 = vsel %vm75, %v284, 0.0
    %381 = vadd.xlane.f32.xlu0 %v380
    %v382 = vpop.xlane.xlu0 %381
    %v383 = vsel %vm75, %v285, 0.0
    %384 = vadd.xlane.f32.xlu0 %v383
    %v385 = vpop.xlane.xlu0 %384
    %v386 = vsel %vm75, %v286, 0.0
    %387 = vadd.xlane.f32.xlu0 %v386
    %v388 = vpop.xlane.xlu0 %387
    %v389 = vmul.f32 %v289, %v184
    %v390 = vmul.f32 %v292, %v184
    %v391 = vmul.f32 %v295, %v184
    %v392 = vmul.f32 %v298, %v184
    %v393 = vmul.f32 %v301, %v184
    %v394 = vmul.f32 %v304, %v184
    %v395 = vmul.f32 %v307, %v184
    %v396 = vmul.f32 %v310, %v184
    %v397 = vmul.f32 %v313, %v184
    %v398 = vmul.f32 %v316, %v184
    %v399 = vmul.f32 %v319, %v184
    %v400 = vmul.f32 %v322, %v184
    %v401 = vmul.f32 %v325, %v184
    %v402 = vmul.f32 %v328, %v184
    %v403 = vmul.f32 %v331, %v184
    %v404 = vmul.f32 %v334, %v184
    %v405 = vmul.f32 %v337, %v184
    %v406 = vmul.f32 %v340, %v184
    %v407 = vmul.f32 %v343, %v184
    %v408 = vmul.f32 %v346, %v184
    %v409 = vmul.f32 %v349, %v184
    %v410 = vmul.f32 %v352, %v184
    %v411 = vmul.f32 %v355, %v184
    %v412 = vmul.f32 %v358, %v184
    %v413 = vmul.f32 %v361, %v184
    %v414 = vmul.f32 %v364, %v184
    %v415 = vmul.f32 %v367, %v184
    %v416 = vmul.f32 %v370, %v184
    %v417 = vmul.f32 %v373, %v184
    %v418 = vmul.f32 %v376, %v184
    %v419 = vmul.f32 %v379, %v184
    %v420 = vmul.f32 %v382, %v184
    %v421 = vmul.f32 %v385, %v184
    %v422 = vmul.f32 %v388, %v184
    %v423 = vadd.f32 %v389, 1e-05
    %v424 = vadd.f32 %v390, 1e-05
    %v425 = vadd.f32 %v391, 1e-05
    %v426 = vadd.f32 %v392, 1e-05
    %v427 = vadd.f32 %v393, 1e-05
    %v428 = vadd.f32 %v394, 1e-05
    %v429 = vadd.f32 %v395, 1e-05
    %v430 = vadd.f32 %v396, 1e-05
    %v431 = vadd.f32 %v397, 1e-05
    %v432 = vadd.f32 %v398, 1e-05
    %v433 = vadd.f32 %v399, 1e-05
    %v434 = vadd.f32 %v400, 1e-05
    %v435 = vadd.f32 %v401, 1e-05
    %v436 = vadd.f32 %v402, 1e-05
    %v437 = vadd.f32 %v403, 1e-05
    %v438 = vadd.f32 %v404, 1e-05
    %v439 = vadd.f32 %v405, 1e-05
    %v440 = vadd.f32 %v406, 1e-05
    %v441 = vadd.f32 %v407, 1e-05
    %v442 = vadd.f32 %v408, 1e-05
    %v443 = vadd.f32 %v409, 1e-05
    %v444 = vadd.f32 %v410, 1e-05
    %v445 = vadd.f32 %v411, 1e-05
    %v446 = vadd.f32 %v412, 1e-05
    %v447 = vadd.f32 %v413, 1e-05
    %v448 = vadd.f32 %v414, 1e-05
    %v449 = vadd.f32 %v415, 1e-05
    %v450 = vadd.f32 %v416, 1e-05
    %v451 = vadd.f32 %v417, 1e-05
    %v452 = vadd.f32 %v418, 1e-05
    %v453 = vadd.f32 %v419, 1e-05
    %v454 = vadd.f32 %v420, 1e-05
    %v455 = vadd.f32 %v421, 1e-05
    %v456 = vadd.f32 %v422, 1e-05
    %v457 = vrsqrt.pop %v423
    %v458 = vmul.f32 %v457, %v423
    %v459 = vmul.f32 %v458, %v457
    %v460 = vmul.f32 0.5, %v459
    %v461 = vsub.f32 1.5, %v460
    %v462 = vmul.f32 %v457, %v461
    %vm463 = vweird.f32 %v423
    %vm464 = vweird.f32 %v457
    %vm465 = vmor %vm463, %vm464
    %v466 = vsel %vm465, %v457, %v462
    %v467 = vrsqrt.pop %v424
    %v468 = vmul.f32 %v467, %v424
    %v469 = vmul.f32 %v468, %v467
    %v470 = vmul.f32 0.5, %v469
    %v471 = vsub.f32 1.5, %v470
    %v472 = vmul.f32 %v467, %v471
    %vm473 = vweird.f32 %v424
    %vm474 = vweird.f32 %v467
    %vm475 = vmor %vm473, %vm474
    %v476 = vsel %vm475, %v467, %v472
    %v477 = vrsqrt.pop %v425
    %v478 = vmul.f32 %v477, %v425
    %v479 = vmul.f32 %v478, %v477
    %v480 = vmul.f32 0.5, %v479
    %v481 = vsub.f32 1.5, %v480
    %v482 = vmul.f32 %v477, %v481
    %vm483 = vweird.f32 %v425
    %vm484 = vweird.f32 %v477
    %vm485 = vmor %vm483, %vm484
    %v486 = vsel %vm485, %v477, %v482
    %v487 = vrsqrt.pop %v426
    %v488 = vmul.f32 %v487, %v426
    %v489 = vmul.f32 %v488, %v487
    %v490 = vmul.f32 0.5, %v489
    %v491 = vsub.f32 1.5, %v490
    %v492 = vmul.f32 %v487, %v491
    %vm493 = vweird.f32 %v426
    %vm494 = vweird.f32 %v487
    %vm495 = vmor %vm493, %vm494
    %v496 = vsel %vm495, %v487, %v492
    %v497 = vrsqrt.pop %v427
    %v498 = vmul.f32 %v497, %v427
    %v499 = vmul.f32 %v498, %v497
    %v500 = vmul.f32 0.5, %v499
    %v501 = vsub.f32 1.5, %v500
    %v502 = vmul.f32 %v497, %v501
    %vm503 = vweird.f32 %v427
    %vm504 = vweird.f32 %v497
    %vm505 = vmor %vm503, %vm504
    %v506 = vsel %vm505, %v497, %v502
    %v507 = vrsqrt.pop %v428
    %v508 = vmul.f32 %v507, %v428
    %v509 = vmul.f32 %v508, %v507
    %v510 = vmul.f32 0.5, %v509
    %v511 = vsub.f32 1.5, %v510
    %v512 = vmul.f32 %v507, %v511
    %vm513 = vweird.f32 %v428
    %vm514 = vweird.f32 %v507
    %vm515 = vmor %vm513, %vm514
    %v516 = vsel %vm515, %v507, %v512
    %v517 = vrsqrt.pop %v429
    %v518 = vmul.f32 %v517, %v429
    %v519 = vmul.f32 %v518, %v517
    %v520 = vmul.f32 0.5, %v519
    %v521 = vsub.f32 1.5, %v520
    %v522 = vmul.f32 %v517, %v521
    %vm523 = vweird.f32 %v429
    %vm524 = vweird.f32 %v517
    %vm525 = vmor %vm523, %vm524
    %v526 = vsel %vm525, %v517, %v522
    %v527 = vrsqrt.pop %v430
    %v528 = vmul.f32 %v527, %v430
    %v529 = vmul.f32 %v528, %v527
    %v530 = vmul.f32 0.5, %v529
    %v531 = vsub.f32 1.5, %v530
    %v532 = vmul.f32 %v527, %v531
    %vm533 = vweird.f32 %v430
    %vm534 = vweird.f32 %v527
    %vm535 = vmor %vm533, %vm534
    %v536 = vsel %vm535, %v527, %v532
    %v537 = vrsqrt.pop %v431
    %v538 = vmul.f32 %v537, %v431
    %v539 = vmul.f32 %v538, %v537
    %v540 = vmul.f32 0.5, %v539
    %v541 = vsub.f32 1.5, %v540
    %v542 = vmul.f32 %v537, %v541
    %vm543 = vweird.f32 %v431
    %vm544 = vweird.f32 %v537
    %vm545 = vmor %vm543, %vm544
    %v546 = vsel %vm545, %v537, %v542
    %v547 = vrsqrt.pop %v432
    %v548 = vmul.f32 %v547, %v432
    %v549 = vmul.f32 %v548, %v547
    %v550 = vmul.f32 0.5, %v549
    %v551 = vsub.f32 1.5, %v550
    %v552 = vmul.f32 %v547, %v551
    %vm553 = vweird.f32 %v432
    %vm554 = vweird.f32 %v547
    %vm555 = vmor %vm553, %vm554
    %v556 = vsel %vm555, %v547, %v552
    %v557 = vrsqrt.pop %v433
    %v558 = vmul.f32 %v557, %v433
    %v559 = vmul.f32 %v558, %v557
    %v560 = vmul.f32 0.5, %v559
    %v561 = vsub.f32 1.5, %v560
    %v562 = vmul.f32 %v557, %v561
    %vm563 = vweird.f32 %v433
    %vm564 = vweird.f32 %v557
    %vm565 = vmor %vm563, %vm564
    %v566 = vsel %vm565, %v557, %v562
    %v567 = vrsqrt.pop %v434
    %v568 = vmul.f32 %v567, %v434
    %v569 = vmul.f32 %v568, %v567
    %v570 = vmul.f32 0.5, %v569
    %v571 = vsub.f32 1.5, %v570
    %v572 = vmul.f32 %v567, %v571
    %vm573 = vweird.f32 %v434
    %vm574 = vweird.f32 %v567
    %vm575 = vmor %vm573, %vm574
    %v576 = vsel %vm575, %v567, %v572
    %v577 = vrsqrt.pop %v435
    %v578 = vmul.f32 %v577, %v435
    %v579 = vmul.f32 %v578, %v577
    %v580 = vmul.f32 0.5, %v579
    %v581 = vsub.f32 1.5, %v580
    %v582 = vmul.f32 %v577, %v581
    %vm583 = vweird.f32 %v435
    %vm584 = vweird.f32 %v577
    %vm585 = vmor %vm583, %vm584
    %v586 = vsel %vm585, %v577, %v582
    %v587 = vrsqrt.pop %v436
    %v588 = vmul.f32 %v587, %v436
    %v589 = vmul.f32 %v588, %v587
    %v590 = vmul.f32 0.5, %v589
    %v591 = vsub.f32 1.5, %v590
    %v592 = vmul.f32 %v587, %v591
    %vm593 = vweird.f32 %v436
    %vm594 = vweird.f32 %v587
    %vm595 = vmor %vm593, %vm594
    %v596 = vsel %vm595, %v587, %v592
    %v597 = vrsqrt.pop %v437
    %v598 = vmul.f32 %v597, %v437
    %v599 = vmul.f32 %v598, %v597
    %v600 = vmul.f32 0.5, %v599
    %v601 = vsub.f32 1.5, %v600
    %v602 = vmul.f32 %v597, %v601
    %vm603 = vweird.f32 %v437
    %vm604 = vweird.f32 %v597
    %vm605 = vmor %vm603, %vm604
    %v606 = vsel %vm605, %v597, %v602
    %v607 = vrsqrt.pop %v438
    %v608 = vmul.f32 %v607, %v438
    %v609 = vmul.f32 %v608, %v607
    %v610 = vmul.f32 0.5, %v609
    %v611 = vsub.f32 1.5, %v610
    %v612 = vmul.f32 %v607, %v611
    %vm613 = vweird.f32 %v438
    %vm614 = vweird.f32 %v607
    %vm615 = vmor %vm613, %vm614
    %v616 = vsel %vm615, %v607, %v612
    %v617 = vrsqrt.pop %v439
    %v618 = vmul.f32 %v617, %v439
    %v619 = vmul.f32 %v618, %v617
    %v620 = vmul.f32 0.5, %v619
    %v621 = vsub.f32 1.5, %v620
    %v622 = vmul.f32 %v617, %v621
    %vm623 = vweird.f32 %v439
    %vm624 = vweird.f32 %v617
    %vm625 = vmor %vm623, %vm624
    %v626 = vsel %vm625, %v617, %v622
    %v627 = vrsqrt.pop %v440
    %v628 = vmul.f32 %v627, %v440
    %v629 = vmul.f32 %v628, %v627
    %v630 = vmul.f32 0.5, %v629
    %v631 = vsub.f32 1.5, %v630
    %v632 = vmul.f32 %v627, %v631
    %vm633 = vweird.f32 %v440
    %vm634 = vweird.f32 %v627
    %vm635 = vmor %vm633, %vm634
    %v636 = vsel %vm635, %v627, %v632
    %v637 = vrsqrt.pop %v441
    %v638 = vmul.f32 %v637, %v441
    %v639 = vmul.f32 %v638, %v637
    %v640 = vmul.f32 0.5, %v639
    %v641 = vsub.f32 1.5, %v640
    %v642 = vmul.f32 %v637, %v641
    %vm643 = vweird.f32 %v441
    %vm644 = vweird.f32 %v637
    %vm645 = vmor %vm643, %vm644
    %v646 = vsel %vm645, %v637, %v642
    %v647 = vrsqrt.pop %v442
    %v648 = vmul.f32 %v647, %v442
    %v649 = vmul.f32 %v648, %v647
    %v650 = vmul.f32 0.5, %v649
    %v651 = vsub.f32 1.5, %v650
    %v652 = vmul.f32 %v647, %v651
    %vm653 = vweird.f32 %v442
    %vm654 = vweird.f32 %v647
    %vm655 = vmor %vm653, %vm654
    %v656 = vsel %vm655, %v647, %v652
    %v657 = vrsqrt.pop %v443
    %v658 = vmul.f32 %v657, %v443
    %v659 = vmul.f32 %v658, %v657
    %v660 = vmul.f32 0.5, %v659
    %v661 = vsub.f32 1.5, %v660
    %v662 = vmul.f32 %v657, %v661
    %vm663 = vweird.f32 %v443
    %vm664 = vweird.f32 %v657
    %vm665 = vmor %vm663, %vm664
    %v666 = vsel %vm665, %v657, %v662
    %v667 = vrsqrt.pop %v444
    %v668 = vmul.f32 %v667, %v444
    %v669 = vmul.f32 %v668, %v667
    %v670 = vmul.f32 0.5, %v669
    %v671 = vsub.f32 1.5, %v670
    %v672 = vmul.f32 %v667, %v671
    %vm673 = vweird.f32 %v444
    %vm674 = vweird.f32 %v667
    %vm675 = vmor %vm673, %vm674
    %v676 = vsel %vm675, %v667, %v672
    %v677 = vrsqrt.pop %v445
    %v678 = vmul.f32 %v677, %v445
    %v679 = vmul.f32 %v678, %v677
    %v680 = vmul.f32 0.5, %v679
    %v681 = vsub.f32 1.5, %v680
    %v682 = vmul.f32 %v677, %v681
    %vm683 = vweird.f32 %v445
    %vm684 = vweird.f32 %v677
    %vm685 = vmor %vm683, %vm684
    %v686 = vsel %vm685, %v677, %v682
    %v687 = vrsqrt.pop %v446
    %v688 = vmul.f32 %v687, %v446
    %v689 = vmul.f32 %v688, %v687
    %v690 = vmul.f32 0.5, %v689
    %v691 = vsub.f32 1.5, %v690
    %v692 = vmul.f32 %v687, %v691
    %vm693 = vweird.f32 %v446
    %vm694 = vweird.f32 %v687
    %vm695 = vmor %vm693, %vm694
    %v696 = vsel %vm695, %v687, %v692
    %v697 = vrsqrt.pop %v447
    %v698 = vmul.f32 %v697, %v447
    %v699 = vmul.f32 %v698, %v697
    %v700 = vmul.f32 0.5, %v699
    %v701 = vsub.f32 1.5, %v700
    %v702 = vmul.f32 %v697, %v701
    %vm703 = vweird.f32 %v447
    %vm704 = vweird.f32 %v697
    %vm705 = vmor %vm703, %vm704
    %v706 = vsel %vm705, %v697, %v702
    %v707 = vrsqrt.pop %v448
    %v708 = vmul.f32 %v707, %v448
    %v709 = vmul.f32 %v708, %v707
    %v710 = vmul.f32 0.5, %v709
    %v711 = vsub.f32 1.5, %v710
    %v712 = vmul.f32 %v707, %v711
    %vm713 = vweird.f32 %v448
    %vm714 = vweird.f32 %v707
    %vm715 = vmor %vm713, %vm714
    %v716 = vsel %vm715, %v707, %v712
    %v717 = vrsqrt.pop %v449
    %v718 = vmul.f32 %v717, %v449
    %v719 = vmul.f32 %v718, %v717
    %v720 = vmul.f32 0.5, %v719
    %v721 = vsub.f32 1.5, %v720
    %v722 = vmul.f32 %v717, %v721
    %vm723 = vweird.f32 %v449
    %vm724 = vweird.f32 %v717
    %vm725 = vmor %vm723, %vm724
    %v726 = vsel %vm725, %v717, %v722
    %v727 = vrsqrt.pop %v450
    %v728 = vmul.f32 %v727, %v450
    %v729 = vmul.f32 %v728, %v727
    %v730 = vmul.f32 0.5, %v729
    %v731 = vsub.f32 1.5, %v730
    %v732 = vmul.f32 %v727, %v731
    %vm733 = vweird.f32 %v450
    %vm734 = vweird.f32 %v727
    %vm735 = vmor %vm733, %vm734
    %v736 = vsel %vm735, %v727, %v732
    %v737 = vrsqrt.pop %v451
    %v738 = vmul.f32 %v737, %v451
    %v739 = vmul.f32 %v738, %v737
    %v740 = vmul.f32 0.5, %v739
    %v741 = vsub.f32 1.5, %v740
    %v742 = vmul.f32 %v737, %v741
    %vm743 = vweird.f32 %v451
    %vm744 = vweird.f32 %v737
    %vm745 = vmor %vm743, %vm744
    %v746 = vsel %vm745, %v737, %v742
    %v747 = vrsqrt.pop %v452
    %v748 = vmul.f32 %v747, %v452
    %v749 = vmul.f32 %v748, %v747
    %v750 = vmul.f32 0.5, %v749
    %v751 = vsub.f32 1.5, %v750
    %v752 = vmul.f32 %v747, %v751
    %vm753 = vweird.f32 %v452
    %vm754 = vweird.f32 %v747
    %vm755 = vmor %vm753, %vm754
    %v756 = vsel %vm755, %v747, %v752
    %v757 = vrsqrt.pop %v453
    %v758 = vmul.f32 %v757, %v453
    %v759 = vmul.f32 %v758, %v757
    %v760 = vmul.f32 0.5, %v759
    %v761 = vsub.f32 1.5, %v760
    %v762 = vmul.f32 %v757, %v761
    %vm763 = vweird.f32 %v453
    %vm764 = vweird.f32 %v757
    %vm765 = vmor %vm763, %vm764
    %v766 = vsel %vm765, %v757, %v762
    %v767 = vrsqrt.pop %v454
    %v768 = vmul.f32 %v767, %v454
    %v769 = vmul.f32 %v768, %v767
    %v770 = vmul.f32 0.5, %v769
    %v771 = vsub.f32 1.5, %v770
    %v772 = vmul.f32 %v767, %v771
    %vm773 = vweird.f32 %v454
    %vm774 = vweird.f32 %v767
    %vm775 = vmor %vm773, %vm774
    %v776 = vsel %vm775, %v767, %v772
    %v777 = vrsqrt.pop %v455
    %v778 = vmul.f32 %v777, %v455
    %v779 = vmul.f32 %v778, %v777
    %v780 = vmul.f32 0.5, %v779
    %v781 = vsub.f32 1.5, %v780
    %v782 = vmul.f32 %v777, %v781
    %vm783 = vweird.f32 %v455
    %vm784 = vweird.f32 %v777
    %vm785 = vmor %vm783, %vm784
    %v786 = vsel %vm785, %v777, %v782
    %v787 = vrsqrt.pop %v456
    %v788 = vmul.f32 %v787, %v456
    %v789 = vmul.f32 %v788, %v787
    %v790 = vmul.f32 0.5, %v789
    %v791 = vsub.f32 1.5, %v790
    %v792 = vmul.f32 %v787, %v791
    %vm793 = vweird.f32 %v456
    %vm794 = vweird.f32 %v787
    %vm795 = vmor %vm793, %vm794
    %v796 = vsel %vm795, %v787, %v792
    %v797 = vmul.f32 %v219, %v466
    %v798 = vmul.f32 %v220, %v476
    %v799 = vmul.f32 %v221, %v486
    %v800 = vmul.f32 %v222, %v496
    %v801 = vmul.f32 %v223, %v506
    %v802 = vmul.f32 %v224, %v516
    %v803 = vmul.f32 %v225, %v526
    %v804 = vmul.f32 %v226, %v536
    %v805 = vmul.f32 %v227, %v546
    %v806 = vmul.f32 %v228, %v556
    %v807 = vmul.f32 %v229, %v566
    %v808 = vmul.f32 %v230, %v576
    %v809 = vmul.f32 %v231, %v586
    %v810 = vmul.f32 %v232, %v596
    %v811 = vmul.f32 %v233, %v606
    %v812 = vmul.f32 %v234, %v616
    %v813 = vmul.f32 %v235, %v626
    %v814 = vmul.f32 %v236, %v636
    %v815 = vmul.f32 %v237, %v646
    %v816 = vmul.f32 %v238, %v656
    %v817 = vmul.f32 %v239, %v666
    %v818 = vmul.f32 %v240, %v676
    %v819 = vmul.f32 %v241, %v686
    %v820 = vmul.f32 %v242, %v696
    %v821 = vmul.f32 %v243, %v706
    %v822 = vmul.f32 %v244, %v716
    %v823 = vmul.f32 %v245, %v726
    %v824 = vmul.f32 %v246, %v736
    %v825 = vmul.f32 %v247, %v746
    %v826 = vmul.f32 %v248, %v756
    %v827 = vmul.f32 %v249, %v766
    %v828 = vmul.f32 %v250, %v776
    %v829 = vmul.f32 %v251, %v786
    %v830 = vmul.f32 %v252, %v796
    %865 = vrot.lane.b32.xlu0 %v41, 96
    %v866 = vpop.permute.xlu0 %865
    %867 = vrot.lane.b32.xlu0 %v42, 96
    %v868 = vpop.permute.xlu0 %867
    %869 = vrot.lane.b32.xlu0 %v43, 96
    %v870 = vpop.permute.xlu0 %869
    %871 = vrot.lane.b32.xlu0 %v44, 96
    %v872 = vpop.permute.xlu0 %871
    %873 = vrot.lane.b32.xlu0 %v45, 96
    %v874 = vpop.permute.xlu0 %873
    %875 = vrot.lane.b32.xlu0 %v46, 96
    %v876 = vpop.permute.xlu0 %875
    %877 = vrot.lane.b32.xlu0 %v47, 96
    %v878 = vpop.permute.xlu0 %877
    %879 = vrot.lane.b32.xlu0 %v48, 96
    %v880 = vpop.permute.xlu0 %879
    %881 = vrot.lane.b32.xlu0 %v49, 96
    %v882 = vpop.permute.xlu0 %881
    %883 = vrot.lane.b32.xlu0 %v50, 96
    %v884 = vpop.permute.xlu0 %883
    %885 = vrot.lane.b32.xlu0 %v51, 96
    %v886 = vpop.permute.xlu0 %885
    %887 = vrot.lane.b32.xlu0 %v52, 96
    %v888 = vpop.permute.xlu0 %887
    %889 = vrot.lane.b32.xlu0 %v53, 96
    %v890 = vpop.permute.xlu0 %889
    %891 = vrot.lane.b32.xlu0 %v54, 96
    %v892 = vpop.permute.xlu0 %891
    %893 = vrot.lane.b32.xlu0 %v55, 96
    %v894 = vpop.permute.xlu0 %893
    %895 = vrot.lane.b32.xlu0 %v56, 96
    %v896 = vpop.permute.xlu0 %895
    %897 = vrot.lane.b32.xlu0 %v57, 96
    %v898 = vpop.permute.xlu0 %897
    %899 = vrot.lane.b32.xlu0 %v58, 96
    %v900 = vpop.permute.xlu0 %899
    %901 = vrot.lane.b32.xlu0 %v59, 96
    %v902 = vpop.permute.xlu0 %901
    %903 = vrot.lane.b32.xlu0 %v60, 96
    %v904 = vpop.permute.xlu0 %903
    %905 = vrot.lane.b32.xlu0 %v61, 96
    %v906 = vpop.permute.xlu0 %905
    %907 = vrot.lane.b32.xlu0 %v62, 96
    %v908 = vpop.permute.xlu0 %907
    %909 = vrot.lane.b32.xlu0 %v63, 96
    %v910 = vpop.permute.xlu0 %909
    %911 = vrot.lane.b32.xlu0 %v64, 96
    %v912 = vpop.permute.xlu0 %911
    %913 = vrot.lane.b32.xlu0 %v65, 96
    %v914 = vpop.permute.xlu0 %913
    %915 = vrot.lane.b32.xlu0 %v66, 96
    %v916 = vpop.permute.xlu0 %915
    %917 = vrot.lane.b32.xlu0 %v67, 96
    %v918 = vpop.permute.xlu0 %917
    %919 = vrot.lane.b32.xlu0 %v68, 96
    %v920 = vpop.permute.xlu0 %919
    %921 = vrot.lane.b32.xlu0 %v69, 96
    %v922 = vpop.permute.xlu0 %921
    %923 = vrot.lane.b32.xlu0 %v70, 96
    %v924 = vpop.permute.xlu0 %923
    %925 = vrot.lane.b32.xlu0 %v71, 96
    %v926 = vpop.permute.xlu0 %925
    %927 = vrot.lane.b32.xlu0 %v72, 96
    %v928 = vpop.permute.xlu0 %927
    %929 = vrot.lane.b32.xlu0 %v73, 96
    %v930 = vpop.permute.xlu0 %929
    %931 = vrot.lane.b32.xlu0 %v74, 96
    %v932 = vpop.permute.xlu0 %931
    %v967 = vsel %vm75, %v866, 0.0
    %968 = vadd.xlane.f32.xlu0 %v967
    %v969 = vpop.xlane.xlu0 %968
    %v970 = vsel %vm75, %v868, 0.0
    %971 = vadd.xlane.f32.xlu0 %v970
    %v972 = vpop.xlane.xlu0 %971
    %v973 = vsel %vm75, %v870, 0.0
    %974 = vadd.xlane.f32.xlu0 %v973
    %v975 = vpop.xlane.xlu0 %974
    %v976 = vsel %vm75, %v872, 0.0
    %977 = vadd.xlane.f32.xlu0 %v976
    %v978 = vpop.xlane.xlu0 %977
    %v979 = vsel %vm75, %v874, 0.0
    %980 = vadd.xlane.f32.xlu0 %v979
    %v981 = vpop.xlane.xlu0 %980
    %v982 = vsel %vm75, %v876, 0.0
    %983 = vadd.xlane.f32.xlu0 %v982
    %v984 = vpop.xlane.xlu0 %983
    %v985 = vsel %vm75, %v878, 0.0
    %986 = vadd.xlane.f32.xlu0 %v985
    %v987 = vpop.xlane.xlu0 %986
    %v988 = vsel %vm75, %v880, 0.0
    %989 = vadd.xlane.f32.xlu0 %v988
    %v990 = vpop.xlane.xlu0 %989
    %v991 = vsel %vm75, %v882, 0.0
    %992 = vadd.xlane.f32.xlu0 %v991
    %v993 = vpop.xlane.xlu0 %992
    %v994 = vsel %vm75, %v884, 0.0
    %995 = vadd.xlane.f32.xlu0 %v994
    %v996 = vpop.xlane.xlu0 %995
    %v997 = vsel %vm75, %v886, 0.0
    %998 = vadd.xlane.f32.xlu0 %v997
    %v999 = vpop.xlane.xlu0 %998
    %v1000 = vsel %vm75, %v888, 0.0
    %1001 = vadd.xlane.f32.xlu0 %v1000
    %v1002 = vpop.xlane.xlu0 %1001
    %v1003 = vsel %vm75, %v890, 0.0
    %1004 = vadd.xlane.f32.xlu0 %v1003
    %v1005 = vpop.xlane.xlu0 %1004
    %v1006 = vsel %vm75, %v892, 0.0
    %1007 = vadd.xlane.f32.xlu0 %v1006
    %v1008 = vpop.xlane.xlu0 %1007
    %v1009 = vsel %vm75, %v894, 0.0
    %1010 = vadd.xlane.f32.xlu0 %v1009
    %v1011 = vpop.xlane.xlu0 %1010
    %v1012 = vsel %vm75, %v896, 0.0
    %1013 = vadd.xlane.f32.xlu0 %v1012
    %v1014 = vpop.xlane.xlu0 %1013
    %v1015 = vsel %vm75, %v898, 0.0
    %1016 = vadd.xlane.f32.xlu0 %v1015
    %v1017 = vpop.xlane.xlu0 %1016
    %v1018 = vsel %vm75, %v900, 0.0
    %1019 = vadd.xlane.f32.xlu0 %v1018
    %v1020 = vpop.xlane.xlu0 %1019
    %v1021 = vsel %vm75, %v902, 0.0
    %1022 = vadd.xlane.f32.xlu0 %v1021
    %v1023 = vpop.xlane.xlu0 %1022
    %v1024 = vsel %vm75, %v904, 0.0
    %1025 = vadd.xlane.f32.xlu0 %v1024
    %v1026 = vpop.xlane.xlu0 %1025
    %v1027 = vsel %vm75, %v906, 0.0
    %1028 = vadd.xlane.f32.xlu0 %v1027
    %v1029 = vpop.xlane.xlu0 %1028
    %v1030 = vsel %vm75, %v908, 0.0
    %1031 = vadd.xlane.f32.xlu0 %v1030
    %v1032 = vpop.xlane.xlu0 %1031
    %v1033 = vsel %vm75, %v910, 0.0
    %1034 = vadd.xlane.f32.xlu0 %v1033
    %v1035 = vpop.xlane.xlu0 %1034
    %v1036 = vsel %vm75, %v912, 0.0
    %1037 = vadd.xlane.f32.xlu0 %v1036
    %v1038 = vpop.xlane.xlu0 %1037
    %v1039 = vsel %vm75, %v914, 0.0
    %1040 = vadd.xlane.f32.xlu0 %v1039
    %v1041 = vpop.xlane.xlu0 %1040
    %v1042 = vsel %vm75, %v916, 0.0
    %1043 = vadd.xlane.f32.xlu0 %v1042
    %v1044 = vpop.xlane.xlu0 %1043
    %v1045 = vsel %vm75, %v918, 0.0
    %1046 = vadd.xlane.f32.xlu0 %v1045
    %v1047 = vpop.xlane.xlu0 %1046
    %v1048 = vsel %vm75, %v920, 0.0
    %1049 = vadd.xlane.f32.xlu0 %v1048
    %v1050 = vpop.xlane.xlu0 %1049
    %v1051 = vsel %vm75, %v922, 0.0
    %1052 = vadd.xlane.f32.xlu0 %v1051
    %v1053 = vpop.xlane.xlu0 %1052
    %v1054 = vsel %vm75, %v924, 0.0
    %1055 = vadd.xlane.f32.xlu0 %v1054
    %v1056 = vpop.xlane.xlu0 %1055
    %v1057 = vsel %vm75, %v926, 0.0
    %1058 = vadd.xlane.f32.xlu0 %v1057
    %v1059 = vpop.xlane.xlu0 %1058
    %v1060 = vsel %vm75, %v928, 0.0
    %1061 = vadd.xlane.f32.xlu0 %v1060
    %v1062 = vpop.xlane.xlu0 %1061
    %v1063 = vsel %vm75, %v930, 0.0
    %1064 = vadd.xlane.f32.xlu0 %v1063
    %v1065 = vpop.xlane.xlu0 %1064
    %v1066 = vsel %vm75, %v932, 0.0
    %1067 = vadd.xlane.f32.xlu0 %v1066
    %v1068 = vpop.xlane.xlu0 %1067
    %v1069 = vmul.f32 %v969, %v184
    %v1070 = vmul.f32 %v972, %v184
    %v1071 = vmul.f32 %v975, %v184
    %v1072 = vmul.f32 %v978, %v184
    %v1073 = vmul.f32 %v981, %v184
    %v1074 = vmul.f32 %v984, %v184
    %v1075 = vmul.f32 %v987, %v184
    %v1076 = vmul.f32 %v990, %v184
    %v1077 = vmul.f32 %v993, %v184
    %v1078 = vmul.f32 %v996, %v184
    %v1079 = vmul.f32 %v999, %v184
    %v1080 = vmul.f32 %v1002, %v184
    %v1081 = vmul.f32 %v1005, %v184
    %v1082 = vmul.f32 %v1008, %v184
    %v1083 = vmul.f32 %v1011, %v184
    %v1084 = vmul.f32 %v1014, %v184
    %v1085 = vmul.f32 %v1017, %v184
    %v1086 = vmul.f32 %v1020, %v184
    %v1087 = vmul.f32 %v1023, %v184
    %v1088 = vmul.f32 %v1026, %v184
    %v1089 = vmul.f32 %v1029, %v184
    %v1090 = vmul.f32 %v1032, %v184
    %v1091 = vmul.f32 %v1035, %v184
    %v1092 = vmul.f32 %v1038, %v184
    %v1093 = vmul.f32 %v1041, %v184
    %v1094 = vmul.f32 %v1044, %v184
    %v1095 = vmul.f32 %v1047, %v184
    %v1096 = vmul.f32 %v1050, %v184
    %v1097 = vmul.f32 %v1053, %v184
    %v1098 = vmul.f32 %v1056, %v184
    %v1099 = vmul.f32 %v1059, %v184
    %v1100 = vmul.f32 %v1062, %v184
    %v1101 = vmul.f32 %v1065, %v184
    %v1102 = vmul.f32 %v1068, %v184
    %v1103 = vsub.f32 %v41, %v1069
    %v1104 = vsub.f32 %v42, %v1070
    %v1105 = vsub.f32 %v43, %v1071
    %v1106 = vsub.f32 %v44, %v1072
    %v1107 = vsub.f32 %v45, %v1073
    %v1108 = vsub.f32 %v46, %v1074
    %v1109 = vsub.f32 %v47, %v1075
    %v1110 = vsub.f32 %v48, %v1076
    %v1111 = vsub.f32 %v49, %v1077
    %v1112 = vsub.f32 %v50, %v1078
    %v1113 = vsub.f32 %v51, %v1079
    %v1114 = vsub.f32 %v52, %v1080
    %v1115 = vsub.f32 %v53, %v1081
    %v1116 = vsub.f32 %v54, %v1082
    %v1117 = vsub.f32 %v55, %v1083
    %v1118 = vsub.f32 %v56, %v1084
    %v1119 = vsub.f32 %v57, %v1085
    %v1120 = vsub.f32 %v58, %v1086
    %v1121 = vsub.f32 %v59, %v1087
    %v1122 = vsub.f32 %v60, %v1088
    %v1123 = vsub.f32 %v61, %v1089
    %v1124 = vsub.f32 %v62, %v1090
    %v1125 = vsub.f32 %v63, %v1091
    %v1126 = vsub.f32 %v64, %v1092
    %v1127 = vsub.f32 %v65, %v1093
    %v1128 = vsub.f32 %v66, %v1094
    %v1129 = vsub.f32 %v67, %v1095
    %v1130 = vsub.f32 %v68, %v1096
    %v1131 = vsub.f32 %v69, %v1097
    %v1132 = vsub.f32 %v70, %v1098
    %v1133 = vsub.f32 %v71, %v1099
    %v1134 = vsub.f32 %v72, %v1100
    %v1135 = vsub.f32 %v73, %v1101
    %v1136 = vsub.f32 %v74, %v1102
    %v1137 = vmul.f32 %v1103, %v1103
    %v1138 = vmul.f32 %v1104, %v1104
    %v1139 = vmul.f32 %v1105, %v1105
    %v1140 = vmul.f32 %v1106, %v1106
    %v1141 = vmul.f32 %v1107, %v1107
    %v1142 = vmul.f32 %v1108, %v1108
    %v1143 = vmul.f32 %v1109, %v1109
    %v1144 = vmul.f32 %v1110, %v1110
    %v1145 = vmul.f32 %v1111, %v1111
    %v1146 = vmul.f32 %v1112, %v1112
    %v1147 = vmul.f32 %v1113, %v1113
    %v1148 = vmul.f32 %v1114, %v1114
    %v1149 = vmul.f32 %v1115, %v1115
    %v1150 = vmul.f32 %v1116, %v1116
    %v1151 = vmul.f32 %v1117, %v1117
    %v1152 = vmul.f32 %v1118, %v1118
    %v1153 = vmul.f32 %v1119, %v1119
    %v1154 = vmul.f32 %v1120, %v1120
    %v1155 = vmul.f32 %v1121, %v1121
    %v1156 = vmul.f32 %v1122, %v1122
    %v1157 = vmul.f32 %v1123, %v1123
    %v1158 = vmul.f32 %v1124, %v1124
    %v1159 = vmul.f32 %v1125, %v1125
    %v1160 = vmul.f32 %v1126, %v1126
    %v1161 = vmul.f32 %v1127, %v1127
    %v1162 = vmul.f32 %v1128, %v1128
    %v1163 = vmul.f32 %v1129, %v1129
    %v1164 = vmul.f32 %v1130, %v1130
    %v1165 = vmul.f32 %v1131, %v1131
    %v1166 = vmul.f32 %v1132, %v1132
    %v1167 = vmul.f32 %v1133, %v1133
    %v1168 = vmul.f32 %v1134, %v1134
    %v1169 = vmul.f32 %v1135, %v1135
    %v1170 = vmul.f32 %v1136, %v1136
    %1205 = vrot.lane.b32.xlu0 %v1137, 96
    %v1206 = vpop.permute.xlu0 %1205
    %1207 = vrot.lane.b32.xlu0 %v1138, 96
    %v1208 = vpop.permute.xlu0 %1207
    %1209 = vrot.lane.b32.xlu0 %v1139, 96
    %v1210 = vpop.permute.xlu0 %1209
    %1211 = vrot.lane.b32.xlu0 %v1140, 96
    %v1212 = vpop.permute.xlu0 %1211
    %1213 = vrot.lane.b32.xlu0 %v1141, 96
    %v1214 = vpop.permute.xlu0 %1213
    %1215 = vrot.lane.b32.xlu0 %v1142, 96
    %v1216 = vpop.permute.xlu0 %1215
    %1217 = vrot.lane.b32.xlu0 %v1143, 96
    %v1218 = vpop.permute.xlu0 %1217
    %1219 = vrot.lane.b32.xlu0 %v1144, 96
    %v1220 = vpop.permute.xlu0 %1219
    %1221 = vrot.lane.b32.xlu0 %v1145, 96
    %v1222 = vpop.permute.xlu0 %1221
    %1223 = vrot.lane.b32.xlu0 %v1146, 96
    %v1224 = vpop.permute.xlu0 %1223
    %1225 = vrot.lane.b32.xlu0 %v1147, 96
    %v1226 = vpop.permute.xlu0 %1225
    %1227 = vrot.lane.b32.xlu0 %v1148, 96
    %v1228 = vpop.permute.xlu0 %1227
    %1229 = vrot.lane.b32.xlu0 %v1149, 96
    %v1230 = vpop.permute.xlu0 %1229
    %1231 = vrot.lane.b32.xlu0 %v1150, 96
    %v1232 = vpop.permute.xlu0 %1231
    %1233 = vrot.lane.b32.xlu0 %v1151, 96
    %v1234 = vpop.permute.xlu0 %1233
    %1235 = vrot.lane.b32.xlu0 %v1152, 96
    %v1236 = vpop.permute.xlu0 %1235
    %1237 = vrot.lane.b32.xlu0 %v1153, 96
    %v1238 = vpop.permute.xlu0 %1237
    %1239 = vrot.lane.b32.xlu0 %v1154, 96
    %v1240 = vpop.permute.xlu0 %1239
    %1241 = vrot.lane.b32.xlu0 %v1155, 96
    %v1242 = vpop.permute.xlu0 %1241
    %1243 = vrot.lane.b32.xlu0 %v1156, 96
    %v1244 = vpop.permute.xlu0 %1243
    %1245 = vrot.lane.b32.xlu0 %v1157, 96
    %v1246 = vpop.permute.xlu0 %1245
    %1247 = vrot.lane.b32.xlu0 %v1158, 96
    %v1248 = vpop.permute.xlu0 %1247
    %1249 = vrot.lane.b32.xlu0 %v1159, 96
    %v1250 = vpop.permute.xlu0 %1249
    %1251 = vrot.lane.b32.xlu0 %v1160, 96
    %v1252 = vpop.permute.xlu0 %1251
    %1253 = vrot.lane.b32.xlu0 %v1161, 96
    %v1254 = vpop.permute.xlu0 %1253
    %1255 = vrot.lane.b32.xlu0 %v1162, 96
    %v1256 = vpop.permute.xlu0 %1255
    %1257 = vrot.lane.b32.xlu0 %v1163, 96
    %v1258 = vpop.permute.xlu0 %1257
    %1259 = vrot.lane.b32.xlu0 %v1164, 96
    %v1260 = vpop.permute.xlu0 %1259
    %1261 = vrot.lane.b32.xlu0 %v1165, 96
    %v1262 = vpop.permute.xlu0 %1261
    %1263 = vrot.lane.b32.xlu0 %v1166, 96
    %v1264 = vpop.permute.xlu0 %1263
    %1265 = vrot.lane.b32.xlu0 %v1167, 96
    %v1266 = vpop.permute.xlu0 %1265
    %1267 = vrot.lane.b32.xlu0 %v1168, 96
    %v1268 = vpop.permute.xlu0 %1267
    %1269 = vrot.lane.b32.xlu0 %v1169, 96
    %v1270 = vpop.permute.xlu0 %1269
    %1271 = vrot.lane.b32.xlu0 %v1170, 96
    %v1272 = vpop.permute.xlu0 %1271
    %v1307 = vsel %vm75, %v1206, 0.0
    %1308 = vadd.xlane.f32.xlu0 %v1307
    %v1309 = vpop.xlane.xlu0 %1308
    %v1310 = vsel %vm75, %v1208, 0.0
    %1311 = vadd.xlane.f32.xlu0 %v1310
    %v1312 = vpop.xlane.xlu0 %1311
    %v1313 = vsel %vm75, %v1210, 0.0
    %1314 = vadd.xlane.f32.xlu0 %v1313
    %v1315 = vpop.xlane.xlu0 %1314
    %v1316 = vsel %vm75, %v1212, 0.0
    %1317 = vadd.xlane.f32.xlu0 %v1316
    %v1318 = vpop.xlane.xlu0 %1317
    %v1319 = vsel %vm75, %v1214, 0.0
    %1320 = vadd.xlane.f32.xlu0 %v1319
    %v1321 = vpop.xlane.xlu0 %1320
    %v1322 = vsel %vm75, %v1216, 0.0
    %1323 = vadd.xlane.f32.xlu0 %v1322
    %v1324 = vpop.xlane.xlu0 %1323
    %v1325 = vsel %vm75, %v1218, 0.0
    %1326 = vadd.xlane.f32.xlu0 %v1325
    %v1327 = vpop.xlane.xlu0 %1326
    %v1328 = vsel %vm75, %v1220, 0.0
    %1329 = vadd.xlane.f32.xlu0 %v1328
    %v1330 = vpop.xlane.xlu0 %1329
    %v1331 = vsel %vm75, %v1222, 0.0
    %1332 = vadd.xlane.f32.xlu0 %v1331
    %v1333 = vpop.xlane.xlu0 %1332
    %v1334 = vsel %vm75, %v1224, 0.0
    %1335 = vadd.xlane.f32.xlu0 %v1334
    %v1336 = vpop.xlane.xlu0 %1335
    %v1337 = vsel %vm75, %v1226, 0.0
    %1338 = vadd.xlane.f32.xlu0 %v1337
    %v1339 = vpop.xlane.xlu0 %1338
    %v1340 = vsel %vm75, %v1228, 0.0
    %1341 = vadd.xlane.f32.xlu0 %v1340
    %v1342 = vpop.xlane.xlu0 %1341
    %v1343 = vsel %vm75, %v1230, 0.0
    %1344 = vadd.xlane.f32.xlu0 %v1343
    %v1345 = vpop.xlane.xlu0 %1344
    %v1346 = vsel %vm75, %v1232, 0.0
    %1347 = vadd.xlane.f32.xlu0 %v1346
    %v1348 = vpop.xlane.xlu0 %1347
    %v1349 = vsel %vm75, %v1234, 0.0
    %1350 = vadd.xlane.f32.xlu0 %v1349
    %v1351 = vpop.xlane.xlu0 %1350
    %v1352 = vsel %vm75, %v1236, 0.0
    %1353 = vadd.xlane.f32.xlu0 %v1352
    %v1354 = vpop.xlane.xlu0 %1353
    %v1355 = vsel %vm75, %v1238, 0.0
    %1356 = vadd.xlane.f32.xlu0 %v1355
    %v1357 = vpop.xlane.xlu0 %1356
    %v1358 = vsel %vm75, %v1240, 0.0
    %1359 = vadd.xlane.f32.xlu0 %v1358
    %v1360 = vpop.xlane.xlu0 %1359
    %v1361 = vsel %vm75, %v1242, 0.0
    %1362 = vadd.xlane.f32.xlu0 %v1361
    %v1363 = vpop.xlane.xlu0 %1362
    %v1364 = vsel %vm75, %v1244, 0.0
    %1365 = vadd.xlane.f32.xlu0 %v1364
    %v1366 = vpop.xlane.xlu0 %1365
    %v1367 = vsel %vm75, %v1246, 0.0
    %1368 = vadd.xlane.f32.xlu0 %v1367
    %v1369 = vpop.xlane.xlu0 %1368
    %v1370 = vsel %vm75, %v1248, 0.0
    %1371 = vadd.xlane.f32.xlu0 %v1370
    %v1372 = vpop.xlane.xlu0 %1371
    %v1373 = vsel %vm75, %v1250, 0.0
    %1374 = vadd.xlane.f32.xlu0 %v1373
    %v1375 = vpop.xlane.xlu0 %1374
    %v1376 = vsel %vm75, %v1252, 0.0
    %1377 = vadd.xlane.f32.xlu0 %v1376
    %v1378 = vpop.xlane.xlu0 %1377
    %v1379 = vsel %vm75, %v1254, 0.0
    %1380 = vadd.xlane.f32.xlu0 %v1379
    %v1381 = vpop.xlane.xlu0 %1380
    %v1382 = vsel %vm75, %v1256, 0.0
    %1383 = vadd.xlane.f32.xlu0 %v1382
    %v1384 = vpop.xlane.xlu0 %1383
    %v1385 = vsel %vm75, %v1258, 0.0
    %1386 = vadd.xlane.f32.xlu0 %v1385
    %v1387 = vpop.xlane.xlu0 %1386
    %v1388 = vsel %vm75, %v1260, 0.0
    %1389 = vadd.xlane.f32.xlu0 %v1388
    %v1390 = vpop.xlane.xlu0 %1389
    %v1391 = vsel %vm75, %v1262, 0.0
    %1392 = vadd.xlane.f32.xlu0 %v1391
    %v1393 = vpop.xlane.xlu0 %1392
    %v1394 = vsel %vm75, %v1264, 0.0
    %1395 = vadd.xlane.f32.xlu0 %v1394
    %v1396 = vpop.xlane.xlu0 %1395
    %v1397 = vsel %vm75, %v1266, 0.0
    %1398 = vadd.xlane.f32.xlu0 %v1397
    %v1399 = vpop.xlane.xlu0 %1398
    %v1400 = vsel %vm75, %v1268, 0.0
    %1401 = vadd.xlane.f32.xlu0 %v1400
    %v1402 = vpop.xlane.xlu0 %1401
    %v1403 = vsel %vm75, %v1270, 0.0
    %1404 = vadd.xlane.f32.xlu0 %v1403
    %v1405 = vpop.xlane.xlu0 %1404
    %v1406 = vsel %vm75, %v1272, 0.0
    %1407 = vadd.xlane.f32.xlu0 %v1406
    %v1408 = vpop.xlane.xlu0 %1407
    %v1409 = vmul.f32 %v1309, %v184
    %v1410 = vmul.f32 %v1312, %v184
    %v1411 = vmul.f32 %v1315, %v184
    %v1412 = vmul.f32 %v1318, %v184
    %v1413 = vmul.f32 %v1321, %v184
    %v1414 = vmul.f32 %v1324, %v184
    %v1415 = vmul.f32 %v1327, %v184
    %v1416 = vmul.f32 %v1330, %v184
    %v1417 = vmul.f32 %v1333, %v184
    %v1418 = vmul.f32 %v1336, %v184
    %v1419 = vmul.f32 %v1339, %v184
    %v1420 = vmul.f32 %v1342, %v184
    %v1421 = vmul.f32 %v1345, %v184
    %v1422 = vmul.f32 %v1348, %v184
    %v1423 = vmul.f32 %v1351, %v184
    %v1424 = vmul.f32 %v1354, %v184
    %v1425 = vmul.f32 %v1357, %v184
    %v1426 = vmul.f32 %v1360, %v184
    %v1427 = vmul.f32 %v1363, %v184
    %v1428 = vmul.f32 %v1366, %v184
    %v1429 = vmul.f32 %v1369, %v184
    %v1430 = vmul.f32 %v1372, %v184
    %v1431 = vmul.f32 %v1375, %v184
    %v1432 = vmul.f32 %v1378, %v184
    %v1433 = vmul.f32 %v1381, %v184
    %v1434 = vmul.f32 %v1384, %v184
    %v1435 = vmul.f32 %v1387, %v184
    %v1436 = vmul.f32 %v1390, %v184
    %v1437 = vmul.f32 %v1393, %v184
    %v1438 = vmul.f32 %v1396, %v184
    %v1439 = vmul.f32 %v1399, %v184
    %v1440 = vmul.f32 %v1402, %v184
    %v1441 = vmul.f32 %v1405, %v184
    %v1442 = vmul.f32 %v1408, %v184
    %v1443 = vadd.f32 %v1409, 1e-05
    %v1444 = vadd.f32 %v1410, 1e-05
    %v1445 = vadd.f32 %v1411, 1e-05
    %v1446 = vadd.f32 %v1412, 1e-05
    %v1447 = vadd.f32 %v1413, 1e-05
    %v1448 = vadd.f32 %v1414, 1e-05
    %v1449 = vadd.f32 %v1415, 1e-05
    %v1450 = vadd.f32 %v1416, 1e-05
    %v1451 = vadd.f32 %v1417, 1e-05
    %v1452 = vadd.f32 %v1418, 1e-05
    %v1453 = vadd.f32 %v1419, 1e-05
    %v1454 = vadd.f32 %v1420, 1e-05
    %v1455 = vadd.f32 %v1421, 1e-05
    %v1456 = vadd.f32 %v1422, 1e-05
    %v1457 = vadd.f32 %v1423, 1e-05
    %v1458 = vadd.f32 %v1424, 1e-05
    %v1459 = vadd.f32 %v1425, 1e-05
    %v1460 = vadd.f32 %v1426, 1e-05
    %v1461 = vadd.f32 %v1427, 1e-05
    %v1462 = vadd.f32 %v1428, 1e-05
    %v1463 = vadd.f32 %v1429, 1e-05
    %v1464 = vadd.f32 %v1430, 1e-05
    %v1465 = vadd.f32 %v1431, 1e-05
    %v1466 = vadd.f32 %v1432, 1e-05
    %v1467 = vadd.f32 %v1433, 1e-05
    %v1468 = vadd.f32 %v1434, 1e-05
    %v1469 = vadd.f32 %v1435, 1e-05
    %v1470 = vadd.f32 %v1436, 1e-05
    %v1471 = vadd.f32 %v1437, 1e-05
    %v1472 = vadd.f32 %v1438, 1e-05
    %v1473 = vadd.f32 %v1439, 1e-05
    %v1474 = vadd.f32 %v1440, 1e-05
    %v1475 = vadd.f32 %v1441, 1e-05
    %v1476 = vadd.f32 %v1442, 1e-05
    %v1477 = vrsqrt.pop %v1443
    %v1478 = vmul.f32 %v1477, %v1443
    %v1479 = vmul.f32 %v1478, %v1477
    %v1480 = vmul.f32 0.5, %v1479
    %v1481 = vsub.f32 1.5, %v1480
    %v1482 = vmul.f32 %v1477, %v1481
    %vm1483 = vweird.f32 %v1443
    %vm1484 = vweird.f32 %v1477
    %vm1485 = vmor %vm1483, %vm1484
    %v1486 = vsel %vm1485, %v1477, %v1482
    %v1487 = vrsqrt.pop %v1444
    %v1488 = vmul.f32 %v1487, %v1444
    %v1489 = vmul.f32 %v1488, %v1487
    %v1490 = vmul.f32 0.5, %v1489
    %v1491 = vsub.f32 1.5, %v1490
    %v1492 = vmul.f32 %v1487, %v1491
    %vm1493 = vweird.f32 %v1444
    %vm1494 = vweird.f32 %v1487
    %vm1495 = vmor %vm1493, %vm1494
    %v1496 = vsel %vm1495, %v1487, %v1492
    %v1497 = vrsqrt.pop %v1445
    %v1498 = vmul.f32 %v1497, %v1445
    %v1499 = vmul.f32 %v1498, %v1497
    %v1500 = vmul.f32 0.5, %v1499
    %v1501 = vsub.f32 1.5, %v1500
    %v1502 = vmul.f32 %v1497, %v1501
    %vm1503 = vweird.f32 %v1445
    %vm1504 = vweird.f32 %v1497
    %vm1505 = vmor %vm1503, %vm1504
    %v1506 = vsel %vm1505, %v1497, %v1502
    %v1507 = vrsqrt.pop %v1446
    %v1508 = vmul.f32 %v1507, %v1446
    %v1509 = vmul.f32 %v1508, %v1507
    %v1510 = vmul.f32 0.5, %v1509
    %v1511 = vsub.f32 1.5, %v1510
    %v1512 = vmul.f32 %v1507, %v1511
    %vm1513 = vweird.f32 %v1446
    %vm1514 = vweird.f32 %v1507
    %vm1515 = vmor %vm1513, %vm1514
    %v1516 = vsel %vm1515, %v1507, %v1512
    %v1517 = vrsqrt.pop %v1447
    %v1518 = vmul.f32 %v1517, %v1447
    %v1519 = vmul.f32 %v1518, %v1517
    %v1520 = vmul.f32 0.5, %v1519
    %v1521 = vsub.f32 1.5, %v1520
    %v1522 = vmul.f32 %v1517, %v1521
    %vm1523 = vweird.f32 %v1447
    %vm1524 = vweird.f32 %v1517
    %vm1525 = vmor %vm1523, %vm1524
    %v1526 = vsel %vm1525, %v1517, %v1522
    %v1527 = vrsqrt.pop %v1448
    %v1528 = vmul.f32 %v1527, %v1448
    %v1529 = vmul.f32 %v1528, %v1527
    %v1530 = vmul.f32 0.5, %v1529
    %v1531 = vsub.f32 1.5, %v1530
    %v1532 = vmul.f32 %v1527, %v1531
    %vm1533 = vweird.f32 %v1448
    %vm1534 = vweird.f32 %v1527
    %vm1535 = vmor %vm1533, %vm1534
    %v1536 = vsel %vm1535, %v1527, %v1532
    %v1537 = vrsqrt.pop %v1449
    %v1538 = vmul.f32 %v1537, %v1449
    %v1539 = vmul.f32 %v1538, %v1537
    %v1540 = vmul.f32 0.5, %v1539
    %v1541 = vsub.f32 1.5, %v1540
    %v1542 = vmul.f32 %v1537, %v1541
    %vm1543 = vweird.f32 %v1449
    %vm1544 = vweird.f32 %v1537
    %vm1545 = vmor %vm1543, %vm1544
    %v1546 = vsel %vm1545, %v1537, %v1542
    %v1547 = vrsqrt.pop %v1450
    %v1548 = vmul.f32 %v1547, %v1450
    %v1549 = vmul.f32 %v1548, %v1547
    %v1550 = vmul.f32 0.5, %v1549
    %v1551 = vsub.f32 1.5, %v1550
    %v1552 = vmul.f32 %v1547, %v1551
    %vm1553 = vweird.f32 %v1450
    %vm1554 = vweird.f32 %v1547
    %vm1555 = vmor %vm1553, %vm1554
    %v1556 = vsel %vm1555, %v1547, %v1552
    %v1557 = vrsqrt.pop %v1451
    %v1558 = vmul.f32 %v1557, %v1451
    %v1559 = vmul.f32 %v1558, %v1557
    %v1560 = vmul.f32 0.5, %v1559
    %v1561 = vsub.f32 1.5, %v1560
    %v1562 = vmul.f32 %v1557, %v1561
    %vm1563 = vweird.f32 %v1451
    %vm1564 = vweird.f32 %v1557
    %vm1565 = vmor %vm1563, %vm1564
    %v1566 = vsel %vm1565, %v1557, %v1562
    %v1567 = vrsqrt.pop %v1452
    %v1568 = vmul.f32 %v1567, %v1452
    %v1569 = vmul.f32 %v1568, %v1567
    %v1570 = vmul.f32 0.5, %v1569
    %v1571 = vsub.f32 1.5, %v1570
    %v1572 = vmul.f32 %v1567, %v1571
    %vm1573 = vweird.f32 %v1452
    %vm1574 = vweird.f32 %v1567
    %vm1575 = vmor %vm1573, %vm1574
    %v1576 = vsel %vm1575, %v1567, %v1572
    %v1577 = vrsqrt.pop %v1453
    %v1578 = vmul.f32 %v1577, %v1453
    %v1579 = vmul.f32 %v1578, %v1577
    %v1580 = vmul.f32 0.5, %v1579
    %v1581 = vsub.f32 1.5, %v1580
    %v1582 = vmul.f32 %v1577, %v1581
    %vm1583 = vweird.f32 %v1453
    %vm1584 = vweird.f32 %v1577
    %vm1585 = vmor %vm1583, %vm1584
    %v1586 = vsel %vm1585, %v1577, %v1582
    %v1587 = vrsqrt.pop %v1454
    %v1588 = vmul.f32 %v1587, %v1454
    %v1589 = vmul.f32 %v1588, %v1587
    %v1590 = vmul.f32 0.5, %v1589
    %v1591 = vsub.f32 1.5, %v1590
    %v1592 = vmul.f32 %v1587, %v1591
    %vm1593 = vweird.f32 %v1454
    %vm1594 = vweird.f32 %v1587
    %vm1595 = vmor %vm1593, %vm1594
    %v1596 = vsel %vm1595, %v1587, %v1592
    %v1597 = vrsqrt.pop %v1455
    %v1598 = vmul.f32 %v1597, %v1455
    %v1599 = vmul.f32 %v1598, %v1597
    %v1600 = vmul.f32 0.5, %v1599
    %v1601 = vsub.f32 1.5, %v1600
    %v1602 = vmul.f32 %v1597, %v1601
    %vm1603 = vweird.f32 %v1455
    %vm1604 = vweird.f32 %v1597
    %vm1605 = vmor %vm1603, %vm1604
    %v1606 = vsel %vm1605, %v1597, %v1602
    %v1607 = vrsqrt.pop %v1456
    %v1608 = vmul.f32 %v1607, %v1456
    %v1609 = vmul.f32 %v1608, %v1607
    %v1610 = vmul.f32 0.5, %v1609
    %v1611 = vsub.f32 1.5, %v1610
    %v1612 = vmul.f32 %v1607, %v1611
    %vm1613 = vweird.f32 %v1456
    %vm1614 = vweird.f32 %v1607
    %vm1615 = vmor %vm1613, %vm1614
    %v1616 = vsel %vm1615, %v1607, %v1612
    %v1617 = vrsqrt.pop %v1457
    %v1618 = vmul.f32 %v1617, %v1457
    %v1619 = vmul.f32 %v1618, %v1617
    %v1620 = vmul.f32 0.5, %v1619
    %v1621 = vsub.f32 1.5, %v1620
    %v1622 = vmul.f32 %v1617, %v1621
    %vm1623 = vweird.f32 %v1457
    %vm1624 = vweird.f32 %v1617
    %vm1625 = vmor %vm1623, %vm1624
    %v1626 = vsel %vm1625, %v1617, %v1622
    %v1627 = vrsqrt.pop %v1458
    %v1628 = vmul.f32 %v1627, %v1458
    %v1629 = vmul.f32 %v1628, %v1627
    %v1630 = vmul.f32 0.5, %v1629
    %v1631 = vsub.f32 1.5, %v1630
    %v1632 = vmul.f32 %v1627, %v1631
    %vm1633 = vweird.f32 %v1458
    %vm1634 = vweird.f32 %v1627
    %vm1635 = vmor %vm1633, %vm1634
    %v1636 = vsel %vm1635, %v1627, %v1632
    %v1637 = vrsqrt.pop %v1459
    %v1638 = vmul.f32 %v1637, %v1459
    %v1639 = vmul.f32 %v1638, %v1637
    %v1640 = vmul.f32 0.5, %v1639
    %v1641 = vsub.f32 1.5, %v1640
    %v1642 = vmul.f32 %v1637, %v1641
    %vm1643 = vweird.f32 %v1459
    %vm1644 = vweird.f32 %v1637
    %vm1645 = vmor %vm1643, %vm1644
    %v1646 = vsel %vm1645, %v1637, %v1642
    %v1647 = vrsqrt.pop %v1460
    %v1648 = vmul.f32 %v1647, %v1460
    %v1649 = vmul.f32 %v1648, %v1647
    %v1650 = vmul.f32 0.5, %v1649
    %v1651 = vsub.f32 1.5, %v1650
    %v1652 = vmul.f32 %v1647, %v1651
    %vm1653 = vweird.f32 %v1460
    %vm1654 = vweird.f32 %v1647
    %vm1655 = vmor %vm1653, %vm1654
    %v1656 = vsel %vm1655, %v1647, %v1652
    %v1657 = vrsqrt.pop %v1461
    %v1658 = vmul.f32 %v1657, %v1461
    %v1659 = vmul.f32 %v1658, %v1657
    %v1660 = vmul.f32 0.5, %v1659
    %v1661 = vsub.f32 1.5, %v1660
    %v1662 = vmul.f32 %v1657, %v1661
    %vm1663 = vweird.f32 %v1461
    %vm1664 = vweird.f32 %v1657
    %vm1665 = vmor %vm1663, %vm1664
    %v1666 = vsel %vm1665, %v1657, %v1662
    %v1667 = vrsqrt.pop %v1462
    %v1668 = vmul.f32 %v1667, %v1462
    %v1669 = vmul.f32 %v1668, %v1667
    %v1670 = vmul.f32 0.5, %v1669
    %v1671 = vsub.f32 1.5, %v1670
    %v1672 = vmul.f32 %v1667, %v1671
    %vm1673 = vweird.f32 %v1462
    %vm1674 = vweird.f32 %v1667
    %vm1675 = vmor %vm1673, %vm1674
    %v1676 = vsel %vm1675, %v1667, %v1672
    %v1677 = vrsqrt.pop %v1463
    %v1678 = vmul.f32 %v1677, %v1463
    %v1679 = vmul.f32 %v1678, %v1677
    %v1680 = vmul.f32 0.5, %v1679
    %v1681 = vsub.f32 1.5, %v1680
    %v1682 = vmul.f32 %v1677, %v1681
    %vm1683 = vweird.f32 %v1463
    %vm1684 = vweird.f32 %v1677
    %vm1685 = vmor %vm1683, %vm1684
    %v1686 = vsel %vm1685, %v1677, %v1682
    %v1687 = vrsqrt.pop %v1464
    %v1688 = vmul.f32 %v1687, %v1464
    %v1689 = vmul.f32 %v1688, %v1687
    %v1690 = vmul.f32 0.5, %v1689
    %v1691 = vsub.f32 1.5, %v1690
    %v1692 = vmul.f32 %v1687, %v1691
    %vm1693 = vweird.f32 %v1464
    %vm1694 = vweird.f32 %v1687
    %vm1695 = vmor %vm1693, %vm1694
    %v1696 = vsel %vm1695, %v1687, %v1692
    %v1697 = vrsqrt.pop %v1465
    %v1698 = vmul.f32 %v1697, %v1465
    %v1699 = vmul.f32 %v1698, %v1697
    %v1700 = vmul.f32 0.5, %v1699
    %v1701 = vsub.f32 1.5, %v1700
    %v1702 = vmul.f32 %v1697, %v1701
    %vm1703 = vweird.f32 %v1465
    %vm1704 = vweird.f32 %v1697
    %vm1705 = vmor %vm1703, %vm1704
    %v1706 = vsel %vm1705, %v1697, %v1702
    %v1707 = vrsqrt.pop %v1466
    %v1708 = vmul.f32 %v1707, %v1466
    %v1709 = vmul.f32 %v1708, %v1707
    %v1710 = vmul.f32 0.5, %v1709
    %v1711 = vsub.f32 1.5, %v1710
    %v1712 = vmul.f32 %v1707, %v1711
    %vm1713 = vweird.f32 %v1466
    %vm1714 = vweird.f32 %v1707
    %vm1715 = vmor %vm1713, %vm1714
    %v1716 = vsel %vm1715, %v1707, %v1712
    %v1717 = vrsqrt.pop %v1467
    %v1718 = vmul.f32 %v1717, %v1467
    %v1719 = vmul.f32 %v1718, %v1717
    %v1720 = vmul.f32 0.5, %v1719
    %v1721 = vsub.f32 1.5, %v1720
    %v1722 = vmul.f32 %v1717, %v1721
    %vm1723 = vweird.f32 %v1467
    %vm1724 = vweird.f32 %v1717
    %vm1725 = vmor %vm1723, %vm1724
    %v1726 = vsel %vm1725, %v1717, %v1722
    %v1727 = vrsqrt.pop %v1468
    %v1728 = vmul.f32 %v1727, %v1468
    %v1729 = vmul.f32 %v1728, %v1727
    %v1730 = vmul.f32 0.5, %v1729
    %v1731 = vsub.f32 1.5, %v1730
    %v1732 = vmul.f32 %v1727, %v1731
    %vm1733 = vweird.f32 %v1468
    %vm1734 = vweird.f32 %v1727
    %vm1735 = vmor %vm1733, %vm1734
    %v1736 = vsel %vm1735, %v1727, %v1732
    %v1737 = vrsqrt.pop %v1469
    %v1738 = vmul.f32 %v1737, %v1469
    %v1739 = vmul.f32 %v1738, %v1737
    %v1740 = vmul.f32 0.5, %v1739
    %v1741 = vsub.f32 1.5, %v1740
    %v1742 = vmul.f32 %v1737, %v1741
    %vm1743 = vweird.f32 %v1469
    %vm1744 = vweird.f32 %v1737
    %vm1745 = vmor %vm1743, %vm1744
    %v1746 = vsel %vm1745, %v1737, %v1742
    %v1747 = vrsqrt.pop %v1470
    %v1748 = vmul.f32 %v1747, %v1470
    %v1749 = vmul.f32 %v1748, %v1747
    %v1750 = vmul.f32 0.5, %v1749
    %v1751 = vsub.f32 1.5, %v1750
    %v1752 = vmul.f32 %v1747, %v1751
    %vm1753 = vweird.f32 %v1470
    %vm1754 = vweird.f32 %v1747
    %vm1755 = vmor %vm1753, %vm1754
    %v1756 = vsel %vm1755, %v1747, %v1752
    %v1757 = vrsqrt.pop %v1471
    %v1758 = vmul.f32 %v1757, %v1471
    %v1759 = vmul.f32 %v1758, %v1757
    %v1760 = vmul.f32 0.5, %v1759
    %v1761 = vsub.f32 1.5, %v1760
    %v1762 = vmul.f32 %v1757, %v1761
    %vm1763 = vweird.f32 %v1471
    %vm1764 = vweird.f32 %v1757
    %vm1765 = vmor %vm1763, %vm1764
    %v1766 = vsel %vm1765, %v1757, %v1762
    %v1767 = vrsqrt.pop %v1472
    %v1768 = vmul.f32 %v1767, %v1472
    %v1769 = vmul.f32 %v1768, %v1767
    %v1770 = vmul.f32 0.5, %v1769
    %v1771 = vsub.f32 1.5, %v1770
    %v1772 = vmul.f32 %v1767, %v1771
    %vm1773 = vweird.f32 %v1472
    %vm1774 = vweird.f32 %v1767
    %vm1775 = vmor %vm1773, %vm1774
    %v1776 = vsel %vm1775, %v1767, %v1772
    %v1777 = vrsqrt.pop %v1473
    %v1778 = vmul.f32 %v1777, %v1473
    %v1779 = vmul.f32 %v1778, %v1777
    %v1780 = vmul.f32 0.5, %v1779
    %v1781 = vsub.f32 1.5, %v1780
    %v1782 = vmul.f32 %v1777, %v1781
    %vm1783 = vweird.f32 %v1473
    %vm1784 = vweird.f32 %v1777
    %vm1785 = vmor %vm1783, %vm1784
    %v1786 = vsel %vm1785, %v1777, %v1782
    %v1787 = vrsqrt.pop %v1474
    %v1788 = vmul.f32 %v1787, %v1474
    %v1789 = vmul.f32 %v1788, %v1787
    %v1790 = vmul.f32 0.5, %v1789
    %v1791 = vsub.f32 1.5, %v1790
    %v1792 = vmul.f32 %v1787, %v1791
    %vm1793 = vweird.f32 %v1474
    %vm1794 = vweird.f32 %v1787
    %vm1795 = vmor %vm1793, %vm1794
    %v1796 = vsel %vm1795, %v1787, %v1792
    %v1797 = vrsqrt.pop %v1475
    %v1798 = vmul.f32 %v1797, %v1475
    %v1799 = vmul.f32 %v1798, %v1797
    %v1800 = vmul.f32 0.5, %v1799
    %v1801 = vsub.f32 1.5, %v1800
    %v1802 = vmul.f32 %v1797, %v1801
    %vm1803 = vweird.f32 %v1475
    %vm1804 = vweird.f32 %v1797
    %vm1805 = vmor %vm1803, %vm1804
    %v1806 = vsel %vm1805, %v1797, %v1802
    %v1807 = vrsqrt.pop %v1476
    %v1808 = vmul.f32 %v1807, %v1476
    %v1809 = vmul.f32 %v1808, %v1807
    %v1810 = vmul.f32 0.5, %v1809
    %v1811 = vsub.f32 1.5, %v1810
    %v1812 = vmul.f32 %v1807, %v1811
    %vm1813 = vweird.f32 %v1476
    %vm1814 = vweird.f32 %v1807
    %vm1815 = vmor %vm1813, %vm1814
    %v1816 = vsel %vm1815, %v1807, %v1812
    %v1817 = vmul.f32 %v1103, %v1486
    %v1818 = vmul.f32 %v1104, %v1496
    %v1819 = vmul.f32 %v1105, %v1506
    %v1820 = vmul.f32 %v1106, %v1516
    %v1821 = vmul.f32 %v1107, %v1526
    %v1822 = vmul.f32 %v1108, %v1536
    %v1823 = vmul.f32 %v1109, %v1546
    %v1824 = vmul.f32 %v1110, %v1556
    %v1825 = vmul.f32 %v1111, %v1566
    %v1826 = vmul.f32 %v1112, %v1576
    %v1827 = vmul.f32 %v1113, %v1586
    %v1828 = vmul.f32 %v1114, %v1596
    %v1829 = vmul.f32 %v1115, %v1606
    %v1830 = vmul.f32 %v1116, %v1616
    %v1831 = vmul.f32 %v1117, %v1626
    %v1832 = vmul.f32 %v1118, %v1636
    %v1833 = vmul.f32 %v1119, %v1646
    %v1834 = vmul.f32 %v1120, %v1656
    %v1835 = vmul.f32 %v1121, %v1666
    %v1836 = vmul.f32 %v1122, %v1676
    %v1837 = vmul.f32 %v1123, %v1686
    %v1838 = vmul.f32 %v1124, %v1696
    %v1839 = vmul.f32 %v1125, %v1706
    %v1840 = vmul.f32 %v1126, %v1716
    %v1841 = vmul.f32 %v1127, %v1726
    %v1842 = vmul.f32 %v1128, %v1736
    %v1843 = vmul.f32 %v1129, %v1746
    %v1844 = vmul.f32 %v1130, %v1756
    %v1845 = vmul.f32 %v1131, %v1766
    %v1846 = vmul.f32 %v1132, %v1776
    %v1847 = vmul.f32 %v1133, %v1786
    %v1848 = vmul.f32 %v1134, %v1796
    %v1849 = vmul.f32 %v1135, %v1806
    %v1850 = vmul.f32 %v1136, %v1816
    %v1851 = vsel %vm75, %v797, %v1817
    %v1852 = vsel %vm75, %v798, %v1818
    %v1853 = vsel %vm75, %v799, %v1819
    %v1854 = vsel %vm75, %v800, %v1820
    %v1855 = vsel %vm75, %v801, %v1821
    %v1856 = vsel %vm75, %v802, %v1822
    %v1857 = vsel %vm75, %v803, %v1823
    %v1858 = vsel %vm75, %v804, %v1824
    %v1859 = vsel %vm75, %v805, %v1825
    %v1860 = vsel %vm75, %v806, %v1826
    %v1861 = vsel %vm75, %v807, %v1827
    %v1862 = vsel %vm75, %v808, %v1828
    %v1863 = vsel %vm75, %v809, %v1829
    %v1864 = vsel %vm75, %v810, %v1830
    %v1865 = vsel %vm75, %v811, %v1831
    %v1866 = vsel %vm75, %v812, %v1832
    %v1867 = vsel %vm75, %v813, %v1833
    %v1868 = vsel %vm75, %v814, %v1834
    %v1869 = vsel %vm75, %v815, %v1835
    %v1870 = vsel %vm75, %v816, %v1836
    %v1871 = vsel %vm75, %v817, %v1837
    %v1872 = vsel %vm75, %v818, %v1838
    %v1873 = vsel %vm75, %v819, %v1839
    %v1874 = vsel %vm75, %v820, %v1840
    %v1875 = vsel %vm75, %v821, %v1841
    %v1876 = vsel %vm75, %v822, %v1842
    %v1877 = vsel %vm75, %v823, %v1843
    %v1878 = vsel %vm75, %v824, %v1844
    %v1879 = vsel %vm75, %v825, %v1845
    %v1880 = vsel %vm75, %v826, %v1846
    %v1881 = vsel %vm75, %v827, %v1847
    %v1882 = vsel %vm75, %v828, %v1848
    %v1883 = vsel %vm75, %v829, %v1849
    %v1884 = vsel %vm75, %v830, %v1850
    %v1885 = vld [vmem:[%s1] sm:$0x1]
    %v1887 = vperm.slane %v1885, 0
    %v1889 = vmul.f32 %v1851, %v1887
    %v1890 = vmul.f32 %v1852, %v1887
    %v1891 = vmul.f32 %v1853, %v1887
    %v1892 = vmul.f32 %v1854, %v1887
    %v1893 = vmul.f32 %v1855, %v1887
    %v1894 = vmul.f32 %v1856, %v1887
    %v1895 = vmul.f32 %v1857, %v1887
    %v1896 = vmul.f32 %v1858, %v1887
    %v1897 = vmul.f32 %v1859, %v1887
    %v1898 = vmul.f32 %v1860, %v1887
    %v1899 = vmul.f32 %v1861, %v1887
    %v1900 = vmul.f32 %v1862, %v1887
    %v1901 = vmul.f32 %v1863, %v1887
    %v1902 = vmul.f32 %v1864, %v1887
    %v1903 = vmul.f32 %v1865, %v1887
    %v1904 = vmul.f32 %v1866, %v1887
    %v1905 = vmul.f32 %v1867, %v1887
    %v1906 = vmul.f32 %v1868, %v1887
    %v1907 = vmul.f32 %v1869, %v1887
    %v1908 = vmul.f32 %v1870, %v1887
    %v1909 = vmul.f32 %v1871, %v1887
    %v1910 = vmul.f32 %v1872, %v1887
    %v1911 = vmul.f32 %v1873, %v1887
    %v1912 = vmul.f32 %v1874, %v1887
    %v1913 = vmul.f32 %v1875, %v1887
    %v1914 = vmul.f32 %v1876, %v1887
    %v1915 = vmul.f32 %v1877, %v1887
    %v1916 = vmul.f32 %v1878, %v1887
    %v1917 = vmul.f32 %v1879, %v1887
    %v1918 = vmul.f32 %v1880, %v1887
    %v1919 = vmul.f32 %v1881, %v1887
    %v1920 = vmul.f32 %v1882, %v1887
    %v1921 = vmul.f32 %v1883, %v1887
    %v1922 = vmul.f32 %v1884, %v1887
    %v1923 = vld [vmem:[%s2] sm:$0x1]
    %v1925 = vperm.slane %v1923, 0
    %v1927 = vadd.f32 %v1889, %v1925
    %v1928 = vadd.f32 %v1890, %v1925
    %v1929 = vadd.f32 %v1891, %v1925
    %v1930 = vadd.f32 %v1892, %v1925
    %v1931 = vadd.f32 %v1893, %v1925
    %v1932 = vadd.f32 %v1894, %v1925
    %v1933 = vadd.f32 %v1895, %v1925
    %v1934 = vadd.f32 %v1896, %v1925
    %v1935 = vadd.f32 %v1897, %v1925
    %v1936 = vadd.f32 %v1898, %v1925
    %v1937 = vadd.f32 %v1899, %v1925
    %v1938 = vadd.f32 %v1900, %v1925
    %v1939 = vadd.f32 %v1901, %v1925
    %v1940 = vadd.f32 %v1902, %v1925
    %v1941 = vadd.f32 %v1903, %v1925
    %v1942 = vadd.f32 %v1904, %v1925
    %v1943 = vadd.f32 %v1905, %v1925
    %v1944 = vadd.f32 %v1906, %v1925
    %v1945 = vadd.f32 %v1907, %v1925
    %v1946 = vadd.f32 %v1908, %v1925
    %v1947 = vadd.f32 %v1909, %v1925
    %v1948 = vadd.f32 %v1910, %v1925
    %v1949 = vadd.f32 %v1911, %v1925
    %v1950 = vadd.f32 %v1912, %v1925
    %v1951 = vadd.f32 %v1913, %v1925
    %v1952 = vadd.f32 %v1914, %v1925
    %v1953 = vadd.f32 %v1915, %v1925
    %v1954 = vadd.f32 %v1916, %v1925
    %v1955 = vadd.f32 %v1917, %v1925
    %v1956 = vadd.f32 %v1918, %v1925
    %v1957 = vadd.f32 %v1919, %v1925
    %v1958 = vadd.f32 %v1920, %v1925
    %v1959 = vadd.f32 %v1921, %v1925
    %v1960 = vadd.f32 %v1922, %v1925
    %v1961 = vmul.f32 %v1927, 0.5
    %v1962 = vmul.f32 %v1928, 0.5
    %v1963 = vmul.f32 %v1929, 0.5
    %v1964 = vmul.f32 %v1930, 0.5
    %v1965 = vmul.f32 %v1931, 0.5
    %v1966 = vmul.f32 %v1932, 0.5
    %v1967 = vmul.f32 %v1933, 0.5
    %v1968 = vmul.f32 %v1934, 0.5
    %v1969 = vmul.f32 %v1935, 0.5
    %v1970 = vmul.f32 %v1936, 0.5
    %v1971 = vmul.f32 %v1937, 0.5
    %v1972 = vmul.f32 %v1938, 0.5
    %v1973 = vmul.f32 %v1939, 0.5
    %v1974 = vmul.f32 %v1940, 0.5
    %v1975 = vmul.f32 %v1941, 0.5
    %v1976 = vmul.f32 %v1942, 0.5
    %v1977 = vmul.f32 %v1943, 0.5
    %v1978 = vmul.f32 %v1944, 0.5
    %v1979 = vmul.f32 %v1945, 0.5
    %v1980 = vmul.f32 %v1946, 0.5
    %v1981 = vmul.f32 %v1947, 0.5
    %v1982 = vmul.f32 %v1948, 0.5
    %v1983 = vmul.f32 %v1949, 0.5
    %v1984 = vmul.f32 %v1950, 0.5
    %v1985 = vmul.f32 %v1951, 0.5
    %v1986 = vmul.f32 %v1952, 0.5
    %v1987 = vmul.f32 %v1953, 0.5
    %v1988 = vmul.f32 %v1954, 0.5
    %v1989 = vmul.f32 %v1955, 0.5
    %v1990 = vmul.f32 %v1956, 0.5
    %v1991 = vmul.f32 %v1957, 0.5
    %v1992 = vmul.f32 %v1958, 0.5
    %v1993 = vmul.f32 %v1959, 0.5
    %v1994 = vmul.f32 %v1960, 0.5
    %v1995 = vmul.f32 %v1927, 0.044715
    %v1996 = vmul.f32 %v1928, 0.044715
    %v1997 = vmul.f32 %v1929, 0.044715
    %v1998 = vmul.f32 %v1930, 0.044715
    %v1999 = vmul.f32 %v1931, 0.044715
    %v2000 = vmul.f32 %v1932, 0.044715
    %v2001 = vmul.f32 %v1933, 0.044715
    %v2002 = vmul.f32 %v1934, 0.044715
    %v2003 = vmul.f32 %v1935, 0.044715
    %v2004 = vmul.f32 %v1936, 0.044715
    %v2005 = vmul.f32 %v1937, 0.044715
    %v2006 = vmul.f32 %v1938, 0.044715
    %v2007 = vmul.f32 %v1939, 0.044715
    %v2008 = vmul.f32 %v1940, 0.044715
    %v2009 = vmul.f32 %v1941, 0.044715
    %v2010 = vmul.f32 %v1942, 0.044715
    %v2011 = vmul.f32 %v1943, 0.044715
    %v2012 = vmul.f32 %v1944, 0.044715
    %v2013 = vmul.f32 %v1945, 0.044715
    %v2014 = vmul.f32 %v1946, 0.044715
    %v2015 = vmul.f32 %v1947, 0.044715
    %v2016 = vmul.f32 %v1948, 0.044715
    %v2017 = vmul.f32 %v1949, 0.044715
    %v2018 = vmul.f32 %v1950, 0.044715
    %v2019 = vmul.f32 %v1951, 0.044715
    %v2020 = vmul.f32 %v1952, 0.044715
    %v2021 = vmul.f32 %v1953, 0.044715
    %v2022 = vmul.f32 %v1954, 0.044715
    %v2023 = vmul.f32 %v1955, 0.044715
    %v2024 = vmul.f32 %v1956, 0.044715
    %v2025 = vmul.f32 %v1957, 0.044715
    %v2026 = vmul.f32 %v1958, 0.044715
    %v2027 = vmul.f32 %v1959, 0.044715
    %v2028 = vmul.f32 %v1960, 0.044715
    %v2029 = vmul.f32 %v1995, %v1927
    %v2030 = vmul.f32 %v1996, %v1928
    %v2031 = vmul.f32 %v1997, %v1929
    %v2032 = vmul.f32 %v1998, %v1930
    %v2033 = vmul.f32 %v1999, %v1931
    %v2034 = vmul.f32 %v2000, %v1932
    %v2035 = vmul.f32 %v2001, %v1933
    %v2036 = vmul.f32 %v2002, %v1934
    %v2037 = vmul.f32 %v2003, %v1935
    %v2038 = vmul.f32 %v2004, %v1936
    %v2039 = vmul.f32 %v2005, %v1937
    %v2040 = vmul.f32 %v2006, %v1938
    %v2041 = vmul.f32 %v2007, %v1939
    %v2042 = vmul.f32 %v2008, %v1940
    %v2043 = vmul.f32 %v2009, %v1941
    %v2044 = vmul.f32 %v2010, %v1942
    %v2045 = vmul.f32 %v2011, %v1943
    %v2046 = vmul.f32 %v2012, %v1944
    %v2047 = vmul.f32 %v2013, %v1945
    %v2048 = vmul.f32 %v2014, %v1946
    %v2049 = vmul.f32 %v2015, %v1947
    %v2050 = vmul.f32 %v2016, %v1948
    %v2051 = vmul.f32 %v2017, %v1949
    %v2052 = vmul.f32 %v2018, %v1950
    %v2053 = vmul.f32 %v2019, %v1951
    %v2054 = vmul.f32 %v2020, %v1952
    %v2055 = vmul.f32 %v2021, %v1953
    %v2056 = vmul.f32 %v2022, %v1954
    %v2057 = vmul.f32 %v2023, %v1955
    %v2058 = vmul.f32 %v2024, %v1956
    %v2059 = vmul.f32 %v2025, %v1957
    %v2060 = vmul.f32 %v2026, %v1958
    %v2061 = vmul.f32 %v2027, %v1959
    %v2062 = vmul.f32 %v2028, %v1960
    %v2063 = vmul.f32 %v2029, %v1927
    %v2064 = vmul.f32 %v2030, %v1928
    %v2065 = vmul.f32 %v2031, %v1929
    %v2066 = vmul.f32 %v2032, %v1930
    %v2067 = vmul.f32 %v2033, %v1931
    %v2068 = vmul.f32 %v2034, %v1932
    %v2069 = vmul.f32 %v2035, %v1933
    %v2070 = vmul.f32 %v2036, %v1934
    %v2071 = vmul.f32 %v2037, %v1935
    %v2072 = vmul.f32 %v2038, %v1936
    %v2073 = vmul.f32 %v2039, %v1937
    %v2074 = vmul.f32 %v2040, %v1938
    %v2075 = vmul.f32 %v2041, %v1939
    %v2076 = vmul.f32 %v2042, %v1940
    %v2077 = vmul.f32 %v2043, %v1941
    %v2078 = vmul.f32 %v2044, %v1942
    %v2079 = vmul.f32 %v2045, %v1943
    %v2080 = vmul.f32 %v2046, %v1944
    %v2081 = vmul.f32 %v2047, %v1945
    %v2082 = vmul.f32 %v2048, %v1946
    %v2083 = vmul.f32 %v2049, %v1947
    %v2084 = vmul.f32 %v2050, %v1948
    %v2085 = vmul.f32 %v2051, %v1949
    %v2086 = vmul.f32 %v2052, %v1950
    %v2087 = vmul.f32 %v2053, %v1951
    %v2088 = vmul.f32 %v2054, %v1952
    %v2089 = vmul.f32 %v2055, %v1953
    %v2090 = vmul.f32 %v2056, %v1954
    %v2091 = vmul.f32 %v2057, %v1955
    %v2092 = vmul.f32 %v2058, %v1956
    %v2093 = vmul.f32 %v2059, %v1957
    %v2094 = vmul.f32 %v2060, %v1958
    %v2095 = vmul.f32 %v2061, %v1959
    %v2096 = vmul.f32 %v2062, %v1960
    %v2097 = vadd.f32 %v1927, %v2063
    %v2098 = vadd.f32 %v1928, %v2064
    %v2099 = vadd.f32 %v1929, %v2065
    %v2100 = vadd.f32 %v1930, %v2066
    %v2101 = vadd.f32 %v1931, %v2067
    %v2102 = vadd.f32 %v1932, %v2068
    %v2103 = vadd.f32 %v1933, %v2069
    %v2104 = vadd.f32 %v1934, %v2070
    %v2105 = vadd.f32 %v1935, %v2071
    %v2106 = vadd.f32 %v1936, %v2072
    %v2107 = vadd.f32 %v1937, %v2073
    %v2108 = vadd.f32 %v1938, %v2074
    %v2109 = vadd.f32 %v1939, %v2075
    %v2110 = vadd.f32 %v1940, %v2076
    %v2111 = vadd.f32 %v1941, %v2077
    %v2112 = vadd.f32 %v1942, %v2078
    %v2113 = vadd.f32 %v1943, %v2079
    %v2114 = vadd.f32 %v1944, %v2080
    %v2115 = vadd.f32 %v1945, %v2081
    %v2116 = vadd.f32 %v1946, %v2082
    %v2117 = vadd.f32 %v1947, %v2083
    %v2118 = vadd.f32 %v1948, %v2084
    %v2119 = vadd.f32 %v1949, %v2085
    %v2120 = vadd.f32 %v1950, %v2086
    %v2121 = vadd.f32 %v1951, %v2087
    %v2122 = vadd.f32 %v1952, %v2088
    %v2123 = vadd.f32 %v1953, %v2089
    %v2124 = vadd.f32 %v1954, %v2090
    %v2125 = vadd.f32 %v1955, %v2091
    %v2126 = vadd.f32 %v1956, %v2092
    %v2127 = vadd.f32 %v1957, %v2093
    %v2128 = vadd.f32 %v1958, %v2094
    %v2129 = vadd.f32 %v1959, %v2095
    %v2130 = vadd.f32 %v1960, %v2096
    %v2131 = vmul.f32 %v2097, 0.7978846
    %v2132 = vmul.f32 %v2098, 0.7978846
    %v2133 = vmul.f32 %v2099, 0.7978846
    %v2134 = vmul.f32 %v2100, 0.7978846
    %v2135 = vmul.f32 %v2101, 0.7978846
    %v2136 = vmul.f32 %v2102, 0.7978846
    %v2137 = vmul.f32 %v2103, 0.7978846
    %v2138 = vmul.f32 %v2104, 0.7978846
    %v2139 = vmul.f32 %v2105, 0.7978846
    %v2140 = vmul.f32 %v2106, 0.7978846
    %v2141 = vmul.f32 %v2107, 0.7978846
    %v2142 = vmul.f32 %v2108, 0.7978846
    %v2143 = vmul.f32 %v2109, 0.7978846
    %v2144 = vmul.f32 %v2110, 0.7978846
    %v2145 = vmul.f32 %v2111, 0.7978846
    %v2146 = vmul.f32 %v2112, 0.7978846
    %v2147 = vmul.f32 %v2113, 0.7978846
    %v2148 = vmul.f32 %v2114, 0.7978846
    %v2149 = vmul.f32 %v2115, 0.7978846
    %v2150 = vmul.f32 %v2116, 0.7978846
    %v2151 = vmul.f32 %v2117, 0.7978846
    %v2152 = vmul.f32 %v2118, 0.7978846
    %v2153 = vmul.f32 %v2119, 0.7978846
    %v2154 = vmul.f32 %v2120, 0.7978846
    %v2155 = vmul.f32 %v2121, 0.7978846
    %v2156 = vmul.f32 %v2122, 0.7978846
    %v2157 = vmul.f32 %v2123, 0.7978846
    %v2158 = vmul.f32 %v2124, 0.7978846
    %v2159 = vmul.f32 %v2125, 0.7978846
    %v2160 = vmul.f32 %v2126, 0.7978846
    %v2161 = vmul.f32 %v2127, 0.7978846
    %v2162 = vmul.f32 %v2128, 0.7978846
    %v2163 = vmul.f32 %v2129, 0.7978846
    %v2164 = vmul.f32 %v2130, 0.7978846
    %v2165 = vtanh.pop %v2131
    %v2166 = vtanh.pop %v2132
    %v2167 = vtanh.pop %v2133
    %v2168 = vtanh.pop %v2134
    %v2169 = vtanh.pop %v2135
    %v2170 = vtanh.pop %v2136
    %v2171 = vtanh.pop %v2137
    %v2172 = vtanh.pop %v2138
    %v2173 = vtanh.pop %v2139
    %v2174 = vtanh.pop %v2140
    %v2175 = vtanh.pop %v2141
    %v2176 = vtanh.pop %v2142
    %v2177 = vtanh.pop %v2143
    %v2178 = vtanh.pop %v2144
    %v2179 = vtanh.pop %v2145
    %v2180 = vtanh.pop %v2146
    %v2181 = vtanh.pop %v2147
    %v2182 = vtanh.pop %v2148
    %v2183 = vtanh.pop %v2149
    %v2184 = vtanh.pop %v2150
    %v2185 = vtanh.pop %v2151
    %v2186 = vtanh.pop %v2152
    %v2187 = vtanh.pop %v2153
    %v2188 = vtanh.pop %v2154
    %v2189 = vtanh.pop %v2155
    %v2190 = vtanh.pop %v2156
    %v2191 = vtanh.pop %v2157
    %v2192 = vtanh.pop %v2158
    %v2193 = vtanh.pop %v2159
    %v2194 = vtanh.pop %v2160
    %v2195 = vtanh.pop %v2161
    %v2196 = vtanh.pop %v2162
    %v2197 = vtanh.pop %v2163
    %v2198 = vtanh.pop %v2164
    %v2199 = vadd.f32 %v2165, 1.0
    %v2200 = vadd.f32 %v2166, 1.0
    %v2201 = vadd.f32 %v2167, 1.0
    %v2202 = vadd.f32 %v2168, 1.0
    %v2203 = vadd.f32 %v2169, 1.0
    %v2204 = vadd.f32 %v2170, 1.0
    %v2205 = vadd.f32 %v2171, 1.0
    %v2206 = vadd.f32 %v2172, 1.0
    %v2207 = vadd.f32 %v2173, 1.0
    %v2208 = vadd.f32 %v2174, 1.0
    %v2209 = vadd.f32 %v2175, 1.0
    %v2210 = vadd.f32 %v2176, 1.0
    %v2211 = vadd.f32 %v2177, 1.0
    %v2212 = vadd.f32 %v2178, 1.0
    %v2213 = vadd.f32 %v2179, 1.0
    %v2214 = vadd.f32 %v2180, 1.0
    %v2215 = vadd.f32 %v2181, 1.0
    %v2216 = vadd.f32 %v2182, 1.0
    %v2217 = vadd.f32 %v2183, 1.0
    %v2218 = vadd.f32 %v2184, 1.0
    %v2219 = vadd.f32 %v2185, 1.0
    %v2220 = vadd.f32 %v2186, 1.0
    %v2221 = vadd.f32 %v2187, 1.0
    %v2222 = vadd.f32 %v2188, 1.0
    %v2223 = vadd.f32 %v2189, 1.0
    %v2224 = vadd.f32 %v2190, 1.0
    %v2225 = vadd.f32 %v2191, 1.0
    %v2226 = vadd.f32 %v2192, 1.0
    %v2227 = vadd.f32 %v2193, 1.0
    %v2228 = vadd.f32 %v2194, 1.0
    %v2229 = vadd.f32 %v2195, 1.0
    %v2230 = vadd.f32 %v2196, 1.0
    %v2231 = vadd.f32 %v2197, 1.0
    %v2232 = vadd.f32 %v2198, 1.0
    %v2233 = vmul.f32 %v1961, %v2199
    %v2234 = vmul.f32 %v1962, %v2200
    %v2235 = vmul.f32 %v1963, %v2201
    %v2236 = vmul.f32 %v1964, %v2202
    %v2237 = vmul.f32 %v1965, %v2203
    %v2238 = vmul.f32 %v1966, %v2204
    %v2239 = vmul.f32 %v1967, %v2205
    %v2240 = vmul.f32 %v1968, %v2206
    %v2241 = vmul.f32 %v1969, %v2207
    %v2242 = vmul.f32 %v1970, %v2208
    %v2243 = vmul.f32 %v1971, %v2209
    %v2244 = vmul.f32 %v1972, %v2210
    %v2245 = vmul.f32 %v1973, %v2211
    %v2246 = vmul.f32 %v1974, %v2212
    %v2247 = vmul.f32 %v1975, %v2213
    %v2248 = vmul.f32 %v1976, %v2214
    %v2249 = vmul.f32 %v1977, %v2215
    %v2250 = vmul.f32 %v1978, %v2216
    %v2251 = vmul.f32 %v1979, %v2217
    %v2252 = vmul.f32 %v1980, %v2218
    %v2253 = vmul.f32 %v1981, %v2219
    %v2254 = vmul.f32 %v1982, %v2220
    %v2255 = vmul.f32 %v1983, %v2221
    %v2256 = vmul.f32 %v1984, %v2222
    %v2257 = vmul.f32 %v1985, %v2223
    %v2258 = vmul.f32 %v1986, %v2224
    %v2259 = vmul.f32 %v1987, %v2225
    %v2260 = vmul.f32 %v1988, %v2226
    %v2261 = vmul.f32 %v1989, %v2227
    %v2262 = vmul.f32 %v1990, %v2228
    %v2263 = vmul.f32 %v1991, %v2229
    %v2264 = vmul.f32 %v1992, %v2230
    %v2265 = vmul.f32 %v1993, %v2231
    %v2266 = vmul.f32 %v1994, %v2232
    %v2267 = vpack.c.bf16 %v2234, %v2233
    %v2268 = vpack.c.bf16 %v2236, %v2235
    %v2269 = vpack.c.bf16 %v2238, %v2237
    %v2270 = vpack.c.bf16 %v2240, %v2239
    %v2271 = vpack.c.bf16 %v2242, %v2241
    %v2272 = vpack.c.bf16 %v2244, %v2243
    %v2273 = vpack.c.bf16 %v2246, %v2245
    %v2274 = vpack.c.bf16 %v2248, %v2247
    %v2275 = vpack.c.bf16 %v2250, %v2249
    %v2276 = vpack.c.bf16 %v2252, %v2251
    %v2277 = vpack.c.bf16 %v2254, %v2253
    %v2278 = vpack.c.bf16 %v2256, %v2255
    %v2279 = vpack.c.bf16 %v2258, %v2257
    %v2280 = vpack.c.bf16 %v2260, %v2259
    %v2281 = vpack.c.bf16 %v2262, %v2261
    %v2282 = vpack.c.bf16 %v2264, %v2263
    %v2283 = vpack.c.bf16 %v2266, %v2265
    %v2284 = vld [vmem:[#allocation2] sm:$0xff]
    %v2285 = vld [vmem:[#allocation2 + $0x8] sm:$0xf]
    %v2286 = vld [vmem:[#allocation2 + $0xc] sm:$0xff]
    %v2287 = vld [vmem:[#allocation2 + $0x14] sm:$0xf]
    %v2288 = vld [vmem:[#allocation2 + $0x18] sm:$0xff]
    %v2289 = vld [vmem:[#allocation2 + $0x20] sm:$0xf]
    %v2290 = vld [vmem:[#allocation2 + $0x24] sm:$0xff]
    %v2291 = vld [vmem:[#allocation2 + $0x2c] sm:$0xf]
    %v2292 = vld [vmem:[#allocation2 + $0x30] sm:$0xff]
    %v2293 = vld [vmem:[#allocation2 + $0x38] sm:$0xf]
    %v2294 = vld [vmem:[#allocation2 + $0x3c] sm:$0xff]
    %v2295 = vld [vmem:[#allocation2 + $0x44] sm:$0xf]
    %v2296 = vld [vmem:[#allocation2 + $0x48] sm:$0xff]
    %v2297 = vld [vmem:[#allocation2 + $0x50] sm:$0xf]
    %v2298 = vld [vmem:[#allocation2 + $0x54] sm:$0xff]
    %v2299 = vld [vmem:[#allocation2 + $0x5c] sm:$0xf]
    %v2300 = vld [vmem:[#allocation2 + $0x60] sm:$0x33]
    %v2301 = vld [vmem:[#allocation2 + $0x68] sm:$0x3]
    %v2320 = vunpack.c.l.b16 %v2284
    %v2321 = vunpack.c.h.b16 %v2284
    %v2322 = vunpack.c.l.b16 %v2285
    %v2323 = vunpack.c.l.b16 %v2286
    %v2324 = vunpack.c.h.b16 %v2286
    %v2325 = vunpack.c.l.b16 %v2287
    %v2326 = vunpack.c.l.b16 %v2288
    %v2327 = vunpack.c.h.b16 %v2288
    %v2328 = vunpack.c.l.b16 %v2289
    %v2329 = vunpack.c.l.b16 %v2290
    %v2330 = vunpack.c.h.b16 %v2290
    %v2331 = vunpack.c.l.b16 %v2291
    %v2332 = vunpack.c.l.b16 %v2292
    %v2333 = vunpack.c.h.b16 %v2292
    %v2334 = vunpack.c.l.b16 %v2293
    %v2335 = vunpack.c.l.b16 %v2294
    %v2336 = vunpack.c.h.b16 %v2294
    %v2337 = vunpack.c.l.b16 %v2295
    %v2338 = vunpack.c.l.b16 %v2296
    %v2339 = vunpack.c.h.b16 %v2296
    %v2340 = vunpack.c.l.b16 %v2297
    %v2341 = vunpack.c.l.b16 %v2298
    %v2342 = vunpack.c.h.b16 %v2298
    %v2343 = vunpack.c.l.b16 %v2299
    %v2344 = vunpack.c.l.b16 %v2300
    %v2345 = vunpack.c.h.b16 %v2300
    %v2346 = vunpack.c.l.b16 %v2301
    %v2347 = vpack.c.b16 %v2323, %v2320
    %v2348 = vpack.c.b16 %v2324, %v2321
    %v2349 = vpack.c.b16 %v2325, %v2322
    %v2350 = vpack.c.b16 %v2329, %v2326
    %v2351 = vpack.c.b16 %v2330, %v2327
    %v2352 = vpack.c.b16 %v2331, %v2328
    %v2353 = vpack.c.b16 %v2335, %v2332
    %v2354 = vpack.c.b16 %v2336, %v2333
    %v2355 = vpack.c.b16 %v2337, %v2334
    %v2356 = vpack.c.b16 %v2341, %v2338
    %v2357 = vpack.c.b16 %v2342, %v2339
    %v2358 = vpack.c.b16 %v2343, %v2340
    %v2359 = vpack.c.b16 %v2344, %v2344
    %v2360 = vpack.c.b16 %v2345, %v2345
    %v2361 = vpack.c.b16 %v2346, %v2346
    %vm2372 = vcmask 130048
    %v2374 = vsel %vm2372, %v2349, 0
    %v2377 = vsel %vm2372, %v2352, 0
    %v2380 = vsel %vm2372, %v2355, 0
    %v2383 = vsel %vm2372, %v2358, 0
    %v2386 = vsel %vm2372, %v2361, 0
    %2388 = vmatpush.bf16.msra.mxu0 %v2274
    %2389 = vmatpush.bf16.msra.mxu0 %v2273
    %2390 = vmatpush.bf16.msra.mxu0 %v2272
    %2391 = vmatpush.bf16.msra.mxu0 %v2271
    %2392 = vmatpush.bf16.msra.mxu0 %v2270
    %2393 = vmatpush.bf16.msra.mxu0 %v2269
    %2394 = vmatpush.bf16.msra.mxu0 %v2268
    %2395 = vmatpush.bf16.msra.mxu0 %v2267
    %2396 = vmatmul.bf16.gmra.mxu0 %v2347
    %v2397 = vpop.f32.mrf.mxu0
    %v2398 = vadd.f32 0.0, %v2397
    %v2399 = vpop.f32.mrf.mxu0
    %v2400 = vadd.f32 0.0, %v2399
    %2401 = vmatmul.bf16.gmra.mxu0 %v2350
    %v2402 = vpop.f32.mrf.mxu0
    %v2403 = vadd.f32 0.0, %v2402
    %v2404 = vpop.f32.mrf.mxu0
    %v2405 = vadd.f32 0.0, %v2404
    %2406 = vmatmul.bf16.gmra.mxu0 %v2353
    %v2407 = vpop.f32.mrf.mxu0
    %v2408 = vadd.f32 0.0, %v2407
    %v2409 = vpop.f32.mrf.mxu0
    %v2410 = vadd.f32 0.0, %v2409
    %2411 = vmatmul.bf16.gmra.mxu0 %v2356
    %v2412 = vpop.f32.mrf.mxu0
    %v2413 = vadd.f32 0.0, %v2412
    %v2414 = vpop.f32.mrf.mxu0
    %v2415 = vadd.f32 0.0, %v2414
    %2416 = vmatmul.bf16.gmra.mxu0 %v2359
    %v2417 = vpop.f32.mrf.mxu0
    %v2418 = vadd.f32 0.0, %v2417
    %v2419 = vpop.f32.mrf.mxu0
    %2420 = vdwg.mxu0
    %2421 = vmatpush.bf16.msra.mxu0 %v2282
    %2422 = vmatpush.bf16.msra.mxu0 %v2281
    %2423 = vmatpush.bf16.msra.mxu0 %v2280
    %2424 = vmatpush.bf16.msra.mxu0 %v2279
    %2425 = vmatpush.bf16.msra.mxu0 %v2278
    %2426 = vmatpush.bf16.msra.mxu0 %v2277
    %2427 = vmatpush.bf16.msra.mxu0 %v2276
    %2428 = vmatpush.bf16.msra.mxu0 %v2275
    %2429 = vmatmul.bf16.gmra.mxu0 %v2348
    %v2430 = vpop.f32.mrf.mxu0
    %v2431 = vadd.f32 %v2398, %v2430
    %v2432 = vpop.f32.mrf.mxu0
    %v2433 = vadd.f32 %v2400, %v2432
    %2434 = vmatmul.bf16.gmra.mxu0 %v2351
    %v2435 = vpop.f32.mrf.mxu0
    %v2436 = vadd.f32 %v2403, %v2435
    %v2437 = vpop.f32.mrf.mxu0
    %v2438 = vadd.f32 %v2405, %v2437
    %2439 = vmatmul.bf16.gmra.mxu0 %v2354
    %v2440 = vpop.f32.mrf.mxu0
    %v2441 = vadd.f32 %v2408, %v2440
    %v2442 = vpop.f32.mrf.mxu0
    %v2443 = vadd.f32 %v2410, %v2442
    %2444 = vmatmul.bf16.gmra.mxu0 %v2357
    %v2445 = vpop.f32.mrf.mxu0
    %v2446 = vadd.f32 %v2413, %v2445
    %v2447 = vpop.f32.mrf.mxu0
    %v2448 = vadd.f32 %v2415, %v2447
    %2449 = vmatmul.bf16.gmra.mxu0 %v2360
    %v2450 = vpop.f32.mrf.mxu0
    %v2451 = vadd.f32 %v2418, %v2450
    %v2452 = vpop.f32.mrf.mxu0
    %2453 = vdwg.mxu0
    %2454 = vmatpush.bf16.msra.mxu0 0
    %2455 = vmatpush.bf16.msra.mxu0 0
    %2456 = vmatpush.bf16.msra.mxu0 0
    %2457 = vmatpush.bf16.msra.mxu0 0
    %2458 = vmatpush.bf16.msra.mxu0 0
    %2459 = vmatpush.bf16.msra.mxu0 0
    %2460 = vmatpush.bf16.msra.mxu0 0
    %2461 = vmatpush.bf16.msra.mxu0 %v2283
    %2462 = vmatmul.bf16.gmra.mxu0 %v2374
    %v2463 = vpop.f32.mrf.mxu0
    %v2464 = vadd.f32 %v2431, %v2463
    %v2465 = vpop.f32.mrf.mxu0
    %v2466 = vadd.f32 %v2433, %v2465
    %2467 = vmatmul.bf16.gmra.mxu0 %v2377
    %v2468 = vpop.f32.mrf.mxu0
    %v2469 = vadd.f32 %v2436, %v2468
    %v2470 = vpop.f32.mrf.mxu0
    %v2471 = vadd.f32 %v2438, %v2470
    %2472 = vmatmul.bf16.gmra.mxu0 %v2380
    %v2473 = vpop.f32.mrf.mxu0
    %v2474 = vadd.f32 %v2441, %v2473
    %v2475 = vpop.f32.mrf.mxu0
    %v2476 = vadd.f32 %v2443, %v2475
    %2477 = vmatmul.bf16.gmra.mxu0 %v2383
    %v2478 = vpop.f32.mrf.mxu0
    %v2479 = vadd.f32 %v2446, %v2478
    %v2480 = vpop.f32.mrf.mxu0
    %v2481 = vadd.f32 %v2448, %v2480
    %2482 = vmatmul.bf16.gmra.mxu0 %v2386
    %v2483 = vpop.f32.mrf.mxu0
    %v2484 = vadd.f32 %v2451, %v2483
    %v2485 = vpop.f32.mrf.mxu0
    %2486 = vdwg.mxu0
    %v2487 = vpack.c.bf16 %v2466, %v2464
    %v2488 = vpack.c.bf16 %v2471, %v2469
    %v2489 = vpack.c.bf16 %v2476, %v2474
    %v2490 = vpack.c.bf16 %v2481, %v2479
    %v2491 = vpack.c.bf16 %v2484, %v2484
    %v2492 = vld [vmem:[%s4] sm:$0xf]
    %v2493 = vld [vmem:[%s4 + $0x4] sm:$0xf]
    %v2494 = vld [vmem:[%s4 + $0x8] sm:$0xf]
    %v2495 = vld [vmem:[%s4 + $0xc] sm:$0xf]
    %v2496 = vld [vmem:[%s4 + $0x10] sm:$0xf]
    %v2497 = vld [vmem:[%s4 + $0x14] sm:$0xf]
    %v2498 = vld [vmem:[%s4 + $0x18] sm:$0xf]
    %v2499 = vld [vmem:[%s4 + $0x1c] sm:$0xf]
    %s2500 = scalar_lea.vmem [#allocation2], 108
    %v2501 = vld [vmem:[%s2500] sm:$0xff]
    %v2502 = vld [vmem:[%s2500 + $0x8] sm:$0xf]
    %v2503 = vld [vmem:[%s2500 + $0xc] sm:$0xff]
    %v2504 = vld [vmem:[%s2500 + $0x14] sm:$0xf]
    %v2505 = vld [vmem:[%s2500 + $0x18] sm:$0xff]
    %v2506 = vld [vmem:[%s2500 + $0x20] sm:$0xf]
    %v2507 = vld [vmem:[%s2500 + $0x24] sm:$0xff]
    %v2508 = vld [vmem:[%s2500 + $0x2c] sm:$0xf]
    %v2509 = vld [vmem:[%s2500 + $0x30] sm:$0xff]
    %v2510 = vld [vmem:[%s2500 + $0x38] sm:$0xf]
    %v2511 = vld [vmem:[%s2500 + $0x3c] sm:$0xff]
    %v2512 = vld [vmem:[%s2500 + $0x44] sm:$0xf]
    %v2513 = vld [vmem:[%s2500 + $0x48] sm:$0xff]
    %v2514 = vld [vmem:[%s2500 + $0x50] sm:$0xf]
    %v2515 = vld [vmem:[%s2500 + $0x54] sm:$0xff]
    %v2516 = vld [vmem:[%s2500 + $0x5c] sm:$0xf]
    %v2517 = vld [vmem:[%s2500 + $0x60] sm:$0x33]
    %v2518 = vld [vmem:[%s2500 + $0x68] sm:$0x3]
    %v2537 = vunpack.c.l.b16 %v2501
    %v2538 = vunpack.c.h.b16 %v2501
    %v2539 = vunpack.c.l.b16 %v2502
    %v2540 = vunpack.c.l.b16 %v2503
    %v2541 = vunpack.c.h.b16 %v2503
    %v2542 = vunpack.c.l.b16 %v2504
    %v2543 = vunpack.c.l.b16 %v2505
    %v2544 = vunpack.c.h.b16 %v2505
    %v2545 = vunpack.c.l.b16 %v2506
    %v2546 = vunpack.c.l.b16 %v2507
    %v2547 = vunpack.c.h.b16 %v2507
    %v2548 = vunpack.c.l.b16 %v2508
    %v2549 = vunpack.c.l.b16 %v2509
    %v2550 = vunpack.c.h.b16 %v2509
    %v2551 = vunpack.c.l.b16 %v2510
    %v2552 = vunpack.c.l.b16 %v2511
    %v2553 = vunpack.c.h.b16 %v2511
    %v2554 = vunpack.c.l.b16 %v2512
    %v2555 = vunpack.c.l.b16 %v2513
    %v2556 = vunpack.c.h.b16 %v2513
    %v2557 = vunpack.c.l.b16 %v2514
    %v2558 = vunpack.c.l.b16 %v2515
    %v2559 = vunpack.c.h.b16 %v2515
    %v2560 = vunpack.c.l.b16 %v2516
    %v2561 = vunpack.c.l.b16 %v2517
    %v2562 = vunpack.c.h.b16 %v2517
    %v2563 = vunpack.c.l.b16 %v2518
    %v2564 = vpack.c.b16 %v2540, %v2537
    %v2565 = vpack.c.b16 %v2541, %v2538
    %v2566 = vpack.c.b16 %v2542, %v2539
    %v2567 = vpack.c.b16 %v2546, %v2543
    %v2568 = vpack.c.b16 %v2547, %v2544
    %v2569 = vpack.c.b16 %v2548, %v2545
    %v2570 = vpack.c.b16 %v2552, %v2549
    %v2571 = vpack.c.b16 %v2553, %v2550
    %v2572 = vpack.c.b16 %v2554, %v2551
    %v2573 = vpack.c.b16 %v2558, %v2555
    %v2574 = vpack.c.b16 %v2559, %v2556
    %v2575 = vpack.c.b16 %v2560, %v2557
    %v2576 = vpack.c.b16 %v2561, %v2561
    %v2577 = vpack.c.b16 %v2562, %v2562
    %v2578 = vpack.c.b16 %v2563, %v2563
    %v2590 = vsel %vm2372, %v2566, 0
    %v2593 = vsel %vm2372, %v2569, 0
    %v2596 = vsel %vm2372, %v2572, 0
    %v2599 = vsel %vm2372, %v2575, 0
    %v2602 = vsel %vm2372, %v2578, 0
    %2604 = vmatpush.bf16.msra.mxu0 %v2274
    %2605 = vmatpush.bf16.msra.mxu0 %v2273
    %2606 = vmatpush.bf16.msra.mxu0 %v2272
    %2607 = vmatpush.bf16.msra.mxu0 %v2271
    %2608 = vmatpush.bf16.msra.mxu0 %v2270
    %2609 = vmatpush.bf16.msra.mxu0 %v2269
    %2610 = vmatpush.bf16.msra.mxu0 %v2268
    %2611 = vmatpush.bf16.msra.mxu0 %v2267
    %2612 = vmatmul.bf16.gmra.mxu0 %v2564
    %v2613 = vpop.f32.mrf.mxu0
    %v2614 = vadd.f32 0.0, %v2613
    %v2615 = vpop.f32.mrf.mxu0
    %v2616 = vadd.f32 0.0, %v2615
    %2617 = vmatmul.bf16.gmra.mxu0 %v2567
    %v2618 = vpop.f32.mrf.mxu0
    %v2619 = vadd.f32 0.0, %v2618
    %v2620 = vpop.f32.mrf.mxu0
    %v2621 = vadd.f32 0.0, %v2620
    %2622 = vmatmul.bf16.gmra.mxu0 %v2570
    %v2623 = vpop.f32.mrf.mxu0
    %v2624 = vadd.f32 0.0, %v2623
    %v2625 = vpop.f32.mrf.mxu0
    %v2626 = vadd.f32 0.0, %v2625
    %2627 = vmatmul.bf16.gmra.mxu0 %v2573
    %v2628 = vpop.f32.mrf.mxu0
    %v2629 = vadd.f32 0.0, %v2628
    %v2630 = vpop.f32.mrf.mxu0
    %v2631 = vadd.f32 0.0, %v2630
    %2632 = vmatmul.bf16.gmra.mxu0 %v2576
    %v2633 = vpop.f32.mrf.mxu0
    %v2634 = vadd.f32 0.0, %v2633
    %v2635 = vpop.f32.mrf.mxu0
    %2636 = vdwg.mxu0
    %2637 = vmatpush.bf16.msra.mxu0 %v2282
    %2638 = vmatpush.bf16.msra.mxu0 %v2281
    %2639 = vmatpush.bf16.msra.mxu0 %v2280
    %2640 = vmatpush.bf16.msra.mxu0 %v2279
    %2641 = vmatpush.bf16.msra.mxu0 %v2278
    %2642 = vmatpush.bf16.msra.mxu0 %v2277
    %2643 = vmatpush.bf16.msra.mxu0 %v2276
    %2644 = vmatpush.bf16.msra.mxu0 %v2275
    %2645 = vmatmul.bf16.gmra.mxu0 %v2565
    %v2646 = vpop.f32.mrf.mxu0
    %v2647 = vadd.f32 %v2614, %v2646
    %v2648 = vpop.f32.mrf.mxu0
    %v2649 = vadd.f32 %v2616, %v2648
    %2650 = vmatmul.bf16.gmra.mxu0 %v2568
    %v2651 = vpop.f32.mrf.mxu0
    %v2652 = vadd.f32 %v2619, %v2651
    %v2653 = vpop.f32.mrf.mxu0
    %v2654 = vadd.f32 %v2621, %v2653
    %2655 = vmatmul.bf16.gmra.mxu0 %v2571
    %v2656 = vpop.f32.mrf.mxu0
    %v2657 = vadd.f32 %v2624, %v2656
    %v2658 = vpop.f32.mrf.mxu0
    %v2659 = vadd.f32 %v2626, %v2658
    %2660 = vmatmul.bf16.gmra.mxu0 %v2574
    %v2661 = vpop.f32.mrf.mxu0
    %v2662 = vadd.f32 %v2629, %v2661
    %v2663 = vpop.f32.mrf.mxu0
    %v2664 = vadd.f32 %v2631, %v2663
    %2665 = vmatmul.bf16.gmra.mxu0 %v2577
    %v2666 = vpop.f32.mrf.mxu0
    %v2667 = vadd.f32 %v2634, %v2666
    %v2668 = vpop.f32.mrf.mxu0
    %2669 = vdwg.mxu0
    %2670 = vmatpush.bf16.msra.mxu0 0
    %2671 = vmatpush.bf16.msra.mxu0 0
    %2672 = vmatpush.bf16.msra.mxu0 0
    %2673 = vmatpush.bf16.msra.mxu0 0
    %2674 = vmatpush.bf16.msra.mxu0 0
    %2675 = vmatpush.bf16.msra.mxu0 0
    %2676 = vmatpush.bf16.msra.mxu0 0
    %2677 = vmatpush.bf16.msra.mxu0 %v2283
    %2678 = vmatmul.bf16.gmra.mxu0 %v2590
    %v2679 = vpop.f32.mrf.mxu0
    %v2680 = vadd.f32 %v2647, %v2679
    %v2681 = vpop.f32.mrf.mxu0
    %v2682 = vadd.f32 %v2649, %v2681
    %2683 = vmatmul.bf16.gmra.mxu0 %v2593
    %v2684 = vpop.f32.mrf.mxu0
    %v2685 = vadd.f32 %v2652, %v2684
    %v2686 = vpop.f32.mrf.mxu0
    %v2687 = vadd.f32 %v2654, %v2686
    %2688 = vmatmul.bf16.gmra.mxu0 %v2596
    %v2689 = vpop.f32.mrf.mxu0
    %v2690 = vadd.f32 %v2657, %v2689
    %v2691 = vpop.f32.mrf.mxu0
    %v2692 = vadd.f32 %v2659, %v2691
    %2693 = vmatmul.bf16.gmra.mxu0 %v2599
    %v2694 = vpop.f32.mrf.mxu0
    %v2695 = vadd.f32 %v2662, %v2694
    %v2696 = vpop.f32.mrf.mxu0
    %v2697 = vadd.f32 %v2664, %v2696
    %2698 = vmatmul.bf16.gmra.mxu0 %v2602
    %v2699 = vpop.f32.mrf.mxu0
    %v2700 = vadd.f32 %v2667, %v2699
    %v2701 = vpop.f32.mrf.mxu0
    %2702 = vdwg.mxu0
    %v2703 = vpack.c.bf16 %v2682, %v2680
    %v2704 = vpack.c.bf16 %v2687, %v2685
    %v2705 = vpack.c.bf16 %v2692, %v2690
    %v2706 = vpack.c.bf16 %v2697, %v2695
    %v2707 = vpack.c.bf16 %v2700, %v2700
    %s2708 = scalar_lea.vmem %s4, 32
    %v2709 = vld [vmem:[%s2708] sm:$0xf]
    %v2710 = vld [vmem:[%s2708 + $0x4] sm:$0xf]
    %v2711 = vld [vmem:[%s2708 + $0x8] sm:$0xf]
    %v2712 = vld [vmem:[%s2708 + $0xc] sm:$0xf]
    %v2713 = vld [vmem:[%s2708 + $0x10] sm:$0xf]
    %v2714 = vld [vmem:[%s2708 + $0x14] sm:$0xf]
    %v2715 = vld [vmem:[%s2708 + $0x18] sm:$0xf]
    %v2716 = vld [vmem:[%s2708 + $0x1c] sm:$0xf]
    %v2725 = vunpack.c.l.b16 %v2709
    %v2726 = vunpack.c.l.b16 %v2710
    %v2727 = vunpack.c.l.b16 %v2711
    %v2728 = vunpack.c.l.b16 %v2712
    %v2729 = vunpack.c.l.b16 %v2713
    %v2730 = vunpack.c.l.b16 %v2714
    %v2731 = vunpack.c.l.b16 %v2715
    %v2732 = vunpack.c.l.b16 %v2716
    %v2733 = vpack.c.b16 %v2726, %v2725
    %v2734 = vpack.c.b16 %v2728, %v2727
    %v2735 = vpack.c.b16 %v2730, %v2729
    %v2736 = vpack.c.b16 %v2732, %v2731
    %vm2741 = vcmask 523264
    %v2743 = vsel %vm2741, %v2703, 0
    %v2746 = vsel %vm2741, %v2704, 0
    %v2749 = vsel %vm2741, %v2705, 0
    %v2752 = vsel %vm2741, %v2706, 0
    %v2755 = vsel %vm2741, %v2707, 0
    %2757 = vmatpush.bf16.msra.mxu0 0
    %2758 = vmatpush.bf16.msra.mxu0 0
    %2759 = vmatpush.bf16.msra.mxu0 0
    %2760 = vmatpush.bf16.msra.mxu0 0
    %2761 = vmatpush.bf16.msra.mxu0 %v2736
    %2762 = vmatpush.bf16.msra.mxu0 %v2735
    %2763 = vmatpush.bf16.msra.mxu0 %v2734
    %2764 = vmatpush.bf16.msra.mxu0 %v2733
    %2765 = vmatmul.bf16.gmra.mxu0 %v2743
    %v2766 = vpop.f32.mrf.mxu0
    %v2767 = vadd.f32 0.0, %v2766
    %v2768 = vpop.f32.mrf.mxu0
    %v2769 = vadd.f32 0.0, %v2768
    %2770 = vmatmul.bf16.gmra.mxu0 %v2746
    %v2771 = vpop.f32.mrf.mxu0
    %v2772 = vadd.f32 0.0, %v2771
    %v2773 = vpop.f32.mrf.mxu0
    %v2774 = vadd.f32 0.0, %v2773
    %2775 = vmatmul.bf16.gmra.mxu0 %v2749
    %v2776 = vpop.f32.mrf.mxu0
    %v2777 = vadd.f32 0.0, %v2776
    %v2778 = vpop.f32.mrf.mxu0
    %v2779 = vadd.f32 0.0, %v2778
    %2780 = vmatmul.bf16.gmra.mxu0 %v2752
    %v2781 = vpop.f32.mrf.mxu0
    %v2782 = vadd.f32 0.0, %v2781
    %v2783 = vpop.f32.mrf.mxu0
    %v2784 = vadd.f32 0.0, %v2783
    %2785 = vmatmul.bf16.gmra.mxu0 %v2755
    %v2786 = vpop.f32.mrf.mxu0
    %v2787 = vadd.f32 0.0, %v2786
    %v2788 = vpop.f32.mrf.mxu0
    %2789 = vdwg.mxu0
    %v2798 = vunpack.c.l.b16 %v2492
    %v2799 = vunpack.c.l.b16 %v2493
    %v2800 = vunpack.c.l.b16 %v2494
    %v2801 = vunpack.c.l.b16 %v2495
    %v2802 = vunpack.c.l.b16 %v2496
    %v2803 = vunpack.c.l.b16 %v2497
    %v2804 = vunpack.c.l.b16 %v2498
    %v2805 = vunpack.c.l.b16 %v2499
    %v2806 = vpack.c.b16 %v2799, %v2798
    %v2807 = vpack.c.b16 %v2801, %v2800
    %v2808 = vpack.c.b16 %v2803, %v2802
    %v2809 = vpack.c.b16 %v2805, %v2804
    %v2815 = vsel %vm2741, %v2487, 0
    %v2818 = vsel %vm2741, %v2488, 0
    %v2821 = vsel %vm2741, %v2489, 0
    %v2824 = vsel %vm2741, %v2490, 0
    %v2827 = vsel %vm2741, %v2491, 0
    %2829 = vmatpush.bf16.msra.mxu0 0
    %2830 = vmatpush.bf16.msra.mxu0 0
    %2831 = vmatpush.bf16.msra.mxu0 0
    %2832 = vmatpush.bf16.msra.mxu0 0
    %2833 = vmatpush.bf16.msra.mxu0 %v2809
    %2834 = vmatpush.bf16.msra.mxu0 %v2808
    %2835 = vmatpush.bf16.msra.mxu0 %v2807
    %2836 = vmatpush.bf16.msra.mxu0 %v2806
    %2837 = vmatmul.bf16.gmra.mxu0 %v2815
    %v2838 = vpop.f32.mrf.mxu0
    %v2839 = vadd.f32 %v2767, %v2838
    %v2840 = vpop.f32.mrf.mxu0
    %v2841 = vadd.f32 %v2769, %v2840
    %2842 = vmatmul.bf16.gmra.mxu0 %v2818
    %v2843 = vpop.f32.mrf.mxu0
    %v2844 = vadd.f32 %v2772, %v2843
    %v2845 = vpop.f32.mrf.mxu0
    %v2846 = vadd.f32 %v2774, %v2845
    %2847 = vmatmul.bf16.gmra.mxu0 %v2821
    %v2848 = vpop.f32.mrf.mxu0
    %v2849 = vadd.f32 %v2777, %v2848
    %v2850 = vpop.f32.mrf.mxu0
    %v2851 = vadd.f32 %v2779, %v2850
    %2852 = vmatmul.bf16.gmra.mxu0 %v2824
    %v2853 = vpop.f32.mrf.mxu0
    %v2854 = vadd.f32 %v2782, %v2853
    %v2855 = vpop.f32.mrf.mxu0
    %v2856 = vadd.f32 %v2784, %v2855
    %2857 = vmatmul.bf16.gmra.mxu0 %v2827
    %v2858 = vpop.f32.mrf.mxu0
    %v2859 = vadd.f32 %v2787, %v2858
    %v2860 = vpop.f32.mrf.mxu0
    %2861 = vdwg.mxu0
    %s2862 = scalar_lea.vmem [#allocation2], 216
    %v2863 = vld [vmem:[%s2862] sm:$0xff]
    %v2864 = vld [vmem:[%s2862 + $0x8] sm:$0xf]
    %v2865 = vld [vmem:[%s2862 + $0xc] sm:$0xff]
    %v2866 = vld [vmem:[%s2862 + $0x14] sm:$0xf]
    %v2867 = vld [vmem:[%s2862 + $0x18] sm:$0xff]
    %v2868 = vld [vmem:[%s2862 + $0x20] sm:$0xf]
    %v2869 = vld [vmem:[%s2862 + $0x24] sm:$0xff]
    %v2870 = vld [vmem:[%s2862 + $0x2c] sm:$0xf]
    %v2871 = vld [vmem:[%s2862 + $0x30] sm:$0xff]
    %v2872 = vld [vmem:[%s2862 + $0x38] sm:$0xf]
    %v2873 = vld [vmem:[%s2862 + $0x3c] sm:$0xff]
    %v2874 = vld [vmem:[%s2862 + $0x44] sm:$0xf]
    %v2875 = vld [vmem:[%s2862 + $0x48] sm:$0xff]
    %v2876 = vld [vmem:[%s2862 + $0x50] sm:$0xf]
    %v2877 = vld [vmem:[%s2862 + $0x54] sm:$0xff]
    %v2878 = vld [vmem:[%s2862 + $0x5c] sm:$0xf]
    %v2879 = vld [vmem:[%s2862 + $0x60] sm:$0x33]
    %v2880 = vld [vmem:[%s2862 + $0x68] sm:$0x3]
    %v2899 = vunpack.c.l.b16 %v2863
    %v2900 = vunpack.c.h.b16 %v2863
    %v2901 = vunpack.c.l.b16 %v2864
    %v2902 = vunpack.c.l.b16 %v2865
    %v2903 = vunpack.c.h.b16 %v2865
    %v2904 = vunpack.c.l.b16 %v2866
    %v2905 = vunpack.c.l.b16 %v2867
    %v2906 = vunpack.c.h.b16 %v2867
    %v2907 = vunpack.c.l.b16 %v2868
    %v2908 = vunpack.c.l.b16 %v2869
    %v2909 = vunpack.c.h.b16 %v2869
    %v2910 = vunpack.c.l.b16 %v2870
    %v2911 = vunpack.c.l.b16 %v2871
    %v2912 = vunpack.c.h.b16 %v2871
    %v2913 = vunpack.c.l.b16 %v2872
    %v2914 = vunpack.c.l.b16 %v2873
    %v2915 = vunpack.c.h.b16 %v2873
    %v2916 = vunpack.c.l.b16 %v2874
    %v2917 = vunpack.c.l.b16 %v2875
    %v2918 = vunpack.c.h.b16 %v2875
    %v2919 = vunpack.c.l.b16 %v2876
    %v2920 = vunpack.c.l.b16 %v2877
    %v2921 = vunpack.c.h.b16 %v2877
    %v2922 = vunpack.c.l.b16 %v2878
    %v2923 = vunpack.c.l.b16 %v2879
    %v2924 = vunpack.c.h.b16 %v2879
    %v2925 = vunpack.c.l.b16 %v2880
    %v2926 = vpack.c.b16 %v2902, %v2899
    %v2927 = vpack.c.b16 %v2903, %v2900
    %v2928 = vpack.c.b16 %v2904, %v2901
    %v2929 = vpack.c.b16 %v2908, %v2905
    %v2930 = vpack.c.b16 %v2909, %v2906
    %v2931 = vpack.c.b16 %v2910, %v2907
    %v2932 = vpack.c.b16 %v2914, %v2911
    %v2933 = vpack.c.b16 %v2915, %v2912
    %v2934 = vpack.c.b16 %v2916, %v2913
    %v2935 = vpack.c.b16 %v2920, %v2917
    %v2936 = vpack.c.b16 %v2921, %v2918
    %v2937 = vpack.c.b16 %v2922, %v2919
    %v2938 = vpack.c.b16 %v2923, %v2923
    %v2939 = vpack.c.b16 %v2924, %v2924
    %v2940 = vpack.c.b16 %v2925, %v2925
    %v2952 = vsel %vm2372, %v2928, 0
    %v2955 = vsel %vm2372, %v2931, 0
    %v2958 = vsel %vm2372, %v2934, 0
    %v2961 = vsel %vm2372, %v2937, 0
    %v2964 = vsel %vm2372, %v2940, 0
    %2966 = vmatpush.bf16.msra.mxu0 %v2274
    %2967 = vmatpush.bf16.msra.mxu0 %v2273
    %2968 = vmatpush.bf16.msra.mxu0 %v2272
    %2969 = vmatpush.bf16.msra.mxu0 %v2271
    %2970 = vmatpush.bf16.msra.mxu0 %v2270
    %2971 = vmatpush.bf16.msra.mxu0 %v2269
    %2972 = vmatpush.bf16.msra.mxu0 %v2268
    %2973 = vmatpush.bf16.msra.mxu0 %v2267
    %2974 = vmatmul.bf16.gmra.mxu0 %v2926
    %v2975 = vpop.f32.mrf.mxu0
    %v2976 = vadd.f32 0.0, %v2975
    %v2977 = vpop.f32.mrf.mxu0
    %v2978 = vadd.f32 0.0, %v2977
    %2979 = vmatmul.bf16.gmra.mxu0 %v2929
    %v2980 = vpop.f32.mrf.mxu0
    %v2981 = vadd.f32 0.0, %v2980
    %v2982 = vpop.f32.mrf.mxu0
    %v2983 = vadd.f32 0.0, %v2982
    %2984 = vmatmul.bf16.gmra.mxu0 %v2932
    %v2985 = vpop.f32.mrf.mxu0
    %v2986 = vadd.f32 0.0, %v2985
    %v2987 = vpop.f32.mrf.mxu0
    %v2988 = vadd.f32 0.0, %v2987
    %2989 = vmatmul.bf16.gmra.mxu0 %v2935
    %v2990 = vpop.f32.mrf.mxu0
    %v2991 = vadd.f32 0.0, %v2990
    %v2992 = vpop.f32.mrf.mxu0
    %v2993 = vadd.f32 0.0, %v2992
    %2994 = vmatmul.bf16.gmra.mxu0 %v2938
    %v2995 = vpop.f32.mrf.mxu0
    %v2996 = vadd.f32 0.0, %v2995
    %v2997 = vpop.f32.mrf.mxu0
    %2998 = vdwg.mxu0
    %2999 = vmatpush.bf16.msra.mxu0 %v2282
    %3000 = vmatpush.bf16.msra.mxu0 %v2281
    %3001 = vmatpush.bf16.msra.mxu0 %v2280
    %3002 = vmatpush.bf16.msra.mxu0 %v2279
    %3003 = vmatpush.bf16.msra.mxu0 %v2278
    %3004 = vmatpush.bf16.msra.mxu0 %v2277
    %3005 = vmatpush.bf16.msra.mxu0 %v2276
    %3006 = vmatpush.bf16.msra.mxu0 %v2275
    %3007 = vmatmul.bf16.gmra.mxu0 %v2927
    %v3008 = vpop.f32.mrf.mxu0
    %v3009 = vadd.f32 %v2976, %v3008
    %v3010 = vpop.f32.mrf.mxu0
    %v3011 = vadd.f32 %v2978, %v3010
    %3012 = vmatmul.bf16.gmra.mxu0 %v2930
    %v3013 = vpop.f32.mrf.mxu0
    %v3014 = vadd.f32 %v2981, %v3013
    %v3015 = vpop.f32.mrf.mxu0
    %v3016 = vadd.f32 %v2983, %v3015
    %3017 = vmatmul.bf16.gmra.mxu0 %v2933
    %v3018 = vpop.f32.mrf.mxu0
    %v3019 = vadd.f32 %v2986, %v3018
    %v3020 = vpop.f32.mrf.mxu0
    %v3021 = vadd.f32 %v2988, %v3020
    %3022 = vmatmul.bf16.gmra.mxu0 %v2936
    %v3023 = vpop.f32.mrf.mxu0
    %v3024 = vadd.f32 %v2991, %v3023
    %v3025 = vpop.f32.mrf.mxu0
    %v3026 = vadd.f32 %v2993, %v3025
    %3027 = vmatmul.bf16.gmra.mxu0 %v2939
    %v3028 = vpop.f32.mrf.mxu0
    %v3029 = vadd.f32 %v2996, %v3028
    %v3030 = vpop.f32.mrf.mxu0
    %3031 = vdwg.mxu0
    %3032 = vmatpush.bf16.msra.mxu0 0
    %3033 = vmatpush.bf16.msra.mxu0 0
    %3034 = vmatpush.bf16.msra.mxu0 0
    %3035 = vmatpush.bf16.msra.mxu0 0
    %3036 = vmatpush.bf16.msra.mxu0 0
    %3037 = vmatpush.bf16.msra.mxu0 0
    %3038 = vmatpush.bf16.msra.mxu0 0
    %3039 = vmatpush.bf16.msra.mxu0 %v2283
    %3040 = vmatmul.bf16.gmra.mxu0 %v2952
    %v3041 = vpop.f32.mrf.mxu0
    %v3042 = vadd.f32 %v3009, %v3041
    %v3043 = vpop.f32.mrf.mxu0
    %v3044 = vadd.f32 %v3011, %v3043
    %3045 = vmatmul.bf16.gmra.mxu0 %v2955
    %v3046 = vpop.f32.mrf.mxu0
    %v3047 = vadd.f32 %v3014, %v3046
    %v3048 = vpop.f32.mrf.mxu0
    %v3049 = vadd.f32 %v3016, %v3048
    %3050 = vmatmul.bf16.gmra.mxu0 %v2958
    %v3051 = vpop.f32.mrf.mxu0
    %v3052 = vadd.f32 %v3019, %v3051
    %v3053 = vpop.f32.mrf.mxu0
    %v3054 = vadd.f32 %v3021, %v3053
    %3055 = vmatmul.bf16.gmra.mxu0 %v2961
    %v3056 = vpop.f32.mrf.mxu0
    %v3057 = vadd.f32 %v3024, %v3056
    %v3058 = vpop.f32.mrf.mxu0
    %v3059 = vadd.f32 %v3026, %v3058
    %3060 = vmatmul.bf16.gmra.mxu0 %v2964
    %v3061 = vpop.f32.mrf.mxu0
    %v3062 = vadd.f32 %v3029, %v3061
    %v3063 = vpop.f32.mrf.mxu0
    %3064 = vdwg.mxu0
    %v3065 = vpack.c.bf16 %v3044, %v3042
    %v3066 = vpack.c.bf16 %v3049, %v3047
    %v3067 = vpack.c.bf16 %v3054, %v3052
    %v3068 = vpack.c.bf16 %v3059, %v3057
    %v3069 = vpack.c.bf16 %v3062, %v3062
    %s3070 = scalar_lea.vmem %s4, 64
    %v3071 = vld [vmem:[%s3070] sm:$0xf]
    %v3072 = vld [vmem:[%s3070 + $0x4] sm:$0xf]
    %v3073 = vld [vmem:[%s3070 + $0x8] sm:$0xf]
    %v3074 = vld [vmem:[%s3070 + $0xc] sm:$0xf]
    %v3075 = vld [vmem:[%s3070 + $0x10] sm:$0xf]
    %v3076 = vld [vmem:[%s3070 + $0x14] sm:$0xf]
    %v3077 = vld [vmem:[%s3070 + $0x18] sm:$0xf]
    %v3078 = vld [vmem:[%s3070 + $0x1c] sm:$0xf]
    %v3087 = vunpack.c.l.b16 %v3071
    %v3088 = vunpack.c.l.b16 %v3072
    %v3089 = vunpack.c.l.b16 %v3073
    %v3090 = vunpack.c.l.b16 %v3074
    %v3091 = vunpack.c.l.b16 %v3075
    %v3092 = vunpack.c.l.b16 %v3076
    %v3093 = vunpack.c.l.b16 %v3077
    %v3094 = vunpack.c.l.b16 %v3078
    %v3095 = vpack.c.b16 %v3088, %v3087
    %v3096 = vpack.c.b16 %v3090, %v3089
    %v3097 = vpack.c.b16 %v3092, %v3091
    %v3098 = vpack.c.b16 %v3094, %v3093
    %v3104 = vsel %vm2741, %v3065, 0
    %v3107 = vsel %vm2741, %v3066, 0
    %v3110 = vsel %vm2741, %v3067, 0
    %v3113 = vsel %vm2741, %v3068, 0
    %v3116 = vsel %vm2741, %v3069, 0
    %3118 = vmatpush.bf16.msra.mxu0 0
    %3119 = vmatpush.bf16.msra.mxu0 0
    %3120 = vmatpush.bf16.msra.mxu0 0
    %3121 = vmatpush.bf16.msra.mxu0 0
    %3122 = vmatpush.bf16.msra.mxu0 %v3098
    %3123 = vmatpush.bf16.msra.mxu0 %v3097
    %3124 = vmatpush.bf16.msra.mxu0 %v3096
    %3125 = vmatpush.bf16.msra.mxu0 %v3095
    %3126 = vmatmul.bf16.gmra.mxu0 %v3104
    %v3127 = vpop.f32.mrf.mxu0
    %v3128 = vadd.f32 0.0, %v3127
    %v3129 = vpop.f32.mrf.mxu0
    %v3130 = vadd.f32 0.0, %v3129
    %3131 = vmatmul.bf16.gmra.mxu0 %v3107
    %v3132 = vpop.f32.mrf.mxu0
    %v3133 = vadd.f32 0.0, %v3132
    %v3134 = vpop.f32.mrf.mxu0
    %v3135 = vadd.f32 0.0, %v3134
    %3136 = vmatmul.bf16.gmra.mxu0 %v3110
    %v3137 = vpop.f32.mrf.mxu0
    %v3138 = vadd.f32 0.0, %v3137
    %v3139 = vpop.f32.mrf.mxu0
    %v3140 = vadd.f32 0.0, %v3139
    %3141 = vmatmul.bf16.gmra.mxu0 %v3113
    %v3142 = vpop.f32.mrf.mxu0
    %v3143 = vadd.f32 0.0, %v3142
    %v3144 = vpop.f32.mrf.mxu0
    %v3145 = vadd.f32 0.0, %v3144
    %3146 = vmatmul.bf16.gmra.mxu0 %v3116
    %v3147 = vpop.f32.mrf.mxu0
    %v3148 = vadd.f32 0.0, %v3147
    %v3149 = vpop.f32.mrf.mxu0
    %3150 = vdwg.mxu0
    %v3151 = vadd.f32 %v2839, %v3128
    %v3152 = vadd.f32 %v2841, %v3130
    %v3153 = vadd.f32 %v2844, %v3133
    %v3154 = vadd.f32 %v2846, %v3135
    %v3155 = vadd.f32 %v2849, %v3138
    %v3156 = vadd.f32 %v2851, %v3140
    %v3157 = vadd.f32 %v2854, %v3143
    %v3158 = vadd.f32 %v2856, %v3145
    %v3159 = vadd.f32 %v2859, %v3148
    %s3160 = scalar_lea.vmem [#allocation2], 324
    %v3161 = vld [vmem:[%s3160] sm:$0xff]
    %v3162 = vld [vmem:[%s3160 + $0x8] sm:$0xf]
    %v3163 = vld [vmem:[%s3160 + $0xc] sm:$0xff]
    %v3164 = vld [vmem:[%s3160 + $0x14] sm:$0xf]
    %v3165 = vld [vmem:[%s3160 + $0x18] sm:$0xff]
    %v3166 = vld [vmem:[%s3160 + $0x20] sm:$0xf]
    %v3167 = vld [vmem:[%s3160 + $0x24] sm:$0xff]
    %v3168 = vld [vmem:[%s3160 + $0x2c] sm:$0xf]
    %v3169 = vld [vmem:[%s3160 + $0x30] sm:$0xff]
    %v3170 = vld [vmem:[%s3160 + $0x38] sm:$0xf]
    %v3171 = vld [vmem:[%s3160 + $0x3c] sm:$0xff]
    %v3172 = vld [vmem:[%s3160 + $0x44] sm:$0xf]
    %v3173 = vld [vmem:[%s3160 + $0x48] sm:$0xff]
    %v3174 = vld [vmem:[%s3160 + $0x50] sm:$0xf]
    %v3175 = vld [vmem:[%s3160 + $0x54] sm:$0xff]
    %v3176 = vld [vmem:[%s3160 + $0x5c] sm:$0xf]
    %v3177 = vld [vmem:[%s3160 + $0x60] sm:$0x33]
    %v3178 = vld [vmem:[%s3160 + $0x68] sm:$0x3]
    %v3197 = vunpack.c.l.b16 %v3161
    %v3198 = vunpack.c.h.b16 %v3161
    %v3199 = vunpack.c.l.b16 %v3162
    %v3200 = vunpack.c.l.b16 %v3163
    %v3201 = vunpack.c.h.b16 %v3163
    %v3202 = vunpack.c.l.b16 %v3164
    %v3203 = vunpack.c.l.b16 %v3165
    %v3204 = vunpack.c.h.b16 %v3165
    %v3205 = vunpack.c.l.b16 %v3166
    %v3206 = vunpack.c.l.b16 %v3167
    %v3207 = vunpack.c.h.b16 %v3167
    %v3208 = vunpack.c.l.b16 %v3168
    %v3209 = vunpack.c.l.b16 %v3169
    %v3210 = vunpack.c.h.b16 %v3169
    %v3211 = vunpack.c.l.b16 %v3170
    %v3212 = vunpack.c.l.b16 %v3171
    %v3213 = vunpack.c.h.b16 %v3171
    %v3214 = vunpack.c.l.b16 %v3172
    %v3215 = vunpack.c.l.b16 %v3173
    %v3216 = vunpack.c.h.b16 %v3173
    %v3217 = vunpack.c.l.b16 %v3174
    %v3218 = vunpack.c.l.b16 %v3175
    %v3219 = vunpack.c.h.b16 %v3175
    %v3220 = vunpack.c.l.b16 %v3176
    %v3221 = vunpack.c.l.b16 %v3177
    %v3222 = vunpack.c.h.b16 %v3177
    %v3223 = vunpack.c.l.b16 %v3178
    %v3224 = vpack.c.b16 %v3200, %v3197
    %v3225 = vpack.c.b16 %v3201, %v3198
    %v3226 = vpack.c.b16 %v3202, %v3199
    %v3227 = vpack.c.b16 %v3206, %v3203
    %v3228 = vpack.c.b16 %v3207, %v3204
    %v3229 = vpack.c.b16 %v3208, %v3205
    %v3230 = vpack.c.b16 %v3212, %v3209
    %v3231 = vpack.c.b16 %v3213, %v3210
    %v3232 = vpack.c.b16 %v3214, %v3211
    %v3233 = vpack.c.b16 %v3218, %v3215
    %v3234 = vpack.c.b16 %v3219, %v3216
    %v3235 = vpack.c.b16 %v3220, %v3217
    %v3236 = vpack.c.b16 %v3221, %v3221
    %v3237 = vpack.c.b16 %v3222, %v3222
    %v3238 = vpack.c.b16 %v3223, %v3223
    %v3250 = vsel %vm2372, %v3226, 0
    %v3253 = vsel %vm2372, %v3229, 0
    %v3256 = vsel %vm2372, %v3232, 0
    %v3259 = vsel %vm2372, %v3235, 0
    %v3262 = vsel %vm2372, %v3238, 0
    %3264 = vmatpush.bf16.msra.mxu0 %v2274
    %3265 = vmatpush.bf16.msra.mxu0 %v2273
    %3266 = vmatpush.bf16.msra.mxu0 %v2272
    %3267 = vmatpush.bf16.msra.mxu0 %v2271
    %3268 = vmatpush.bf16.msra.mxu0 %v2270
    %3269 = vmatpush.bf16.msra.mxu0 %v2269
    %3270 = vmatpush.bf16.msra.mxu0 %v2268
    %3271 = vmatpush.bf16.msra.mxu0 %v2267
    %3272 = vmatmul.bf16.gmra.mxu0 %v3224
    %v3273 = vpop.f32.mrf.mxu0
    %v3274 = vadd.f32 0.0, %v3273
    %v3275 = vpop.f32.mrf.mxu0
    %v3276 = vadd.f32 0.0, %v3275
    %3277 = vmatmul.bf16.gmra.mxu0 %v3227
    %v3278 = vpop.f32.mrf.mxu0
    %v3279 = vadd.f32 0.0, %v3278
    %v3280 = vpop.f32.mrf.mxu0
    %v3281 = vadd.f32 0.0, %v3280
    %3282 = vmatmul.bf16.gmra.mxu0 %v3230
    %v3283 = vpop.f32.mrf.mxu0
    %v3284 = vadd.f32 0.0, %v3283
    %v3285 = vpop.f32.mrf.mxu0
    %v3286 = vadd.f32 0.0, %v3285
    %3287 = vmatmul.bf16.gmra.mxu0 %v3233
    %v3288 = vpop.f32.mrf.mxu0
    %v3289 = vadd.f32 0.0, %v3288
    %v3290 = vpop.f32.mrf.mxu0
    %v3291 = vadd.f32 0.0, %v3290
    %3292 = vmatmul.bf16.gmra.mxu0 %v3236
    %v3293 = vpop.f32.mrf.mxu0
    %v3294 = vadd.f32 0.0, %v3293
    %v3295 = vpop.f32.mrf.mxu0
    %3296 = vdwg.mxu0
    %3297 = vmatpush.bf16.msra.mxu0 %v2282
    %3298 = vmatpush.bf16.msra.mxu0 %v2281
    %3299 = vmatpush.bf16.msra.mxu0 %v2280
    %3300 = vmatpush.bf16.msra.mxu0 %v2279
    %3301 = vmatpush.bf16.msra.mxu0 %v2278
    %3302 = vmatpush.bf16.msra.mxu0 %v2277
    %3303 = vmatpush.bf16.msra.mxu0 %v2276
    %3304 = vmatpush.bf16.msra.mxu0 %v2275
    %3305 = vmatmul.bf16.gmra.mxu0 %v3225
    %v3306 = vpop.f32.mrf.mxu0
    %v3307 = vadd.f32 %v3274, %v3306
    %v3308 = vpop.f32.mrf.mxu0
    %v3309 = vadd.f32 %v3276, %v3308
    %3310 = vmatmul.bf16.gmra.mxu0 %v3228
    %v3311 = vpop.f32.mrf.mxu0
    %v3312 = vadd.f32 %v3279, %v3311
    %v3313 = vpop.f32.mrf.mxu0
    %v3314 = vadd.f32 %v3281, %v3313
    %3315 = vmatmul.bf16.gmra.mxu0 %v3231
    %v3316 = vpop.f32.mrf.mxu0
    %v3317 = vadd.f32 %v3284, %v3316
    %v3318 = vpop.f32.mrf.mxu0
    %v3319 = vadd.f32 %v3286, %v3318
    %3320 = vmatmul.bf16.gmra.mxu0 %v3234
    %v3321 = vpop.f32.mrf.mxu0
    %v3322 = vadd.f32 %v3289, %v3321
    %v3323 = vpop.f32.mrf.mxu0
    %v3324 = vadd.f32 %v3291, %v3323
    %3325 = vmatmul.bf16.gmra.mxu0 %v3237
    %v3326 = vpop.f32.mrf.mxu0
    %v3327 = vadd.f32 %v3294, %v3326
    %v3328 = vpop.f32.mrf.mxu0
    %3329 = vdwg.mxu0
    %3330 = vmatpush.bf16.msra.mxu0 0
    %3331 = vmatpush.bf16.msra.mxu0 0
    %3332 = vmatpush.bf16.msra.mxu0 0
    %3333 = vmatpush.bf16.msra.mxu0 0
    %3334 = vmatpush.bf16.msra.mxu0 0
    %3335 = vmatpush.bf16.msra.mxu0 0
    %3336 = vmatpush.bf16.msra.mxu0 0
    %3337 = vmatpush.bf16.msra.mxu0 %v2283
    %3338 = vmatmul.bf16.gmra.mxu0 %v3250
    %v3339 = vpop.f32.mrf.mxu0
    %v3340 = vadd.f32 %v3307, %v3339
    %v3341 = vpop.f32.mrf.mxu0
    %v3342 = vadd.f32 %v3309, %v3341
    %3343 = vmatmul.bf16.gmra.mxu0 %v3253
    %v3344 = vpop.f32.mrf.mxu0
    %v3345 = vadd.f32 %v3312, %v3344
    %v3346 = vpop.f32.mrf.mxu0
    %v3347 = vadd.f32 %v3314, %v3346
    %3348 = vmatmul.bf16.gmra.mxu0 %v3256
    %v3349 = vpop.f32.mrf.mxu0
    %v3350 = vadd.f32 %v3317, %v3349
    %v3351 = vpop.f32.mrf.mxu0
    %v3352 = vadd.f32 %v3319, %v3351
    %3353 = vmatmul.bf16.gmra.mxu0 %v3259
    %v3354 = vpop.f32.mrf.mxu0
    %v3355 = vadd.f32 %v3322, %v3354
    %v3356 = vpop.f32.mrf.mxu0
    %v3357 = vadd.f32 %v3324, %v3356
    %3358 = vmatmul.bf16.gmra.mxu0 %v3262
    %v3359 = vpop.f32.mrf.mxu0
    %v3360 = vadd.f32 %v3327, %v3359
    %v3361 = vpop.f32.mrf.mxu0
    %3362 = vdwg.mxu0
    %v3363 = vpack.c.bf16 %v3342, %v3340
    %v3364 = vpack.c.bf16 %v3347, %v3345
    %v3365 = vpack.c.bf16 %v3352, %v3350
    %v3366 = vpack.c.bf16 %v3357, %v3355
    %v3367 = vpack.c.bf16 %v3360, %v3360
    %s3368 = scalar_lea.vmem %s4, 96
    %v3369 = vld [vmem:[%s3368] sm:$0xf]
    %v3370 = vld [vmem:[%s3368 + $0x4] sm:$0xf]
    %v3371 = vld [vmem:[%s3368 + $0x8] sm:$0xf]
    %v3372 = vld [vmem:[%s3368 + $0xc] sm:$0xf]
    %v3373 = vld [vmem:[%s3368 + $0x10] sm:$0xf]
    %v3374 = vld [vmem:[%s3368 + $0x14] sm:$0xf]
    %v3375 = vld [vmem:[%s3368 + $0x18] sm:$0xf]
    %v3376 = vld [vmem:[%s3368 + $0x1c] sm:$0xf]
    %v3385 = vunpack.c.l.b16 %v3369
    %v3386 = vunpack.c.l.b16 %v3370
    %v3387 = vunpack.c.l.b16 %v3371
    %v3388 = vunpack.c.l.b16 %v3372
    %v3389 = vunpack.c.l.b16 %v3373
    %v3390 = vunpack.c.l.b16 %v3374
    %v3391 = vunpack.c.l.b16 %v3375
    %v3392 = vunpack.c.l.b16 %v3376
    %v3393 = vpack.c.b16 %v3386, %v3385
    %v3394 = vpack.c.b16 %v3388, %v3387
    %v3395 = vpack.c.b16 %v3390, %v3389
    %v3396 = vpack.c.b16 %v3392, %v3391
    %v3402 = vsel %vm2741, %v3363, 0
    %v3405 = vsel %vm2741, %v3364, 0
    %v3408 = vsel %vm2741, %v3365, 0
    %v3411 = vsel %vm2741, %v3366, 0
    %v3414 = vsel %vm2741, %v3367, 0
    %3416 = vmatpush.bf16.msra.mxu0 0
    %3417 = vmatpush.bf16.msra.mxu0 0
    %3418 = vmatpush.bf16.msra.mxu0 0
    %3419 = vmatpush.bf16.msra.mxu0 0
    %3420 = vmatpush.bf16.msra.mxu0 %v3396
    %3421 = vmatpush.bf16.msra.mxu0 %v3395
    %3422 = vmatpush.bf16.msra.mxu0 %v3394
    %3423 = vmatpush.bf16.msra.mxu0 %v3393
    %3424 = vmatmul.bf16.gmra.mxu0 %v3402
    %v3425 = vpop.f32.mrf.mxu0
    %v3426 = vadd.f32 0.0, %v3425
    %v3427 = vpop.f32.mrf.mxu0
    %v3428 = vadd.f32 0.0, %v3427
    %3429 = vmatmul.bf16.gmra.mxu0 %v3405
    %v3430 = vpop.f32.mrf.mxu0
    %v3431 = vadd.f32 0.0, %v3430
    %v3432 = vpop.f32.mrf.mxu0
    %v3433 = vadd.f32 0.0, %v3432
    %3434 = vmatmul.bf16.gmra.mxu0 %v3408
    %v3435 = vpop.f32.mrf.mxu0
    %v3436 = vadd.f32 0.0, %v3435
    %v3437 = vpop.f32.mrf.mxu0
    %v3438 = vadd.f32 0.0, %v3437
    %3439 = vmatmul.bf16.gmra.mxu0 %v3411
    %v3440 = vpop.f32.mrf.mxu0
    %v3441 = vadd.f32 0.0, %v3440
    %v3442 = vpop.f32.mrf.mxu0
    %v3443 = vadd.f32 0.0, %v3442
    %3444 = vmatmul.bf16.gmra.mxu0 %v3414
    %v3445 = vpop.f32.mrf.mxu0
    %v3446 = vadd.f32 0.0, %v3445
    %v3447 = vpop.f32.mrf.mxu0
    %3448 = vdwg.mxu0
    %v3449 = vadd.f32 %v3151, %v3426
    %v3450 = vadd.f32 %v3152, %v3428
    %v3451 = vadd.f32 %v3153, %v3431
    %v3452 = vadd.f32 %v3154, %v3433
    %v3453 = vadd.f32 %v3155, %v3436
    %v3454 = vadd.f32 %v3156, %v3438
    %v3455 = vadd.f32 %v3157, %v3441
    %v3456 = vadd.f32 %v3158, %v3443
    %v3457 = vadd.f32 %v3159, %v3446
    %s3458 = scalar_lea.vmem [#allocation2], 432
    %v3459 = vld [vmem:[%s3458] sm:$0xff]
    %v3460 = vld [vmem:[%s3458 + $0x8] sm:$0xf]
    %v3461 = vld [vmem:[%s3458 + $0xc] sm:$0xff]
    %v3462 = vld [vmem:[%s3458 + $0x14] sm:$0xf]
    %v3463 = vld [vmem:[%s3458 + $0x18] sm:$0xff]
    %v3464 = vld [vmem:[%s3458 + $0x20] sm:$0xf]
    %v3465 = vld [vmem:[%s3458 + $0x24] sm:$0xff]
    %v3466 = vld [vmem:[%s3458 + $0x2c] sm:$0xf]
    %v3467 = vld [vmem:[%s3458 + $0x30] sm:$0xff]
    %v3468 = vld [vmem:[%s3458 + $0x38] sm:$0xf]
    %v3469 = vld [vmem:[%s3458 + $0x3c] sm:$0xff]
    %v3470 = vld [vmem:[%s3458 + $0x44] sm:$0xf]
    %v3471 = vld [vmem:[%s3458 + $0x48] sm:$0xff]
    %v3472 = vld [vmem:[%s3458 + $0x50] sm:$0xf]
    %v3473 = vld [vmem:[%s3458 + $0x54] sm:$0xff]
    %v3474 = vld [vmem:[%s3458 + $0x5c] sm:$0xf]
    %v3475 = vld [vmem:[%s3458 + $0x60] sm:$0x33]
    %v3476 = vld [vmem:[%s3458 + $0x68] sm:$0x3]
    %v3495 = vunpack.c.l.b16 %v3459
    %v3496 = vunpack.c.h.b16 %v3459
    %v3497 = vunpack.c.l.b16 %v3460
    %v3498 = vunpack.c.l.b16 %v3461
    %v3499 = vunpack.c.h.b16 %v3461
    %v3500 = vunpack.c.l.b16 %v3462
    %v3501 = vunpack.c.l.b16 %v3463
    %v3502 = vunpack.c.h.b16 %v3463
    %v3503 = vunpack.c.l.b16 %v3464
    %v3504 = vunpack.c.l.b16 %v3465
    %v3505 = vunpack.c.h.b16 %v3465
    %v3506 = vunpack.c.l.b16 %v3466
    %v3507 = vunpack.c.l.b16 %v3467
    %v3508 = vunpack.c.h.b16 %v3467
    %v3509 = vunpack.c.l.b16 %v3468
    %v3510 = vunpack.c.l.b16 %v3469
    %v3511 = vunpack.c.h.b16 %v3469
    %v3512 = vunpack.c.l.b16 %v3470
    %v3513 = vunpack.c.l.b16 %v3471
    %v3514 = vunpack.c.h.b16 %v3471
    %v3515 = vunpack.c.l.b16 %v3472
    %v3516 = vunpack.c.l.b16 %v3473
    %v3517 = vunpack.c.h.b16 %v3473
    %v3518 = vunpack.c.l.b16 %v3474
    %v3519 = vunpack.c.l.b16 %v3475
    %v3520 = vunpack.c.h.b16 %v3475
    %v3521 = vunpack.c.l.b16 %v3476
    %v3522 = vpack.c.b16 %v3498, %v3495
    %v3523 = vpack.c.b16 %v3499, %v3496
    %v3524 = vpack.c.b16 %v3500, %v3497
    %v3525 = vpack.c.b16 %v3504, %v3501
    %v3526 = vpack.c.b16 %v3505, %v3502
    %v3527 = vpack.c.b16 %v3506, %v3503
    %v3528 = vpack.c.b16 %v3510, %v3507
    %v3529 = vpack.c.b16 %v3511, %v3508
    %v3530 = vpack.c.b16 %v3512, %v3509
    %v3531 = vpack.c.b16 %v3516, %v3513
    %v3532 = vpack.c.b16 %v3517, %v3514
    %v3533 = vpack.c.b16 %v3518, %v3515
    %v3534 = vpack.c.b16 %v3519, %v3519
    %v3535 = vpack.c.b16 %v3520, %v3520
    %v3536 = vpack.c.b16 %v3521, %v3521
    %v3548 = vsel %vm2372, %v3524, 0
    %v3551 = vsel %vm2372, %v3527, 0
    %v3554 = vsel %vm2372, %v3530, 0
    %v3557 = vsel %vm2372, %v3533, 0
    %v3560 = vsel %vm2372, %v3536, 0
    %3562 = vmatpush.bf16.msra.mxu0 %v2274
    %3563 = vmatpush.bf16.msra.mxu0 %v2273
    %3564 = vmatpush.bf16.msra.mxu0 %v2272
    %3565 = vmatpush.bf16.msra.mxu0 %v2271
    %3566 = vmatpush.bf16.msra.mxu0 %v2270
    %3567 = vmatpush.bf16.msra.mxu0 %v2269
    %3568 = vmatpush.bf16.msra.mxu0 %v2268
    %3569 = vmatpush.bf16.msra.mxu0 %v2267
    %3570 = vmatmul.bf16.gmra.mxu0 %v3522
    %v3571 = vpop.f32.mrf.mxu0
    %v3572 = vadd.f32 0.0, %v3571
    %v3573 = vpop.f32.mrf.mxu0
    %v3574 = vadd.f32 0.0, %v3573
    %3575 = vmatmul.bf16.gmra.mxu0 %v3525
    %v3576 = vpop.f32.mrf.mxu0
    %v3577 = vadd.f32 0.0, %v3576
    %v3578 = vpop.f32.mrf.mxu0
    %v3579 = vadd.f32 0.0, %v3578
    %3580 = vmatmul.bf16.gmra.mxu0 %v3528
    %v3581 = vpop.f32.mrf.mxu0
    %v3582 = vadd.f32 0.0, %v3581
    %v3583 = vpop.f32.mrf.mxu0
    %v3584 = vadd.f32 0.0, %v3583
    %3585 = vmatmul.bf16.gmra.mxu0 %v3531
    %v3586 = vpop.f32.mrf.mxu0
    %v3587 = vadd.f32 0.0, %v3586
    %v3588 = vpop.f32.mrf.mxu0
    %v3589 = vadd.f32 0.0, %v3588
    %3590 = vmatmul.bf16.gmra.mxu0 %v3534
    %v3591 = vpop.f32.mrf.mxu0
    %v3592 = vadd.f32 0.0, %v3591
    %v3593 = vpop.f32.mrf.mxu0
    %3594 = vdwg.mxu0
    %3595 = vmatpush.bf16.msra.mxu0 %v2282
    %3596 = vmatpush.bf16.msra.mxu0 %v2281
    %3597 = vmatpush.bf16.msra.mxu0 %v2280
    %3598 = vmatpush.bf16.msra.mxu0 %v2279
    %3599 = vmatpush.bf16.msra.mxu0 %v2278
    %3600 = vmatpush.bf16.msra.mxu0 %v2277
    %3601 = vmatpush.bf16.msra.mxu0 %v2276
    %3602 = vmatpush.bf16.msra.mxu0 %v2275
    %3603 = vmatmul.bf16.gmra.mxu0 %v3523
    %v3604 = vpop.f32.mrf.mxu0
    %v3605 = vadd.f32 %v3572, %v3604
    %v3606 = vpop.f32.mrf.mxu0
    %v3607 = vadd.f32 %v3574, %v3606
    %3608 = vmatmul.bf16.gmra.mxu0 %v3526
    %v3609 = vpop.f32.mrf.mxu0
    %v3610 = vadd.f32 %v3577, %v3609
    %v3611 = vpop.f32.mrf.mxu0
    %v3612 = vadd.f32 %v3579, %v3611
    %3613 = vmatmul.bf16.gmra.mxu0 %v3529
    %v3614 = vpop.f32.mrf.mxu0
    %v3615 = vadd.f32 %v3582, %v3614
    %v3616 = vpop.f32.mrf.mxu0
    %v3617 = vadd.f32 %v3584, %v3616
    %3618 = vmatmul.bf16.gmra.mxu0 %v3532
    %v3619 = vpop.f32.mrf.mxu0
    %v3620 = vadd.f32 %v3587, %v3619
    %v3621 = vpop.f32.mrf.mxu0
    %v3622 = vadd.f32 %v3589, %v3621
    %3623 = vmatmul.bf16.gmra.mxu0 %v3535
    %v3624 = vpop.f32.mrf.mxu0
    %v3625 = vadd.f32 %v3592, %v3624
    %v3626 = vpop.f32.mrf.mxu0
    %3627 = vdwg.mxu0
    %3628 = vmatpush.bf16.msra.mxu0 0
    %3629 = vmatpush.bf16.msra.mxu0 0
    %3630 = vmatpush.bf16.msra.mxu0 0
    %3631 = vmatpush.bf16.msra.mxu0 0
    %3632 = vmatpush.bf16.msra.mxu0 0
    %3633 = vmatpush.bf16.msra.mxu0 0
    %3634 = vmatpush.bf16.msra.mxu0 0
    %3635 = vmatpush.bf16.msra.mxu0 %v2283
    %3636 = vmatmul.bf16.gmra.mxu0 %v3548
    %v3637 = vpop.f32.mrf.mxu0
    %v3638 = vadd.f32 %v3605, %v3637
    %v3639 = vpop.f32.mrf.mxu0
    %v3640 = vadd.f32 %v3607, %v3639
    %3641 = vmatmul.bf16.gmra.mxu0 %v3551
    %v3642 = vpop.f32.mrf.mxu0
    %v3643 = vadd.f32 %v3610, %v3642
    %v3644 = vpop.f32.mrf.mxu0
    %v3645 = vadd.f32 %v3612, %v3644
    %3646 = vmatmul.bf16.gmra.mxu0 %v3554
    %v3647 = vpop.f32.mrf.mxu0
    %v3648 = vadd.f32 %v3615, %v3647
    %v3649 = vpop.f32.mrf.mxu0
    %v3650 = vadd.f32 %v3617, %v3649
    %3651 = vmatmul.bf16.gmra.mxu0 %v3557
    %v3652 = vpop.f32.mrf.mxu0
    %v3653 = vadd.f32 %v3620, %v3652
    %v3654 = vpop.f32.mrf.mxu0
    %v3655 = vadd.f32 %v3622, %v3654
    %3656 = vmatmul.bf16.gmra.mxu0 %v3560
    %v3657 = vpop.f32.mrf.mxu0
    %v3658 = vadd.f32 %v3625, %v3657
    %v3659 = vpop.f32.mrf.mxu0
    %3660 = vdwg.mxu0
    %v3661 = vpack.c.bf16 %v3640, %v3638
    %v3662 = vpack.c.bf16 %v3645, %v3643
    %v3663 = vpack.c.bf16 %v3650, %v3648
    %v3664 = vpack.c.bf16 %v3655, %v3653
    %v3665 = vpack.c.bf16 %v3658, %v3658
    %s3666 = scalar_lea.vmem %s4, 128
    %v3667 = vld [vmem:[%s3666] sm:$0xf]
    %v3668 = vld [vmem:[%s3666 + $0x4] sm:$0xf]
    %v3669 = vld [vmem:[%s3666 + $0x8] sm:$0xf]
    %v3670 = vld [vmem:[%s3666 + $0xc] sm:$0xf]
    %v3671 = vld [vmem:[%s3666 + $0x10] sm:$0xf]
    %v3672 = vld [vmem:[%s3666 + $0x14] sm:$0xf]
    %v3673 = vld [vmem:[%s3666 + $0x18] sm:$0xf]
    %v3674 = vld [vmem:[%s3666 + $0x1c] sm:$0xf]
    %v3683 = vunpack.c.l.b16 %v3667
    %v3684 = vunpack.c.l.b16 %v3668
    %v3685 = vunpack.c.l.b16 %v3669
    %v3686 = vunpack.c.l.b16 %v3670
    %v3687 = vunpack.c.l.b16 %v3671
    %v3688 = vunpack.c.l.b16 %v3672
    %v3689 = vunpack.c.l.b16 %v3673
    %v3690 = vunpack.c.l.b16 %v3674
    %v3691 = vpack.c.b16 %v3684, %v3683
    %v3692 = vpack.c.b16 %v3686, %v3685
    %v3693 = vpack.c.b16 %v3688, %v3687
    %v3694 = vpack.c.b16 %v3690, %v3689
    %v3700 = vsel %vm2741, %v3661, 0
    %v3703 = vsel %vm2741, %v3662, 0
    %v3706 = vsel %vm2741, %v3663, 0
    %v3709 = vsel %vm2741, %v3664, 0
    %v3712 = vsel %vm2741, %v3665, 0
    %3714 = vmatpush.bf16.msra.mxu0 0
    %3715 = vmatpush.bf16.msra.mxu0 0
    %3716 = vmatpush.bf16.msra.mxu0 0
    %3717 = vmatpush.bf16.msra.mxu0 0
    %3718 = vmatpush.bf16.msra.mxu0 %v3694
    %3719 = vmatpush.bf16.msra.mxu0 %v3693
    %3720 = vmatpush.bf16.msra.mxu0 %v3692
    %3721 = vmatpush.bf16.msra.mxu0 %v3691
    %3722 = vmatmul.bf16.gmra.mxu0 %v3700
    %v3723 = vpop.f32.mrf.mxu0
    %v3724 = vadd.f32 0.0, %v3723
    %v3725 = vpop.f32.mrf.mxu0
    %v3726 = vadd.f32 0.0, %v3725
    %3727 = vmatmul.bf16.gmra.mxu0 %v3703
    %v3728 = vpop.f32.mrf.mxu0
    %v3729 = vadd.f32 0.0, %v3728
    %v3730 = vpop.f32.mrf.mxu0
    %v3731 = vadd.f32 0.0, %v3730
    %3732 = vmatmul.bf16.gmra.mxu0 %v3706
    %v3733 = vpop.f32.mrf.mxu0
    %v3734 = vadd.f32 0.0, %v3733
    %v3735 = vpop.f32.mrf.mxu0
    %v3736 = vadd.f32 0.0, %v3735
    %3737 = vmatmul.bf16.gmra.mxu0 %v3709
    %v3738 = vpop.f32.mrf.mxu0
    %v3739 = vadd.f32 0.0, %v3738
    %v3740 = vpop.f32.mrf.mxu0
    %v3741 = vadd.f32 0.0, %v3740
    %3742 = vmatmul.bf16.gmra.mxu0 %v3712
    %v3743 = vpop.f32.mrf.mxu0
    %v3744 = vadd.f32 0.0, %v3743
    %v3745 = vpop.f32.mrf.mxu0
    %3746 = vdwg.mxu0
    %v3747 = vadd.f32 %v3449, %v3724
    %v3748 = vadd.f32 %v3450, %v3726
    %v3749 = vadd.f32 %v3451, %v3729
    %v3750 = vadd.f32 %v3452, %v3731
    %v3751 = vadd.f32 %v3453, %v3734
    %v3752 = vadd.f32 %v3454, %v3736
    %v3753 = vadd.f32 %v3455, %v3739
    %v3754 = vadd.f32 %v3456, %v3741
    %v3755 = vadd.f32 %v3457, %v3744
    %s3756 = scalar_lea.vmem [#allocation2], 540
    %v3757 = vld [vmem:[%s3756] sm:$0xff]
    %v3758 = vld [vmem:[%s3756 + $0x8] sm:$0xf]
    %v3759 = vld [vmem:[%s3756 + $0xc] sm:$0xff]
    %v3760 = vld [vmem:[%s3756 + $0x14] sm:$0xf]
    %v3761 = vld [vmem:[%s3756 + $0x18] sm:$0xff]
    %v3762 = vld [vmem:[%s3756 + $0x20] sm:$0xf]
    %v3763 = vld [vmem:[%s3756 + $0x24] sm:$0xff]
    %v3764 = vld [vmem:[%s3756 + $0x2c] sm:$0xf]
    %v3765 = vld [vmem:[%s3756 + $0x30] sm:$0xff]
    %v3766 = vld [vmem:[%s3756 + $0x38] sm:$0xf]
    %v3767 = vld [vmem:[%s3756 + $0x3c] sm:$0xff]
    %v3768 = vld [vmem:[%s3756 + $0x44] sm:$0xf]
    %v3769 = vld [vmem:[%s3756 + $0x48] sm:$0xff]
    %v3770 = vld [vmem:[%s3756 + $0x50] sm:$0xf]
    %v3771 = vld [vmem:[%s3756 + $0x54] sm:$0xff]
    %v3772 = vld [vmem:[%s3756 + $0x5c] sm:$0xf]
    %v3773 = vld [vmem:[%s3756 + $0x60] sm:$0x33]
    %v3774 = vld [vmem:[%s3756 + $0x68] sm:$0x3]
    %v3793 = vunpack.c.l.b16 %v3757
    %v3794 = vunpack.c.h.b16 %v3757
    %v3795 = vunpack.c.l.b16 %v3758
    %v3796 = vunpack.c.l.b16 %v3759
    %v3797 = vunpack.c.h.b16 %v3759
    %v3798 = vunpack.c.l.b16 %v3760
    %v3799 = vunpack.c.l.b16 %v3761
    %v3800 = vunpack.c.h.b16 %v3761
    %v3801 = vunpack.c.l.b16 %v3762
    %v3802 = vunpack.c.l.b16 %v3763
    %v3803 = vunpack.c.h.b16 %v3763
    %v3804 = vunpack.c.l.b16 %v3764
    %v3805 = vunpack.c.l.b16 %v3765
    %v3806 = vunpack.c.h.b16 %v3765
    %v3807 = vunpack.c.l.b16 %v3766
    %v3808 = vunpack.c.l.b16 %v3767
    %v3809 = vunpack.c.h.b16 %v3767
    %v3810 = vunpack.c.l.b16 %v3768
    %v3811 = vunpack.c.l.b16 %v3769
    %v3812 = vunpack.c.h.b16 %v3769
    %v3813 = vunpack.c.l.b16 %v3770
    %v3814 = vunpack.c.l.b16 %v3771
    %v3815 = vunpack.c.h.b16 %v3771
    %v3816 = vunpack.c.l.b16 %v3772
    %v3817 = vunpack.c.l.b16 %v3773
    %v3818 = vunpack.c.h.b16 %v3773
    %v3819 = vunpack.c.l.b16 %v3774
    %v3820 = vpack.c.b16 %v3796, %v3793
    %v3821 = vpack.c.b16 %v3797, %v3794
    %v3822 = vpack.c.b16 %v3798, %v3795
    %v3823 = vpack.c.b16 %v3802, %v3799
    %v3824 = vpack.c.b16 %v3803, %v3800
    %v3825 = vpack.c.b16 %v3804, %v3801
    %v3826 = vpack.c.b16 %v3808, %v3805
    %v3827 = vpack.c.b16 %v3809, %v3806
    %v3828 = vpack.c.b16 %v3810, %v3807
    %v3829 = vpack.c.b16 %v3814, %v3811
    %v3830 = vpack.c.b16 %v3815, %v3812
    %v3831 = vpack.c.b16 %v3816, %v3813
    %v3832 = vpack.c.b16 %v3817, %v3817
    %v3833 = vpack.c.b16 %v3818, %v3818
    %v3834 = vpack.c.b16 %v3819, %v3819
    %v3846 = vsel %vm2372, %v3822, 0
    %v3849 = vsel %vm2372, %v3825, 0
    %v3852 = vsel %vm2372, %v3828, 0
    %v3855 = vsel %vm2372, %v3831, 0
    %v3858 = vsel %vm2372, %v3834, 0
    %3860 = vmatpush.bf16.msra.mxu0 %v2274
    %3861 = vmatpush.bf16.msra.mxu0 %v2273
    %3862 = vmatpush.bf16.msra.mxu0 %v2272
    %3863 = vmatpush.bf16.msra.mxu0 %v2271
    %3864 = vmatpush.bf16.msra.mxu0 %v2270
    %3865 = vmatpush.bf16.msra.mxu0 %v2269
    %3866 = vmatpush.bf16.msra.mxu0 %v2268
    %3867 = vmatpush.bf16.msra.mxu0 %v2267
    %3868 = vmatmul.bf16.gmra.mxu0 %v3820
    %v3869 = vpop.f32.mrf.mxu0
    %v3870 = vadd.f32 0.0, %v3869
    %v3871 = vpop.f32.mrf.mxu0
    %v3872 = vadd.f32 0.0, %v3871
    %3873 = vmatmul.bf16.gmra.mxu0 %v3823
    %v3874 = vpop.f32.mrf.mxu0
    %v3875 = vadd.f32 0.0, %v3874
    %v3876 = vpop.f32.mrf.mxu0
    %v3877 = vadd.f32 0.0, %v3876
    %3878 = vmatmul.bf16.gmra.mxu0 %v3826
    %v3879 = vpop.f32.mrf.mxu0
    %v3880 = vadd.f32 0.0, %v3879
    %v3881 = vpop.f32.mrf.mxu0
    %v3882 = vadd.f32 0.0, %v3881
    %3883 = vmatmul.bf16.gmra.mxu0 %v3829
    %v3884 = vpop.f32.mrf.mxu0
    %v3885 = vadd.f32 0.0, %v3884
    %v3886 = vpop.f32.mrf.mxu0
    %v3887 = vadd.f32 0.0, %v3886
    %3888 = vmatmul.bf16.gmra.mxu0 %v3832
    %v3889 = vpop.f32.mrf.mxu0
    %v3890 = vadd.f32 0.0, %v3889
    %v3891 = vpop.f32.mrf.mxu0
    %3892 = vdwg.mxu0
    %3893 = vmatpush.bf16.msra.mxu0 %v2282
    %3894 = vmatpush.bf16.msra.mxu0 %v2281
    %3895 = vmatpush.bf16.msra.mxu0 %v2280
    %3896 = vmatpush.bf16.msra.mxu0 %v2279
    %3897 = vmatpush.bf16.msra.mxu0 %v2278
    %3898 = vmatpush.bf16.msra.mxu0 %v2277
    %3899 = vmatpush.bf16.msra.mxu0 %v2276
    %3900 = vmatpush.bf16.msra.mxu0 %v2275
    %3901 = vmatmul.bf16.gmra.mxu0 %v3821
    %v3902 = vpop.f32.mrf.mxu0
    %v3903 = vadd.f32 %v3870, %v3902
    %v3904 = vpop.f32.mrf.mxu0
    %v3905 = vadd.f32 %v3872, %v3904
    %3906 = vmatmul.bf16.gmra.mxu0 %v3824
    %v3907 = vpop.f32.mrf.mxu0
    %v3908 = vadd.f32 %v3875, %v3907
    %v3909 = vpop.f32.mrf.mxu0
    %v3910 = vadd.f32 %v3877, %v3909
    %3911 = vmatmul.bf16.gmra.mxu0 %v3827
    %v3912 = vpop.f32.mrf.mxu0
    %v3913 = vadd.f32 %v3880, %v3912
    %v3914 = vpop.f32.mrf.mxu0
    %v3915 = vadd.f32 %v3882, %v3914
    %3916 = vmatmul.bf16.gmra.mxu0 %v3830
    %v3917 = vpop.f32.mrf.mxu0
    %v3918 = vadd.f32 %v3885, %v3917
    %v3919 = vpop.f32.mrf.mxu0
    %v3920 = vadd.f32 %v3887, %v3919
    %3921 = vmatmul.bf16.gmra.mxu0 %v3833
    %v3922 = vpop.f32.mrf.mxu0
    %v3923 = vadd.f32 %v3890, %v3922
    %v3924 = vpop.f32.mrf.mxu0
    %3925 = vdwg.mxu0
    %3926 = vmatpush.bf16.msra.mxu0 0
    %3927 = vmatpush.bf16.msra.mxu0 0
    %3928 = vmatpush.bf16.msra.mxu0 0
    %3929 = vmatpush.bf16.msra.mxu0 0
    %3930 = vmatpush.bf16.msra.mxu0 0
    %3931 = vmatpush.bf16.msra.mxu0 0
    %3932 = vmatpush.bf16.msra.mxu0 0
    %3933 = vmatpush.bf16.msra.mxu0 %v2283
    %3934 = vmatmul.bf16.gmra.mxu0 %v3846
    %v3935 = vpop.f32.mrf.mxu0
    %v3936 = vadd.f32 %v3903, %v3935
    %v3937 = vpop.f32.mrf.mxu0
    %v3938 = vadd.f32 %v3905, %v3937
    %3939 = vmatmul.bf16.gmra.mxu0 %v3849
    %v3940 = vpop.f32.mrf.mxu0
    %v3941 = vadd.f32 %v3908, %v3940
    %v3942 = vpop.f32.mrf.mxu0
    %v3943 = vadd.f32 %v3910, %v3942
    %3944 = vmatmul.bf16.gmra.mxu0 %v3852
    %v3945 = vpop.f32.mrf.mxu0
    %v3946 = vadd.f32 %v3913, %v3945
    %v3947 = vpop.f32.mrf.mxu0
    %v3948 = vadd.f32 %v3915, %v3947
    %3949 = vmatmul.bf16.gmra.mxu0 %v3855
    %v3950 = vpop.f32.mrf.mxu0
    %v3951 = vadd.f32 %v3918, %v3950
    %v3952 = vpop.f32.mrf.mxu0
    %v3953 = vadd.f32 %v3920, %v3952
    %3954 = vmatmul.bf16.gmra.mxu0 %v3858
    %v3955 = vpop.f32.mrf.mxu0
    %v3956 = vadd.f32 %v3923, %v3955
    %v3957 = vpop.f32.mrf.mxu0
    %3958 = vdwg.mxu0
    %v3959 = vpack.c.bf16 %v3938, %v3936
    %v3960 = vpack.c.bf16 %v3943, %v3941
    %v3961 = vpack.c.bf16 %v3948, %v3946
    %v3962 = vpack.c.bf16 %v3953, %v3951
    %v3963 = vpack.c.bf16 %v3956, %v3956
    %s3964 = scalar_lea.vmem %s4, 160
    %v3965 = vld [vmem:[%s3964] sm:$0xf]
    %v3966 = vld [vmem:[%s3964 + $0x4] sm:$0xf]
    %v3967 = vld [vmem:[%s3964 + $0x8] sm:$0xf]
    %v3968 = vld [vmem:[%s3964 + $0xc] sm:$0xf]
    %v3969 = vld [vmem:[%s3964 + $0x10] sm:$0xf]
    %v3970 = vld [vmem:[%s3964 + $0x14] sm:$0xf]
    %v3971 = vld [vmem:[%s3964 + $0x18] sm:$0xf]
    %v3972 = vld [vmem:[%s3964 + $0x1c] sm:$0xf]
    %v3981 = vunpack.c.l.b16 %v3965
    %v3982 = vunpack.c.l.b16 %v3966
    %v3983 = vunpack.c.l.b16 %v3967
    %v3984 = vunpack.c.l.b16 %v3968
    %v3985 = vunpack.c.l.b16 %v3969
    %v3986 = vunpack.c.l.b16 %v3970
    %v3987 = vunpack.c.l.b16 %v3971
    %v3988 = vunpack.c.l.b16 %v3972
    %v3989 = vpack.c.b16 %v3982, %v3981
    %v3990 = vpack.c.b16 %v3984, %v3983
    %v3991 = vpack.c.b16 %v3986, %v3985
    %v3992 = vpack.c.b16 %v3988, %v3987
    %v3998 = vsel %vm2741, %v3959, 0
    %v4001 = vsel %vm2741, %v3960, 0
    %v4004 = vsel %vm2741, %v3961, 0
    %v4007 = vsel %vm2741, %v3962, 0
    %v4010 = vsel %vm2741, %v3963, 0
    %4012 = vmatpush.bf16.msra.mxu0 0
    %4013 = vmatpush.bf16.msra.mxu0 0
    %4014 = vmatpush.bf16.msra.mxu0 0
    %4015 = vmatpush.bf16.msra.mxu0 0
    %4016 = vmatpush.bf16.msra.mxu0 %v3992
    %4017 = vmatpush.bf16.msra.mxu0 %v3991
    %4018 = vmatpush.bf16.msra.mxu0 %v3990
    %4019 = vmatpush.bf16.msra.mxu0 %v3989
    %4020 = vmatmul.bf16.gmra.mxu0 %v3998
    %v4021 = vpop.f32.mrf.mxu0
    %v4022 = vadd.f32 0.0, %v4021
    %v4023 = vpop.f32.mrf.mxu0
    %v4024 = vadd.f32 0.0, %v4023
    %4025 = vmatmul.bf16.gmra.mxu0 %v4001
    %v4026 = vpop.f32.mrf.mxu0
    %v4027 = vadd.f32 0.0, %v4026
    %v4028 = vpop.f32.mrf.mxu0
    %v4029 = vadd.f32 0.0, %v4028
    %4030 = vmatmul.bf16.gmra.mxu0 %v4004
    %v4031 = vpop.f32.mrf.mxu0
    %v4032 = vadd.f32 0.0, %v4031
    %v4033 = vpop.f32.mrf.mxu0
    %v4034 = vadd.f32 0.0, %v4033
    %4035 = vmatmul.bf16.gmra.mxu0 %v4007
    %v4036 = vpop.f32.mrf.mxu0
    %v4037 = vadd.f32 0.0, %v4036
    %v4038 = vpop.f32.mrf.mxu0
    %v4039 = vadd.f32 0.0, %v4038
    %4040 = vmatmul.bf16.gmra.mxu0 %v4010
    %v4041 = vpop.f32.mrf.mxu0
    %v4042 = vadd.f32 0.0, %v4041
    %v4043 = vpop.f32.mrf.mxu0
    %4044 = vdwg.mxu0
    %v4045 = vadd.f32 %v3747, %v4022
    %v4046 = vadd.f32 %v3748, %v4024
    %v4047 = vadd.f32 %v3749, %v4027
    %v4048 = vadd.f32 %v3750, %v4029
    %v4049 = vadd.f32 %v3751, %v4032
    %v4050 = vadd.f32 %v3752, %v4034
    %v4051 = vadd.f32 %v3753, %v4037
    %v4052 = vadd.f32 %v3754, %v4039
    %v4053 = vadd.f32 %v3755, %v4042
    %s4054 = scalar_lea.vmem [#allocation2], 648
    %v4055 = vld [vmem:[%s4054] sm:$0xff]
    %v4056 = vld [vmem:[%s4054 + $0x8] sm:$0xf]
    %v4057 = vld [vmem:[%s4054 + $0xc] sm:$0xff]
    %v4058 = vld [vmem:[%s4054 + $0x14] sm:$0xf]
    %v4059 = vld [vmem:[%s4054 + $0x18] sm:$0xff]
    %v4060 = vld [vmem:[%s4054 + $0x20] sm:$0xf]
    %v4061 = vld [vmem:[%s4054 + $0x24] sm:$0xff]
    %v4062 = vld [vmem:[%s4054 + $0x2c] sm:$0xf]
    %v4063 = vld [vmem:[%s4054 + $0x30] sm:$0xff]
    %v4064 = vld [vmem:[%s4054 + $0x38] sm:$0xf]
    %v4065 = vld [vmem:[%s4054 + $0x3c] sm:$0xff]
    %v4066 = vld [vmem:[%s4054 + $0x44] sm:$0xf]
    %v4067 = vld [vmem:[%s4054 + $0x48] sm:$0xff]
    %v4068 = vld [vmem:[%s4054 + $0x50] sm:$0xf]
    %v4069 = vld [vmem:[%s4054 + $0x54] sm:$0xff]
    %v4070 = vld [vmem:[%s4054 + $0x5c] sm:$0xf]
    %v4071 = vld [vmem:[%s4054 + $0x60] sm:$0x33]
    %v4072 = vld [vmem:[%s4054 + $0x68] sm:$0x3]
    %v4091 = vunpack.c.l.b16 %v4055
    %v4092 = vunpack.c.h.b16 %v4055
    %v4093 = vunpack.c.l.b16 %v4056
    %v4094 = vunpack.c.l.b16 %v4057
    %v4095 = vunpack.c.h.b16 %v4057
    %v4096 = vunpack.c.l.b16 %v4058
    %v4097 = vunpack.c.l.b16 %v4059
    %v4098 = vunpack.c.h.b16 %v4059
    %v4099 = vunpack.c.l.b16 %v4060
    %v4100 = vunpack.c.l.b16 %v4061
    %v4101 = vunpack.c.h.b16 %v4061
    %v4102 = vunpack.c.l.b16 %v4062
    %v4103 = vunpack.c.l.b16 %v4063
    %v4104 = vunpack.c.h.b16 %v4063
    %v4105 = vunpack.c.l.b16 %v4064
    %v4106 = vunpack.c.l.b16 %v4065
    %v4107 = vunpack.c.h.b16 %v4065
    %v4108 = vunpack.c.l.b16 %v4066
    %v4109 = vunpack.c.l.b16 %v4067
    %v4110 = vunpack.c.h.b16 %v4067
    %v4111 = vunpack.c.l.b16 %v4068
    %v4112 = vunpack.c.l.b16 %v4069
    %v4113 = vunpack.c.h.b16 %v4069
    %v4114 = vunpack.c.l.b16 %v4070
    %v4115 = vunpack.c.l.b16 %v4071
    %v4116 = vunpack.c.h.b16 %v4071
    %v4117 = vunpack.c.l.b16 %v4072
    %v4118 = vpack.c.b16 %v4094, %v4091
    %v4119 = vpack.c.b16 %v4095, %v4092
    %v4120 = vpack.c.b16 %v4096, %v4093
    %v4121 = vpack.c.b16 %v4100, %v4097
    %v4122 = vpack.c.b16 %v4101, %v4098
    %v4123 = vpack.c.b16 %v4102, %v4099
    %v4124 = vpack.c.b16 %v4106, %v4103
    %v4125 = vpack.c.b16 %v4107, %v4104
    %v4126 = vpack.c.b16 %v4108, %v4105
    %v4127 = vpack.c.b16 %v4112, %v4109
    %v4128 = vpack.c.b16 %v4113, %v4110
    %v4129 = vpack.c.b16 %v4114, %v4111
    %v4130 = vpack.c.b16 %v4115, %v4115
    %v4131 = vpack.c.b16 %v4116, %v4116
    %v4132 = vpack.c.b16 %v4117, %v4117
    %v4144 = vsel %vm2372, %v4120, 0
    %v4147 = vsel %vm2372, %v4123, 0
    %v4150 = vsel %vm2372, %v4126, 0
    %v4153 = vsel %vm2372, %v4129, 0
    %v4156 = vsel %vm2372, %v4132, 0
    %4158 = vmatpush.bf16.msra.mxu0 %v2274
    %4159 = vmatpush.bf16.msra.mxu0 %v2273
    %4160 = vmatpush.bf16.msra.mxu0 %v2272
    %4161 = vmatpush.bf16.msra.mxu0 %v2271
    %4162 = vmatpush.bf16.msra.mxu0 %v2270
    %4163 = vmatpush.bf16.msra.mxu0 %v2269
    %4164 = vmatpush.bf16.msra.mxu0 %v2268
    %4165 = vmatpush.bf16.msra.mxu0 %v2267
    %4166 = vmatmul.bf16.gmra.mxu0 %v4118
    %v4167 = vpop.f32.mrf.mxu0
    %v4168 = vadd.f32 0.0, %v4167
    %v4169 = vpop.f32.mrf.mxu0
    %v4170 = vadd.f32 0.0, %v4169
    %4171 = vmatmul.bf16.gmra.mxu0 %v4121
    %v4172 = vpop.f32.mrf.mxu0
    %v4173 = vadd.f32 0.0, %v4172
    %v4174 = vpop.f32.mrf.mxu0
    %v4175 = vadd.f32 0.0, %v4174
    %4176 = vmatmul.bf16.gmra.mxu0 %v4124
    %v4177 = vpop.f32.mrf.mxu0
    %v4178 = vadd.f32 0.0, %v4177
    %v4179 = vpop.f32.mrf.mxu0
    %v4180 = vadd.f32 0.0, %v4179
    %4181 = vmatmul.bf16.gmra.mxu0 %v4127
    %v4182 = vpop.f32.mrf.mxu0
    %v4183 = vadd.f32 0.0, %v4182
    %v4184 = vpop.f32.mrf.mxu0
    %v4185 = vadd.f32 0.0, %v4184
    %4186 = vmatmul.bf16.gmra.mxu0 %v4130
    %v4187 = vpop.f32.mrf.mxu0
    %v4188 = vadd.f32 0.0, %v4187
    %v4189 = vpop.f32.mrf.mxu0
    %4190 = vdwg.mxu0
    %4191 = vmatpush.bf16.msra.mxu0 %v2282
    %4192 = vmatpush.bf16.msra.mxu0 %v2281
    %4193 = vmatpush.bf16.msra.mxu0 %v2280
    %4194 = vmatpush.bf16.msra.mxu0 %v2279
    %4195 = vmatpush.bf16.msra.mxu0 %v2278
    %4196 = vmatpush.bf16.msra.mxu0 %v2277
    %4197 = vmatpush.bf16.msra.mxu0 %v2276
    %4198 = vmatpush.bf16.msra.mxu0 %v2275
    %4199 = vmatmul.bf16.gmra.mxu0 %v4119
    %v4200 = vpop.f32.mrf.mxu0
    %v4201 = vadd.f32 %v4168, %v4200
    %v4202 = vpop.f32.mrf.mxu0
    %v4203 = vadd.f32 %v4170, %v4202
    %4204 = vmatmul.bf16.gmra.mxu0 %v4122
    %v4205 = vpop.f32.mrf.mxu0
    %v4206 = vadd.f32 %v4173, %v4205
    %v4207 = vpop.f32.mrf.mxu0
    %v4208 = vadd.f32 %v4175, %v4207
    %4209 = vmatmul.bf16.gmra.mxu0 %v4125
    %v4210 = vpop.f32.mrf.mxu0
    %v4211 = vadd.f32 %v4178, %v4210
    %v4212 = vpop.f32.mrf.mxu0
    %v4213 = vadd.f32 %v4180, %v4212
    %4214 = vmatmul.bf16.gmra.mxu0 %v4128
    %v4215 = vpop.f32.mrf.mxu0
    %v4216 = vadd.f32 %v4183, %v4215
    %v4217 = vpop.f32.mrf.mxu0
    %v4218 = vadd.f32 %v4185, %v4217
    %4219 = vmatmul.bf16.gmra.mxu0 %v4131
    %v4220 = vpop.f32.mrf.mxu0
    %v4221 = vadd.f32 %v4188, %v4220
    %v4222 = vpop.f32.mrf.mxu0
    %4223 = vdwg.mxu0
    %4224 = vmatpush.bf16.msra.mxu0 0
    %4225 = vmatpush.bf16.msra.mxu0 0
    %4226 = vmatpush.bf16.msra.mxu0 0
    %4227 = vmatpush.bf16.msra.mxu0 0
    %4228 = vmatpush.bf16.msra.mxu0 0
    %4229 = vmatpush.bf16.msra.mxu0 0
    %4230 = vmatpush.bf16.msra.mxu0 0
    %4231 = vmatpush.bf16.msra.mxu0 %v2283
    %4232 = vmatmul.bf16.gmra.mxu0 %v4144
    %v4233 = vpop.f32.mrf.mxu0
    %v4234 = vadd.f32 %v4201, %v4233
    %v4235 = vpop.f32.mrf.mxu0
    %v4236 = vadd.f32 %v4203, %v4235
    %4237 = vmatmul.bf16.gmra.mxu0 %v4147
    %v4238 = vpop.f32.mrf.mxu0
    %v4239 = vadd.f32 %v4206, %v4238
    %v4240 = vpop.f32.mrf.mxu0
    %v4241 = vadd.f32 %v4208, %v4240
    %4242 = vmatmul.bf16.gmra.mxu0 %v4150
    %v4243 = vpop.f32.mrf.mxu0
    %v4244 = vadd.f32 %v4211, %v4243
    %v4245 = vpop.f32.mrf.mxu0
    %v4246 = vadd.f32 %v4213, %v4245
    %4247 = vmatmul.bf16.gmra.mxu0 %v4153
    %v4248 = vpop.f32.mrf.mxu0
    %v4249 = vadd.f32 %v4216, %v4248
    %v4250 = vpop.f32.mrf.mxu0
    %v4251 = vadd.f32 %v4218, %v4250
    %4252 = vmatmul.bf16.gmra.mxu0 %v4156
    %v4253 = vpop.f32.mrf.mxu0
    %v4254 = vadd.f32 %v4221, %v4253
    %v4255 = vpop.f32.mrf.mxu0
    %4256 = vdwg.mxu0
    %v4257 = vpack.c.bf16 %v4236, %v4234
    %v4258 = vpack.c.bf16 %v4241, %v4239
    %v4259 = vpack.c.bf16 %v4246, %v4244
    %v4260 = vpack.c.bf16 %v4251, %v4249
    %v4261 = vpack.c.bf16 %v4254, %v4254
    %s4262 = scalar_lea.vmem %s4, 192
    %v4263 = vld [vmem:[%s4262] sm:$0xf]
    %v4264 = vld [vmem:[%s4262 + $0x4] sm:$0xf]
    %v4265 = vld [vmem:[%s4262 + $0x8] sm:$0xf]
    %v4266 = vld [vmem:[%s4262 + $0xc] sm:$0xf]
    %v4267 = vld [vmem:[%s4262 + $0x10] sm:$0xf]
    %v4268 = vld [vmem:[%s4262 + $0x14] sm:$0xf]
    %v4269 = vld [vmem:[%s4262 + $0x18] sm:$0xf]
    %v4270 = vld [vmem:[%s4262 + $0x1c] sm:$0xf]
    %v4279 = vunpack.c.l.b16 %v4263
    %v4280 = vunpack.c.l.b16 %v4264
    %v4281 = vunpack.c.l.b16 %v4265
    %v4282 = vunpack.c.l.b16 %v4266
    %v4283 = vunpack.c.l.b16 %v4267
    %v4284 = vunpack.c.l.b16 %v4268
    %v4285 = vunpack.c.l.b16 %v4269
    %v4286 = vunpack.c.l.b16 %v4270
    %v4287 = vpack.c.b16 %v4280, %v4279
    %v4288 = vpack.c.b16 %v4282, %v4281
    %v4289 = vpack.c.b16 %v4284, %v4283
    %v4290 = vpack.c.b16 %v4286, %v4285
    %v4296 = vsel %vm2741, %v4257, 0
    %v4299 = vsel %vm2741, %v4258, 0
    %v4302 = vsel %vm2741, %v4259, 0
    %v4305 = vsel %vm2741, %v4260, 0
    %v4308 = vsel %vm2741, %v4261, 0
    %4310 = vmatpush.bf16.msra.mxu0 0
    %4311 = vmatpush.bf16.msra.mxu0 0
    %4312 = vmatpush.bf16.msra.mxu0 0
    %4313 = vmatpush.bf16.msra.mxu0 0
    %4314 = vmatpush.bf16.msra.mxu0 %v4290
    %4315 = vmatpush.bf16.msra.mxu0 %v4289
    %4316 = vmatpush.bf16.msra.mxu0 %v4288
    %4317 = vmatpush.bf16.msra.mxu0 %v4287
    %4318 = vmatmul.bf16.gmra.mxu0 %v4296
    %v4319 = vpop.f32.mrf.mxu0
    %v4320 = vadd.f32 0.0, %v4319
    %v4321 = vpop.f32.mrf.mxu0
    %v4322 = vadd.f32 0.0, %v4321
    %4323 = vmatmul.bf16.gmra.mxu0 %v4299
    %v4324 = vpop.f32.mrf.mxu0
    %v4325 = vadd.f32 0.0, %v4324
    %v4326 = vpop.f32.mrf.mxu0
    %v4327 = vadd.f32 0.0, %v4326
    %4328 = vmatmul.bf16.gmra.mxu0 %v4302
    %v4329 = vpop.f32.mrf.mxu0
    %v4330 = vadd.f32 0.0, %v4329
    %v4331 = vpop.f32.mrf.mxu0
    %v4332 = vadd.f32 0.0, %v4331
    %4333 = vmatmul.bf16.gmra.mxu0 %v4305
    %v4334 = vpop.f32.mrf.mxu0
    %v4335 = vadd.f32 0.0, %v4334
    %v4336 = vpop.f32.mrf.mxu0
    %v4337 = vadd.f32 0.0, %v4336
    %4338 = vmatmul.bf16.gmra.mxu0 %v4308
    %v4339 = vpop.f32.mrf.mxu0
    %v4340 = vadd.f32 0.0, %v4339
    %v4341 = vpop.f32.mrf.mxu0
    %4342 = vdwg.mxu0
    %v4343 = vadd.f32 %v4045, %v4320
    %v4344 = vadd.f32 %v4046, %v4322
    %v4345 = vadd.f32 %v4047, %v4325
    %v4346 = vadd.f32 %v4048, %v4327
    %v4347 = vadd.f32 %v4049, %v4330
    %v4348 = vadd.f32 %v4050, %v4332
    %v4349 = vadd.f32 %v4051, %v4335
    %v4350 = vadd.f32 %v4052, %v4337
    %v4351 = vadd.f32 %v4053, %v4340
    %s4352 = scalar_lea.vmem [#allocation2], 756
    %v4353 = vld [vmem:[%s4352] sm:$0xff]
    %v4354 = vld [vmem:[%s4352 + $0x8] sm:$0xf]
    %v4355 = vld [vmem:[%s4352 + $0xc] sm:$0xff]
    %v4356 = vld [vmem:[%s4352 + $0x14] sm:$0xf]
    %v4357 = vld [vmem:[%s4352 + $0x18] sm:$0xff]
    %v4358 = vld [vmem:[%s4352 + $0x20] sm:$0xf]
    %v4359 = vld [vmem:[%s4352 + $0x24] sm:$0xff]
    %v4360 = vld [vmem:[%s4352 + $0x2c] sm:$0xf]
    %v4361 = vld [vmem:[%s4352 + $0x30] sm:$0xff]
    %v4362 = vld [vmem:[%s4352 + $0x38] sm:$0xf]
    %v4363 = vld [vmem:[%s4352 + $0x3c] sm:$0xff]
    %v4364 = vld [vmem:[%s4352 + $0x44] sm:$0xf]
    %v4365 = vld [vmem:[%s4352 + $0x48] sm:$0xff]
    %v4366 = vld [vmem:[%s4352 + $0x50] sm:$0xf]
    %v4367 = vld [vmem:[%s4352 + $0x54] sm:$0xff]
    %v4368 = vld [vmem:[%s4352 + $0x5c] sm:$0xf]
    %v4369 = vld [vmem:[%s4352 + $0x60] sm:$0x33]
    %v4370 = vld [vmem:[%s4352 + $0x68] sm:$0x3]
    %v4389 = vunpack.c.l.b16 %v4353
    %v4390 = vunpack.c.h.b16 %v4353
    %v4391 = vunpack.c.l.b16 %v4354
    %v4392 = vunpack.c.l.b16 %v4355
    %v4393 = vunpack.c.h.b16 %v4355
    %v4394 = vunpack.c.l.b16 %v4356
    %v4395 = vunpack.c.l.b16 %v4357
    %v4396 = vunpack.c.h.b16 %v4357
    %v4397 = vunpack.c.l.b16 %v4358
    %v4398 = vunpack.c.l.b16 %v4359
    %v4399 = vunpack.c.h.b16 %v4359
    %v4400 = vunpack.c.l.b16 %v4360
    %v4401 = vunpack.c.l.b16 %v4361
    %v4402 = vunpack.c.h.b16 %v4361
    %v4403 = vunpack.c.l.b16 %v4362
    %v4404 = vunpack.c.l.b16 %v4363
    %v4405 = vunpack.c.h.b16 %v4363
    %v4406 = vunpack.c.l.b16 %v4364
    %v4407 = vunpack.c.l.b16 %v4365
    %v4408 = vunpack.c.h.b16 %v4365
    %v4409 = vunpack.c.l.b16 %v4366
    %v4410 = vunpack.c.l.b16 %v4367
    %v4411 = vunpack.c.h.b16 %v4367
    %v4412 = vunpack.c.l.b16 %v4368
    %v4413 = vunpack.c.l.b16 %v4369
    %v4414 = vunpack.c.h.b16 %v4369
    %v4415 = vunpack.c.l.b16 %v4370
    %v4416 = vpack.c.b16 %v4392, %v4389
    %v4417 = vpack.c.b16 %v4393, %v4390
    %v4418 = vpack.c.b16 %v4394, %v4391
    %v4419 = vpack.c.b16 %v4398, %v4395
    %v4420 = vpack.c.b16 %v4399, %v4396
    %v4421 = vpack.c.b16 %v4400, %v4397
    %v4422 = vpack.c.b16 %v4404, %v4401
    %v4423 = vpack.c.b16 %v4405, %v4402
    %v4424 = vpack.c.b16 %v4406, %v4403
    %v4425 = vpack.c.b16 %v4410, %v4407
    %v4426 = vpack.c.b16 %v4411, %v4408
    %v4427 = vpack.c.b16 %v4412, %v4409
    %v4428 = vpack.c.b16 %v4413, %v4413
    %v4429 = vpack.c.b16 %v4414, %v4414
    %v4430 = vpack.c.b16 %v4415, %v4415
    %v4442 = vsel %vm2372, %v4418, 0
    %v4445 = vsel %vm2372, %v4421, 0
    %v4448 = vsel %vm2372, %v4424, 0
    %v4451 = vsel %vm2372, %v4427, 0
    %v4454 = vsel %vm2372, %v4430, 0
    %4456 = vmatpush.bf16.msra.mxu0 %v2274
    %4457 = vmatpush.bf16.msra.mxu0 %v2273
    %4458 = vmatpush.bf16.msra.mxu0 %v2272
    %4459 = vmatpush.bf16.msra.mxu0 %v2271
    %4460 = vmatpush.bf16.msra.mxu0 %v2270
    %4461 = vmatpush.bf16.msra.mxu0 %v2269
    %4462 = vmatpush.bf16.msra.mxu0 %v2268
    %4463 = vmatpush.bf16.msra.mxu0 %v2267
    %4464 = vmatmul.bf16.gmra.mxu0 %v4416
    %v4465 = vpop.f32.mrf.mxu0
    %v4466 = vadd.f32 0.0, %v4465
    %v4467 = vpop.f32.mrf.mxu0
    %v4468 = vadd.f32 0.0, %v4467
    %4469 = vmatmul.bf16.gmra.mxu0 %v4419
    %v4470 = vpop.f32.mrf.mxu0
    %v4471 = vadd.f32 0.0, %v4470
    %v4472 = vpop.f32.mrf.mxu0
    %v4473 = vadd.f32 0.0, %v4472
    %4474 = vmatmul.bf16.gmra.mxu0 %v4422
    %v4475 = vpop.f32.mrf.mxu0
    %v4476 = vadd.f32 0.0, %v4475
    %v4477 = vpop.f32.mrf.mxu0
    %v4478 = vadd.f32 0.0, %v4477
    %4479 = vmatmul.bf16.gmra.mxu0 %v4425
    %v4480 = vpop.f32.mrf.mxu0
    %v4481 = vadd.f32 0.0, %v4480
    %v4482 = vpop.f32.mrf.mxu0
    %v4483 = vadd.f32 0.0, %v4482
    %4484 = vmatmul.bf16.gmra.mxu0 %v4428
    %v4485 = vpop.f32.mrf.mxu0
    %v4486 = vadd.f32 0.0, %v4485
    %v4487 = vpop.f32.mrf.mxu0
    %4488 = vdwg.mxu0
    %4489 = vmatpush.bf16.msra.mxu0 %v2282
    %4490 = vmatpush.bf16.msra.mxu0 %v2281
    %4491 = vmatpush.bf16.msra.mxu0 %v2280
    %4492 = vmatpush.bf16.msra.mxu0 %v2279
    %4493 = vmatpush.bf16.msra.mxu0 %v2278
    %4494 = vmatpush.bf16.msra.mxu0 %v2277
    %4495 = vmatpush.bf16.msra.mxu0 %v2276
    %4496 = vmatpush.bf16.msra.mxu0 %v2275
    %4497 = vmatmul.bf16.gmra.mxu0 %v4417
    %v4498 = vpop.f32.mrf.mxu0
    %v4499 = vadd.f32 %v4466, %v4498
    %v4500 = vpop.f32.mrf.mxu0
    %v4501 = vadd.f32 %v4468, %v4500
    %4502 = vmatmul.bf16.gmra.mxu0 %v4420
    %v4503 = vpop.f32.mrf.mxu0
    %v4504 = vadd.f32 %v4471, %v4503
    %v4505 = vpop.f32.mrf.mxu0
    %v4506 = vadd.f32 %v4473, %v4505
    %4507 = vmatmul.bf16.gmra.mxu0 %v4423
    %v4508 = vpop.f32.mrf.mxu0
    %v4509 = vadd.f32 %v4476, %v4508
    %v4510 = vpop.f32.mrf.mxu0
    %v4511 = vadd.f32 %v4478, %v4510
    %4512 = vmatmul.bf16.gmra.mxu0 %v4426
    %v4513 = vpop.f32.mrf.mxu0
    %v4514 = vadd.f32 %v4481, %v4513
    %v4515 = vpop.f32.mrf.mxu0
    %v4516 = vadd.f32 %v4483, %v4515
    %4517 = vmatmul.bf16.gmra.mxu0 %v4429
    %v4518 = vpop.f32.mrf.mxu0
    %v4519 = vadd.f32 %v4486, %v4518
    %v4520 = vpop.f32.mrf.mxu0
    %4521 = vdwg.mxu0
    %4522 = vmatpush.bf16.msra.mxu0 0
    %4523 = vmatpush.bf16.msra.mxu0 0
    %4524 = vmatpush.bf16.msra.mxu0 0
    %4525 = vmatpush.bf16.msra.mxu0 0
    %4526 = vmatpush.bf16.msra.mxu0 0
    %4527 = vmatpush.bf16.msra.mxu0 0
    %4528 = vmatpush.bf16.msra.mxu0 0
    %4529 = vmatpush.bf16.msra.mxu0 %v2283
    %4530 = vmatmul.bf16.gmra.mxu0 %v4442
    %v4531 = vpop.f32.mrf.mxu0
    %v4532 = vadd.f32 %v4499, %v4531
    %v4533 = vpop.f32.mrf.mxu0
    %v4534 = vadd.f32 %v4501, %v4533
    %4535 = vmatmul.bf16.gmra.mxu0 %v4445
    %v4536 = vpop.f32.mrf.mxu0
    %v4537 = vadd.f32 %v4504, %v4536
    %v4538 = vpop.f32.mrf.mxu0
    %v4539 = vadd.f32 %v4506, %v4538
    %4540 = vmatmul.bf16.gmra.mxu0 %v4448
    %v4541 = vpop.f32.mrf.mxu0
    %v4542 = vadd.f32 %v4509, %v4541
    %v4543 = vpop.f32.mrf.mxu0
    %v4544 = vadd.f32 %v4511, %v4543
    %4545 = vmatmul.bf16.gmra.mxu0 %v4451
    %v4546 = vpop.f32.mrf.mxu0
    %v4547 = vadd.f32 %v4514, %v4546
    %v4548 = vpop.f32.mrf.mxu0
    %v4549 = vadd.f32 %v4516, %v4548
    %4550 = vmatmul.bf16.gmra.mxu0 %v4454
    %v4551 = vpop.f32.mrf.mxu0
    %v4552 = vadd.f32 %v4519, %v4551
    %v4553 = vpop.f32.mrf.mxu0
    %4554 = vdwg.mxu0
    %v4555 = vpack.c.bf16 %v4534, %v4532
    %v4556 = vpack.c.bf16 %v4539, %v4537
    %v4557 = vpack.c.bf16 %v4544, %v4542
    %v4558 = vpack.c.bf16 %v4549, %v4547
    %v4559 = vpack.c.bf16 %v4552, %v4552
    %s4560 = scalar_lea.vmem %s4, 224
    %v4561 = vld [vmem:[%s4560] sm:$0xf]
    %v4562 = vld [vmem:[%s4560 + $0x4] sm:$0xf]
    %v4563 = vld [vmem:[%s4560 + $0x8] sm:$0xf]
    %v4564 = vld [vmem:[%s4560 + $0xc] sm:$0xf]
    %v4565 = vld [vmem:[%s4560 + $0x10] sm:$0xf]
    %v4566 = vld [vmem:[%s4560 + $0x14] sm:$0xf]
    %v4567 = vld [vmem:[%s4560 + $0x18] sm:$0xf]
    %v4568 = vld [vmem:[%s4560 + $0x1c] sm:$0xf]
    %v4577 = vunpack.c.l.b16 %v4561
    %v4578 = vunpack.c.l.b16 %v4562
    %v4579 = vunpack.c.l.b16 %v4563
    %v4580 = vunpack.c.l.b16 %v4564
    %v4581 = vunpack.c.l.b16 %v4565
    %v4582 = vunpack.c.l.b16 %v4566
    %v4583 = vunpack.c.l.b16 %v4567
    %v4584 = vunpack.c.l.b16 %v4568
    %v4585 = vpack.c.b16 %v4578, %v4577
    %v4586 = vpack.c.b16 %v4580, %v4579
    %v4587 = vpack.c.b16 %v4582, %v4581
    %v4588 = vpack.c.b16 %v4584, %v4583
    %v4594 = vsel %vm2741, %v4555, 0
    %v4597 = vsel %vm2741, %v4556, 0
    %v4600 = vsel %vm2741, %v4557, 0
    %v4603 = vsel %vm2741, %v4558, 0
    %v4606 = vsel %vm2741, %v4559, 0
    %4608 = vmatpush.bf16.msra.mxu0 0
    %4609 = vmatpush.bf16.msra.mxu0 0
    %4610 = vmatpush.bf16.msra.mxu0 0
    %4611 = vmatpush.bf16.msra.mxu0 0
    %4612 = vmatpush.bf16.msra.mxu0 %v4588
    %4613 = vmatpush.bf16.msra.mxu0 %v4587
    %4614 = vmatpush.bf16.msra.mxu0 %v4586
    %4615 = vmatpush.bf16.msra.mxu0 %v4585
    %4616 = vmatmul.bf16.gmra.mxu0 %v4594
    %v4617 = vpop.f32.mrf.mxu0
    %v4618 = vadd.f32 0.0, %v4617
    %v4619 = vpop.f32.mrf.mxu0
    %v4620 = vadd.f32 0.0, %v4619
    %4621 = vmatmul.bf16.gmra.mxu0 %v4597
    %v4622 = vpop.f32.mrf.mxu0
    %v4623 = vadd.f32 0.0, %v4622
    %v4624 = vpop.f32.mrf.mxu0
    %v4625 = vadd.f32 0.0, %v4624
    %4626 = vmatmul.bf16.gmra.mxu0 %v4600
    %v4627 = vpop.f32.mrf.mxu0
    %v4628 = vadd.f32 0.0, %v4627
    %v4629 = vpop.f32.mrf.mxu0
    %v4630 = vadd.f32 0.0, %v4629
    %4631 = vmatmul.bf16.gmra.mxu0 %v4603
    %v4632 = vpop.f32.mrf.mxu0
    %v4633 = vadd.f32 0.0, %v4632
    %v4634 = vpop.f32.mrf.mxu0
    %v4635 = vadd.f32 0.0, %v4634
    %4636 = vmatmul.bf16.gmra.mxu0 %v4606
    %v4637 = vpop.f32.mrf.mxu0
    %v4638 = vadd.f32 0.0, %v4637
    %v4639 = vpop.f32.mrf.mxu0
    %4640 = vdwg.mxu0
    %v4641 = vadd.f32 %v4343, %v4618
    %v4642 = vadd.f32 %v4344, %v4620
    %v4643 = vadd.f32 %v4345, %v4623
    %v4644 = vadd.f32 %v4346, %v4625
    %v4645 = vadd.f32 %v4347, %v4628
    %v4646 = vadd.f32 %v4348, %v4630
    %v4647 = vadd.f32 %v4349, %v4633
    %v4648 = vadd.f32 %v4350, %v4635
    %v4649 = vadd.f32 %v4351, %v4638
    %s4650 = scalar_lea.vmem [#allocation2], 864
    %v4651 = vld [vmem:[%s4650] sm:$0xff]
    %v4652 = vld [vmem:[%s4650 + $0x8] sm:$0xf]
    %v4653 = vld [vmem:[%s4650 + $0xc] sm:$0xff]
    %v4654 = vld [vmem:[%s4650 + $0x14] sm:$0xf]
    %v4655 = vld [vmem:[%s4650 + $0x18] sm:$0xff]
    %v4656 = vld [vmem:[%s4650 + $0x20] sm:$0xf]
    %v4657 = vld [vmem:[%s4650 + $0x24] sm:$0xff]
    %v4658 = vld [vmem:[%s4650 + $0x2c] sm:$0xf]
    %v4659 = vld [vmem:[%s4650 + $0x30] sm:$0xff]
    %v4660 = vld [vmem:[%s4650 + $0x38] sm:$0xf]
    %v4661 = vld [vmem:[%s4650 + $0x3c] sm:$0xff]
    %v4662 = vld [vmem:[%s4650 + $0x44] sm:$0xf]
    %v4663 = vld [vmem:[%s4650 + $0x48] sm:$0xff]
    %v4664 = vld [vmem:[%s4650 + $0x50] sm:$0xf]
    %v4665 = vld [vmem:[%s4650 + $0x54] sm:$0xff]
    %v4666 = vld [vmem:[%s4650 + $0x5c] sm:$0xf]
    %v4667 = vld [vmem:[%s4650 + $0x60] sm:$0x33]
    %v4668 = vld [vmem:[%s4650 + $0x68] sm:$0x3]
    %v4687 = vunpack.c.l.b16 %v4651
    %v4688 = vunpack.c.h.b16 %v4651
    %v4689 = vunpack.c.l.b16 %v4652
    %v4690 = vunpack.c.l.b16 %v4653
    %v4691 = vunpack.c.h.b16 %v4653
    %v4692 = vunpack.c.l.b16 %v4654
    %v4693 = vunpack.c.l.b16 %v4655
    %v4694 = vunpack.c.h.b16 %v4655
    %v4695 = vunpack.c.l.b16 %v4656
    %v4696 = vunpack.c.l.b16 %v4657
    %v4697 = vunpack.c.h.b16 %v4657
    %v4698 = vunpack.c.l.b16 %v4658
    %v4699 = vunpack.c.l.b16 %v4659
    %v4700 = vunpack.c.h.b16 %v4659
    %v4701 = vunpack.c.l.b16 %v4660
    %v4702 = vunpack.c.l.b16 %v4661
    %v4703 = vunpack.c.h.b16 %v4661
    %v4704 = vunpack.c.l.b16 %v4662
    %v4705 = vunpack.c.l.b16 %v4663
    %v4706 = vunpack.c.h.b16 %v4663
    %v4707 = vunpack.c.l.b16 %v4664
    %v4708 = vunpack.c.l.b16 %v4665
    %v4709 = vunpack.c.h.b16 %v4665
    %v4710 = vunpack.c.l.b16 %v4666
    %v4711 = vunpack.c.l.b16 %v4667
    %v4712 = vunpack.c.h.b16 %v4667
    %v4713 = vunpack.c.l.b16 %v4668
    %v4714 = vpack.c.b16 %v4690, %v4687
    %v4715 = vpack.c.b16 %v4691, %v4688
    %v4716 = vpack.c.b16 %v4692, %v4689
    %v4717 = vpack.c.b16 %v4696, %v4693
    %v4718 = vpack.c.b16 %v4697, %v4694
    %v4719 = vpack.c.b16 %v4698, %v4695
    %v4720 = vpack.c.b16 %v4702, %v4699
    %v4721 = vpack.c.b16 %v4703, %v4700
    %v4722 = vpack.c.b16 %v4704, %v4701
    %v4723 = vpack.c.b16 %v4708, %v4705
    %v4724 = vpack.c.b16 %v4709, %v4706
    %v4725 = vpack.c.b16 %v4710, %v4707
    %v4726 = vpack.c.b16 %v4711, %v4711
    %v4727 = vpack.c.b16 %v4712, %v4712
    %v4728 = vpack.c.b16 %v4713, %v4713
    %v4740 = vsel %vm2372, %v4716, 0
    %v4743 = vsel %vm2372, %v4719, 0
    %v4746 = vsel %vm2372, %v4722, 0
    %v4749 = vsel %vm2372, %v4725, 0
    %v4752 = vsel %vm2372, %v4728, 0
    %4754 = vmatpush.bf16.msra.mxu0 %v2274
    %4755 = vmatpush.bf16.msra.mxu0 %v2273
    %4756 = vmatpush.bf16.msra.mxu0 %v2272
    %4757 = vmatpush.bf16.msra.mxu0 %v2271
    %4758 = vmatpush.bf16.msra.mxu0 %v2270
    %4759 = vmatpush.bf16.msra.mxu0 %v2269
    %4760 = vmatpush.bf16.msra.mxu0 %v2268
    %4761 = vmatpush.bf16.msra.mxu0 %v2267
    %4762 = vmatmul.bf16.gmra.mxu0 %v4714
    %v4763 = vpop.f32.mrf.mxu0
    %v4764 = vadd.f32 0.0, %v4763
    %v4765 = vpop.f32.mrf.mxu0
    %v4766 = vadd.f32 0.0, %v4765
    %4767 = vmatmul.bf16.gmra.mxu0 %v4717
    %v4768 = vpop.f32.mrf.mxu0
    %v4769 = vadd.f32 0.0, %v4768
    %v4770 = vpop.f32.mrf.mxu0
    %v4771 = vadd.f32 0.0, %v4770
    %4772 = vmatmul.bf16.gmra.mxu0 %v4720
    %v4773 = vpop.f32.mrf.mxu0
    %v4774 = vadd.f32 0.0, %v4773
    %v4775 = vpop.f32.mrf.mxu0
    %v4776 = vadd.f32 0.0, %v4775
    %4777 = vmatmul.bf16.gmra.mxu0 %v4723
    %v4778 = vpop.f32.mrf.mxu0
    %v4779 = vadd.f32 0.0, %v4778
    %v4780 = vpop.f32.mrf.mxu0
    %v4781 = vadd.f32 0.0, %v4780
    %4782 = vmatmul.bf16.gmra.mxu0 %v4726
    %v4783 = vpop.f32.mrf.mxu0
    %v4784 = vadd.f32 0.0, %v4783
    %v4785 = vpop.f32.mrf.mxu0
    %4786 = vdwg.mxu0
    %4787 = vmatpush.bf16.msra.mxu0 %v2282
    %4788 = vmatpush.bf16.msra.mxu0 %v2281
    %4789 = vmatpush.bf16.msra.mxu0 %v2280
    %4790 = vmatpush.bf16.msra.mxu0 %v2279
    %4791 = vmatpush.bf16.msra.mxu0 %v2278
    %4792 = vmatpush.bf16.msra.mxu0 %v2277
    %4793 = vmatpush.bf16.msra.mxu0 %v2276
    %4794 = vmatpush.bf16.msra.mxu0 %v2275
    %4795 = vmatmul.bf16.gmra.mxu0 %v4715
    %v4796 = vpop.f32.mrf.mxu0
    %v4797 = vadd.f32 %v4764, %v4796
    %v4798 = vpop.f32.mrf.mxu0
    %v4799 = vadd.f32 %v4766, %v4798
    %4800 = vmatmul.bf16.gmra.mxu0 %v4718
    %v4801 = vpop.f32.mrf.mxu0
    %v4802 = vadd.f32 %v4769, %v4801
    %v4803 = vpop.f32.mrf.mxu0
    %v4804 = vadd.f32 %v4771, %v4803
    %4805 = vmatmul.bf16.gmra.mxu0 %v4721
    %v4806 = vpop.f32.mrf.mxu0
    %v4807 = vadd.f32 %v4774, %v4806
    %v4808 = vpop.f32.mrf.mxu0
    %v4809 = vadd.f32 %v4776, %v4808
    %4810 = vmatmul.bf16.gmra.mxu0 %v4724
    %v4811 = vpop.f32.mrf.mxu0
    %v4812 = vadd.f32 %v4779, %v4811
    %v4813 = vpop.f32.mrf.mxu0
    %v4814 = vadd.f32 %v4781, %v4813
    %4815 = vmatmul.bf16.gmra.mxu0 %v4727
    %v4816 = vpop.f32.mrf.mxu0
    %v4817 = vadd.f32 %v4784, %v4816
    %v4818 = vpop.f32.mrf.mxu0
    %4819 = vdwg.mxu0
    %4820 = vmatpush.bf16.msra.mxu0 0
    %4821 = vmatpush.bf16.msra.mxu0 0
    %4822 = vmatpush.bf16.msra.mxu0 0
    %4823 = vmatpush.bf16.msra.mxu0 0
    %4824 = vmatpush.bf16.msra.mxu0 0
    %4825 = vmatpush.bf16.msra.mxu0 0
    %4826 = vmatpush.bf16.msra.mxu0 0
    %4827 = vmatpush.bf16.msra.mxu0 %v2283
    %4828 = vmatmul.bf16.gmra.mxu0 %v4740
    %v4829 = vpop.f32.mrf.mxu0
    %v4830 = vadd.f32 %v4797, %v4829
    %v4831 = vpop.f32.mrf.mxu0
    %v4832 = vadd.f32 %v4799, %v4831
    %4833 = vmatmul.bf16.gmra.mxu0 %v4743
    %v4834 = vpop.f32.mrf.mxu0
    %v4835 = vadd.f32 %v4802, %v4834
    %v4836 = vpop.f32.mrf.mxu0
    %v4837 = vadd.f32 %v4804, %v4836
    %4838 = vmatmul.bf16.gmra.mxu0 %v4746
    %v4839 = vpop.f32.mrf.mxu0
    %v4840 = vadd.f32 %v4807, %v4839
    %v4841 = vpop.f32.mrf.mxu0
    %v4842 = vadd.f32 %v4809, %v4841
    %4843 = vmatmul.bf16.gmra.mxu0 %v4749
    %v4844 = vpop.f32.mrf.mxu0
    %v4845 = vadd.f32 %v4812, %v4844
    %v4846 = vpop.f32.mrf.mxu0
    %v4847 = vadd.f32 %v4814, %v4846
    %4848 = vmatmul.bf16.gmra.mxu0 %v4752
    %v4849 = vpop.f32.mrf.mxu0
    %v4850 = vadd.f32 %v4817, %v4849
    %v4851 = vpop.f32.mrf.mxu0
    %4852 = vdwg.mxu0
    %v4853 = vpack.c.bf16 %v4832, %v4830
    %v4854 = vpack.c.bf16 %v4837, %v4835
    %v4855 = vpack.c.bf16 %v4842, %v4840
    %v4856 = vpack.c.bf16 %v4847, %v4845
    %v4857 = vpack.c.bf16 %v4850, %v4850
    %s4858 = scalar_lea.vmem %s4, 256
    %v4859 = vld [vmem:[%s4858] sm:$0xf]
    %v4860 = vld [vmem:[%s4858 + $0x4] sm:$0xf]
    %v4861 = vld [vmem:[%s4858 + $0x8] sm:$0xf]
    %v4862 = vld [vmem:[%s4858 + $0xc] sm:$0xf]
    %v4863 = vld [vmem:[%s4858 + $0x10] sm:$0xf]
    %v4864 = vld [vmem:[%s4858 + $0x14] sm:$0xf]
    %v4865 = vld [vmem:[%s4858 + $0x18] sm:$0xf]
    %v4866 = vld [vmem:[%s4858 + $0x1c] sm:$0xf]
    %v4875 = vunpack.c.l.b16 %v4859
    %v4876 = vunpack.c.l.b16 %v4860
    %v4877 = vunpack.c.l.b16 %v4861
    %v4878 = vunpack.c.l.b16 %v4862
    %v4879 = vunpack.c.l.b16 %v4863
    %v4880 = vunpack.c.l.b16 %v4864
    %v4881 = vunpack.c.l.b16 %v4865
    %v4882 = vunpack.c.l.b16 %v4866
    %v4883 = vpack.c.b16 %v4876, %v4875
    %v4884 = vpack.c.b16 %v4878, %v4877
    %v4885 = vpack.c.b16 %v4880, %v4879
    %v4886 = vpack.c.b16 %v4882, %v4881
    %v4892 = vsel %vm2741, %v4853, 0
    %v4895 = vsel %vm2741, %v4854, 0
    %v4898 = vsel %vm2741, %v4855, 0
    %v4901 = vsel %vm2741, %v4856, 0
    %v4904 = vsel %vm2741, %v4857, 0
    %4906 = vmatpush.bf16.msra.mxu0 0
    %4907 = vmatpush.bf16.msra.mxu0 0
    %4908 = vmatpush.bf16.msra.mxu0 0
    %4909 = vmatpush.bf16.msra.mxu0 0
    %4910 = vmatpush.bf16.msra.mxu0 %v4886
    %4911 = vmatpush.bf16.msra.mxu0 %v4885
    %4912 = vmatpush.bf16.msra.mxu0 %v4884
    %4913 = vmatpush.bf16.msra.mxu0 %v4883
    %4914 = vmatmul.bf16.gmra.mxu0 %v4892
    %v4915 = vpop.f32.mrf.mxu0
    %v4916 = vadd.f32 0.0, %v4915
    %v4917 = vpop.f32.mrf.mxu0
    %v4918 = vadd.f32 0.0, %v4917
    %4919 = vmatmul.bf16.gmra.mxu0 %v4895
    %v4920 = vpop.f32.mrf.mxu0
    %v4921 = vadd.f32 0.0, %v4920
    %v4922 = vpop.f32.mrf.mxu0
    %v4923 = vadd.f32 0.0, %v4922
    %4924 = vmatmul.bf16.gmra.mxu0 %v4898
    %v4925 = vpop.f32.mrf.mxu0
    %v4926 = vadd.f32 0.0, %v4925
    %v4927 = vpop.f32.mrf.mxu0
    %v4928 = vadd.f32 0.0, %v4927
    %4929 = vmatmul.bf16.gmra.mxu0 %v4901
    %v4930 = vpop.f32.mrf.mxu0
    %v4931 = vadd.f32 0.0, %v4930
    %v4932 = vpop.f32.mrf.mxu0
    %v4933 = vadd.f32 0.0, %v4932
    %4934 = vmatmul.bf16.gmra.mxu0 %v4904
    %v4935 = vpop.f32.mrf.mxu0
    %v4936 = vadd.f32 0.0, %v4935
    %v4937 = vpop.f32.mrf.mxu0
    %4938 = vdwg.mxu0
    %v4939 = vadd.f32 %v4641, %v4916
    %v4940 = vadd.f32 %v4642, %v4918
    %v4941 = vadd.f32 %v4643, %v4921
    %v4942 = vadd.f32 %v4644, %v4923
    %v4943 = vadd.f32 %v4645, %v4926
    %v4944 = vadd.f32 %v4646, %v4928
    %v4945 = vadd.f32 %v4647, %v4931
    %v4946 = vadd.f32 %v4648, %v4933
    %v4947 = vadd.f32 %v4649, %v4936
    %v4948 = vld [vmem:[%s5] sm:$0x1]
    %v4950 = vperm.slane %v4948, 0
    %v4952 = vadd.f32 %v4939, %v4950
    %v4953 = vadd.f32 %v4940, %v4950
    %v4954 = vadd.f32 %v4941, %v4950
    %v4955 = vadd.f32 %v4942, %v4950
    %v4956 = vadd.f32 %v4943, %v4950
    %v4957 = vadd.f32 %v4944, %v4950
    %v4958 = vadd.f32 %v4945, %v4950
    %v4959 = vadd.f32 %v4946, %v4950
    %v4960 = vadd.f32 %v4947, %v4950
    %4961 = vst [vmem:[#allocation5] sm:$0xff] %v4952
    %4962 = vst [vmem:[#allocation5 + $0x8] sm:$0xff] %v4953
    %4963 = vst [vmem:[#allocation5 + $0x10] sm:$0xff] %v4954
    %4964 = vst [vmem:[#allocation5 + $0x18] sm:$0xff] %v4955
    %4965 = vst [vmem:[#allocation5 + $0x20] sm:$0xff] %v4956
    %4966 = vst [vmem:[#allocation5 + $0x28] sm:$0xff] %v4957
    %4967 = vst [vmem:[#allocation5 + $0x30] sm:$0xff] %v4958
    %4968 = vst [vmem:[#allocation5 + $0x38] sm:$0xff] %v4959
    %4969 = vst [vmem:[#allocation5 + $0x40] sm:$0xf] %v4960
    // Predicated region
    $region30: #{tpu_custom_call.1} parent=1 // pred_check
      _
    $region31: #{tpu_custom_call.1} parent=1 // pred_check_branch
      %4971 = sbr.rel (0) target = $region33
    $region32: #{tpu_custom_call.1} parent=1 // pred_region
      %4973 = vsyncadd [#allocation4], 0
      %s4974 = sshll.u32 [#allocation5], 4
      %s4975 = int_to_ptr.vmem [resolvable:$true] %s4974
      %s4976 = sshll.u32 %s6, 4
      %s4977 = int_to_ptr.hbm [resolvable:$true] %s4976
      %4982 = dma.vmem_to_hbm [thread:$0]  %s4975, 1152, %s4977, [#allocation4], 128, 128, 8
    $region33: #{tpu_custom_call.1} parent=1 // pred_fallthru
      _
    // Predicated region
    $region34: #{tpu_custom_call.1} parent=1 // pred_check
      _
    $region35: #{tpu_custom_call.1} parent=1 // pred_check_branch
      %4984 = sbr.rel (0) target = $region37
    $region36: #{tpu_custom_call.1} parent=1 // pred_region
      %4986 = dma.done [#allocation4], 1152
    $region37: #{tpu_custom_call.1} parent=1 // pred_fallthru
      _
    %4987 = vsyncpa [#allocation3], 1
    %4988 = vsyncpa [#allocation4], 1

</llo_original>
